<compile_context>
chip_gen: v5e
topology: v5e:2x2
jax: 0.10.0
libtpu: 0.0.40
codegen_flags: <defaults>
</compile_context>

<pallas_src>
import math

import jax
import jax.numpy as jnp
from jax.experimental import pallas as pl
from jax.experimental.pallas import tpu as pltpu

INPUT_SIZE = 28 * 28          # 784
NUM_CLASSES = 10
LATENT_SIZE = 15
HIDDEN = 256
OUT_PAD = 896                 # 7 * 128 -> lane-dense decoder output slab
HEAD_PAD = 128                # fused (mu || logvar) head padded to one lane tile
TILE_N = 256                  # default rows per grid step


def _round_up(x, m):
    return (x + m - 1) // m * m


def _dot(a, b):
    # bf16 x bf16 MXU matmul with f32 accumulation.
    return jnp.dot(a.astype(jnp.bfloat16), b, preferred_element_type=jnp.float32)


def cvae_kernel(
    x_ref, c_ref, eps_ref,
    w1x_ref, w1c_ref, b1_ref,
    w2_ref, b2_ref,
    w3_ref, b3_ref,
    wh_ref, bh_ref,
    wd1z_ref, wd1c_ref, bd1_ref,
    wd2_ref, bd2_ref,
    wd3_ref, bd3_ref,
    wd4_ref, bd4_ref,
    xhat_ref, heads_ref,
):
    x = x_ref[...]            # (T, 784) bf16
    c = c_ref[...]            # (T, 10)  bf16 (one-hot)
    eps = eps_ref[...]        # (T, 15)  f32

    # ---- encoder: Linear(794,256)+ReLU, Linear(256,256)+ReLU, Linear(256,256)+ReLU
    # concat([x, c]) @ W1 == x @ W1[:784] + c @ W1[784:]
    h = _dot(x, w1x_ref[...]) + _dot(c, w1c_ref[...]) + b1_ref[...]
    h = jnp.maximum(h, 0.0)
    h = jnp.maximum(_dot(h, w2_ref[...]) + b2_ref[...], 0.0)
    h = jnp.maximum(_dot(h, w3_ref[...]) + b3_ref[...], 0.0)

    # ---- fused latent heads: cols [0:15)=mu, [15:30)=logvar, rest zero-padded
    heads = _dot(h, wh_ref[...]) + bh_ref[...]              # (T, 128) f32, lane-dense
    heads_ref[...] = heads

    mu = heads[:, :LATENT_SIZE]                             # (T, 15)
    logvar = heads[:, LATENT_SIZE:2 * LATENT_SIZE]          # (T, 15)

    # ---- reparametrize: z = mu + eps * sqrt(exp(logvar))
    z = mu + eps * jnp.exp(0.5 * logvar)                    # (T, 15) f32

    # ---- decoder: Linear(25,256)+ReLU x1, Linear(256,256)+ReLU x2, Linear(256,896)+Sigmoid
    # concat([z, c]) @ Wd1 == z @ Wd1[:15] + c @ Wd1[15:]
    d = _dot(z, wd1z_ref[...]) + _dot(c, wd1c_ref[...]) + bd1_ref[...]
    d = jnp.maximum(d, 0.0)
    d = jnp.maximum(_dot(d, wd2_ref[...]) + bd2_ref[...], 0.0)
    d = jnp.maximum(_dot(d, wd3_ref[...]) + bd3_ref[...], 0.0)
    logits = _dot(d, wd4_ref[...]) + bd4_ref[...]           # (T, 896) f32 (cols 784: are zero-weight pad)
    xhat_ref[...] = jax.nn.sigmoid(logits)


def cvae_forward(x, c, eps, params, tile_n=TILE_N):
    """x: (N, 1, 28, 28), c: (N, 10) one-hot, eps: (N, 15) standard-normal noise."""
    N = x.shape[0]
    x_flat = x.reshape(N, -1).astype(jnp.bfloat16)          # == torch x.view(N, -1)
    c_in = c.astype(jnp.bfloat16)
    eps_in = eps.astype(jnp.float32)

    # Batch tiling: pad N up to a multiple of the tile; padded rows are zeros and sliced off.
    tile = min(tile_n, _round_up(max(N, 1), 8))
    n_pad = _round_up(N, tile)
    if n_pad != N:
        pad = ((0, n_pad - N), (0, 0))
        x_flat = jnp.pad(x_flat, pad)
        c_in = jnp.pad(c_in, pad)
        eps_in = jnp.pad(eps_in, pad)

    grid = (n_pad // tile,)

    def batch_spec(feat):
        return pl.BlockSpec((tile, feat), lambda i: (i, 0))

    def const_spec(p):
        # Weight / bias: full-shape block, constant index map -> resident in VMEM.
        return pl.BlockSpec(p.shape, lambda i: (0, 0))

    in_specs = [batch_spec(INPUT_SIZE), batch_spec(NUM_CLASSES), batch_spec(LATENT_SIZE)]
    in_specs += [const_spec(p) for p in params]

    out_specs = [
        pl.BlockSpec((tile, OUT_PAD), lambda i: (i, 0)),
        pl.BlockSpec((tile, HEAD_PAD), lambda i: (i, 0)),
    ]
    out_shape = (
        jax.ShapeDtypeStruct((n_pad, OUT_PAD), jnp.float32),   # padded x_hat logits->sigmoid
        jax.ShapeDtypeStruct((n_pad, HEAD_PAD), jnp.float32),  # fused [mu | logvar | 0-pad]
    )

    # Advisory scheduling hints.
    flops_per_row = 2 * (
        (INPUT_SIZE + NUM_CLASSES) * HIDDEN + 2 * HIDDEN * HIDDEN + HIDDEN * HEAD_PAD
        + (LATENT_SIZE + NUM_CLASSES) * HIDDEN + 2 * HIDDEN * HIDDEN + HIDDEN * OUT_PAD
    )
    weight_bytes = sum(int(p.size) * p.dtype.itemsize for p in params)
    io_bytes = n_pad * (INPUT_SIZE * 2 + NUM_CLASSES * 2 + LATENT_SIZE * 4
                        + OUT_PAD * 4 + HEAD_PAD * 4)
    cost = pl.CostEstimate(
        flops=int(n_pad * flops_per_row),
        transcendentals=int(n_pad * (OUT_PAD + LATENT_SIZE)),
        bytes_accessed=int(weight_bytes + io_bytes),
    )

    xhat_pad, heads = pl.pallas_call(
        cvae_kernel,
        grid=grid,
        in_specs=in_specs,
        out_specs=out_specs,
        out_shape=out_shape,
        compiler_params=pltpu.CompilerParams(
            dimension_semantics=("parallel",),
            vmem_limit_bytes=32 * 1024 * 1024,
        ),
        cost_estimate=cost,
    )(x_flat, c_in, eps_in, *params)

    # nn.Unflatten(1, (1, 28, 28)) after dropping the lane padding / batch padding.
    x_hat = xhat_pad[:N, :INPUT_SIZE].reshape(N, 1, 28, 28)
    mu = heads[:N, :LATENT_SIZE]
    logvar = heads[:N, LATENT_SIZE:2 * LATENT_SIZE]
    return x_hat, mu, logvar


def _linear(key, fan_in, fan_out):
    """PyTorch-style nn.Linear init; weight stored as (fan_in, fan_out)."""
    kw, kb = jax.random.split(key)
    bound = 1.0 / math.sqrt(fan_in)
    w = jax.random.uniform(kw, (fan_in, fan_out), jnp.float32, -bound, bound)
    b = jax.random.uniform(kb, (1, fan_out), jnp.float32, -bound, bound)
    return w, b


def init_params(key):
    keys = jax.random.split(key, 9)
    # encoder layer 1: Linear(784 + 10, 256) -> split into x-part and c-part
    w1, b1 = _linear(keys[0], INPUT_SIZE + NUM_CLASSES, HIDDEN)
    w1x, w1c = w1[:INPUT_SIZE], w1[INPUT_SIZE:]
    w2, b2 = _linear(keys[1], HIDDEN, HIDDEN)
    w3, b3 = _linear(keys[2], HIDDEN, HIDDEN)
    # fused + lane-padded latent heads (mu cols 0:15, logvar cols 15:30, rest zero)
    wmu, bmu = _linear(keys[3], HIDDEN, LATENT_SIZE)
    wlv, blv = _linear(keys[4], HIDDEN, LATENT_SIZE)
    wh = jnp.zeros((HIDDEN, HEAD_PAD), jnp.float32)
    wh = wh.at[:, :LATENT_SIZE].set(wmu).at[:, LATENT_SIZE:2 * LATENT_SIZE].set(wlv)
    bh = jnp.zeros((1, HEAD_PAD), jnp.float32)
    bh = bh.at[:, :LATENT_SIZE].set(bmu).at[:, LATENT_SIZE:2 * LATENT_SIZE].set(blv)
    # decoder layer 1: Linear(15 + 10, 256) -> split into z-part and c-part
    wd1, bd1 = _linear(keys[5], LATENT_SIZE + NUM_CLASSES, HIDDEN)
    wd1z, wd1c = wd1[:LATENT_SIZE], wd1[LATENT_SIZE:]
    wd2, bd2 = _linear(keys[6], HIDDEN, HIDDEN)
    wd3, bd3 = _linear(keys[7], HIDDEN, HIDDEN)
    # decoder output layer padded 784 -> 896 with zero columns (exact, sliced off in wrapper)
    wd4, bd4 = _linear(keys[8], HIDDEN, INPUT_SIZE)
    wd4p = jnp.zeros((HIDDEN, OUT_PAD), jnp.float32).at[:, :INPUT_SIZE].set(wd4)
    bd4p = jnp.zeros((1, OUT_PAD), jnp.float32).at[:, :INPUT_SIZE].set(bd4)

    bf = lambda w: w.astype(jnp.bfloat16)   # weights bf16 (MXU rate + half HBM/VMEM), biases f32
    return (
        bf(w1x), bf(w1c), b1,
        bf(w2), b2, bf(w3), b3,
        bf(wh), bh,
        bf(wd1z), bf(wd1c), bd1,
        bf(wd2), bd2, bf(wd3), bd3,
        bf(wd4p), bd4p,
    )


if __name__ == "__main__":
    key = jax.random.PRNGKey(0)
    k_param, k_x, k_c, k_eps = jax.random.split(key, 4)

    N = 2
    params = init_params(k_param)

    x = jax.random.uniform(k_x, (N, 1, 28, 28), jnp.float32)          # image batch
    labels = jax.random.randint(k_c, (N,), 0, NUM_CLASSES)
    c = jax.nn.one_hot(labels, NUM_CLASSES, dtype=jnp.float32)        # one-hot classes
    # torch.randn inside reparametrize -> pass deterministic eps explicitly
    eps = jax.random.normal(k_eps, (N, LATENT_SIZE), jnp.float32)

    x_hat, mu, logvar = cvae_forward(x, c, eps, params)
    jax.block_until_ready((x_hat, mu, logvar))

    assert x_hat.shape == (N, 1, 28, 28)
    assert mu.shape == (N, LATENT_SIZE)
    assert logvar.shape == (N, LATENT_SIZE)
    assert bool(jnp.all(jnp.isfinite(x_hat)))
    print("KERNEL_OK")
</pallas_src>

<mosaic_0001>
module attributes {stable_mosaic.version = 11 : i64} {
  func.func @cvae_kernel(%arg0: i32, %arg1: memref<8x784xbf16, #tpu.memory_space<vmem>>, %arg2: memref<8x10xbf16, #tpu.memory_space<vmem>>, %arg3: memref<8x15xf32, #tpu.memory_space<vmem>>, %arg4: memref<784x256xbf16, #tpu.memory_space<vmem>>, %arg5: memref<10x256xbf16, #tpu.memory_space<vmem>>, %arg6: memref<1x256xf32, #tpu.memory_space<vmem>>, %arg7: memref<256x256xbf16, #tpu.memory_space<vmem>>, %arg8: memref<1x256xf32, #tpu.memory_space<vmem>>, %arg9: memref<256x256xbf16, #tpu.memory_space<vmem>>, %arg10: memref<1x256xf32, #tpu.memory_space<vmem>>, %arg11: memref<256x128xbf16, #tpu.memory_space<vmem>>, %arg12: memref<1x128xf32, #tpu.memory_space<vmem>>, %arg13: memref<15x256xbf16, #tpu.memory_space<vmem>>, %arg14: memref<10x256xbf16, #tpu.memory_space<vmem>>, %arg15: memref<1x256xf32, #tpu.memory_space<vmem>>, %arg16: memref<256x256xbf16, #tpu.memory_space<vmem>>, %arg17: memref<1x256xf32, #tpu.memory_space<vmem>>, %arg18: memref<256x256xbf16, #tpu.memory_space<vmem>>, %arg19: memref<1x256xf32, #tpu.memory_space<vmem>>, %arg20: memref<256x896xbf16, #tpu.memory_space<vmem>>, %arg21: memref<1x896xf32, #tpu.memory_space<vmem>>, %arg22: memref<8x896xf32, #tpu.memory_space<vmem>>, %arg23: memref<8x128xf32, #tpu.memory_space<vmem>>) attributes {dimension_semantics = [#tpu.dimension_semantics<parallel>], iteration_bounds = array<i64: 1>, scalar_prefetch = 0 : i64, scratch_operands = 0 : i64, tpu.core_type = #tpu.core_type<tc>, window_params = [{transform_indices = @transform_0, window_bounds = array<i64: 8, 784>}, {transform_indices = @transform_1, window_bounds = array<i64: 8, 10>}, {transform_indices = @transform_2, window_bounds = array<i64: 8, 15>}, {pipeline_mode = #tpu.pipeline_mode<synchronous>, transform_indices = @transform_3, window_bounds = array<i64: 784, 256>}, {pipeline_mode = #tpu.pipeline_mode<synchronous>, transform_indices = @transform_4, window_bounds = array<i64: 10, 256>}, {pipeline_mode = #tpu.pipeline_mode<synchronous>, transform_indices = @transform_5, window_bounds = array<i64: 1, 256>}, {pipeline_mode = #tpu.pipeline_mode<synchronous>, transform_indices = @transform_6, window_bounds = array<i64: 256, 256>}, {pipeline_mode = #tpu.pipeline_mode<synchronous>, transform_indices = @transform_7, window_bounds = array<i64: 1, 256>}, {pipeline_mode = #tpu.pipeline_mode<synchronous>, transform_indices = @transform_8, window_bounds = array<i64: 256, 256>}, {pipeline_mode = #tpu.pipeline_mode<synchronous>, transform_indices = @transform_9, window_bounds = array<i64: 1, 256>}, {pipeline_mode = #tpu.pipeline_mode<synchronous>, transform_indices = @transform_10, window_bounds = array<i64: 256, 128>}, {pipeline_mode = #tpu.pipeline_mode<synchronous>, transform_indices = @transform_11, window_bounds = array<i64: 1, 128>}, {pipeline_mode = #tpu.pipeline_mode<synchronous>, transform_indices = @transform_12, window_bounds = array<i64: 15, 256>}, {pipeline_mode = #tpu.pipeline_mode<synchronous>, transform_indices = @transform_13, window_bounds = array<i64: 10, 256>}, {pipeline_mode = #tpu.pipeline_mode<synchronous>, transform_indices = @transform_14, window_bounds = array<i64: 1, 256>}, {pipeline_mode = #tpu.pipeline_mode<synchronous>, transform_indices = @transform_15, window_bounds = array<i64: 256, 256>}, {pipeline_mode = #tpu.pipeline_mode<synchronous>, transform_indices = @transform_16, window_bounds = array<i64: 1, 256>}, {pipeline_mode = #tpu.pipeline_mode<synchronous>, transform_indices = @transform_17, window_bounds = array<i64: 256, 256>}, {pipeline_mode = #tpu.pipeline_mode<synchronous>, transform_indices = @transform_18, window_bounds = array<i64: 1, 256>}, {pipeline_mode = #tpu.pipeline_mode<synchronous>, transform_indices = @transform_19, window_bounds = array<i64: 256, 896>}, {pipeline_mode = #tpu.pipeline_mode<synchronous>, transform_indices = @transform_20, window_bounds = array<i64: 1, 896>}, {transform_indices = @transform_21, window_bounds = array<i64: 8, 896>}, {transform_indices = @transform_22, window_bounds = array<i64: 8, 128>}]} {
    %c0 = arith.constant 0 : index
    %c0_0 = arith.constant 0 : index
    %0 = vector.load %arg1[%c0, %c0_0] : memref<8x784xbf16, #tpu.memory_space<vmem>>, vector<8x784xbf16>
    %c0_1 = arith.constant 0 : index
    %c0_2 = arith.constant 0 : index
    %1 = vector.load %arg2[%c0_1, %c0_2] : memref<8x10xbf16, #tpu.memory_space<vmem>>, vector<8x10xbf16>
    %c0_3 = arith.constant 0 : index
    %c0_4 = arith.constant 0 : index
    %2 = vector.load %arg3[%c0_3, %c0_4] : memref<8x15xf32, #tpu.memory_space<vmem>>, vector<8x15xf32>
    %c0_5 = arith.constant 0 : index
    %c0_6 = arith.constant 0 : index
    %3 = vector.load %arg4[%c0_5, %c0_6] : memref<784x256xbf16, #tpu.memory_space<vmem>>, vector<784x256xbf16>
    %cst = arith.constant dense<0.000000e+00> : vector<8x256xf32>
    %4 = tpu.matmul %0, %3, %cst {dimension_numbers = #tpu.dot_dimension_numbers<[1], [0], [0], [1], [0, 0, 1, 1], [], []>} : vector<8x784xbf16>, vector<784x256xbf16>, vector<8x256xf32> -> vector<8x256xf32>
    %c0_7 = arith.constant 0 : index
    %c0_8 = arith.constant 0 : index
    %5 = vector.load %arg5[%c0_7, %c0_8] : memref<10x256xbf16, #tpu.memory_space<vmem>>, vector<10x256xbf16>
    %cst_9 = arith.constant dense<0.000000e+00> : vector<8x256xf32>
    %6 = tpu.matmul %1, %5, %cst_9 {dimension_numbers = #tpu.dot_dimension_numbers<[1], [0], [0], [1], [0, 0, 1, 1], [], []>} : vector<8x10xbf16>, vector<10x256xbf16>, vector<8x256xf32> -> vector<8x256xf32>
    %7 = arith.addf %4, %6 : vector<8x256xf32>
    %c0_10 = arith.constant 0 : index
    %c0_11 = arith.constant 0 : index
    %8 = vector.load %arg6[%c0_10, %c0_11] : memref<1x256xf32, #tpu.memory_space<vmem>>, vector<1x256xf32>
    %9 = vector.broadcast %8 : vector<1x256xf32> to vector<8x256xf32>
    %10 = arith.addf %7, %9 : vector<8x256xf32>
    %cst_12 = arith.constant 0.000000e+00 : f32
    %11 = vector.broadcast %cst_12 : f32 to vector<8x256xf32>
    %12 = arith.maximumf %10, %11 : vector<8x256xf32>
    %c0_13 = arith.constant 0 : index
    %c0_14 = arith.constant 0 : index
    %13 = vector.load %arg7[%c0_13, %c0_14] : memref<256x256xbf16, #tpu.memory_space<vmem>>, vector<256x256xbf16>
    %14 = arith.truncf %12 : vector<8x256xf32> to vector<8x256xbf16>
    %cst_15 = arith.constant dense<0.000000e+00> : vector<8x256xf32>
    %15 = tpu.matmul %14, %13, %cst_15 {dimension_numbers = #tpu.dot_dimension_numbers<[1], [0], [0], [1], [0, 0, 1, 1], [], []>} : vector<8x256xbf16>, vector<256x256xbf16>, vector<8x256xf32> -> vector<8x256xf32>
    %c0_16 = arith.constant 0 : index
    %c0_17 = arith.constant 0 : index
    %16 = vector.load %arg8[%c0_16, %c0_17] : memref<1x256xf32, #tpu.memory_space<vmem>>, vector<1x256xf32>
    %17 = vector.broadcast %16 : vector<1x256xf32> to vector<8x256xf32>
    %18 = arith.addf %15, %17 : vector<8x256xf32>
    %cst_18 = arith.constant 0.000000e+00 : f32
    %19 = vector.broadcast %cst_18 : f32 to vector<8x256xf32>
    %20 = arith.maximumf %18, %19 : vector<8x256xf32>
    %c0_19 = arith.constant 0 : index
    %c0_20 = arith.constant 0 : index
    %21 = vector.load %arg9[%c0_19, %c0_20] : memref<256x256xbf16, #tpu.memory_space<vmem>>, vector<256x256xbf16>
    %22 = arith.truncf %20 : vector<8x256xf32> to vector<8x256xbf16>
    %cst_21 = arith.constant dense<0.000000e+00> : vector<8x256xf32>
    %23 = tpu.matmul %22, %21, %cst_21 {dimension_numbers = #tpu.dot_dimension_numbers<[1], [0], [0], [1], [0, 0, 1, 1], [], []>} : vector<8x256xbf16>, vector<256x256xbf16>, vector<8x256xf32> -> vector<8x256xf32>
    %c0_22 = arith.constant 0 : index
    %c0_23 = arith.constant 0 : index
    %24 = vector.load %arg10[%c0_22, %c0_23] : memref<1x256xf32, #tpu.memory_space<vmem>>, vector<1x256xf32>
    %25 = vector.broadcast %24 : vector<1x256xf32> to vector<8x256xf32>
    %26 = arith.addf %23, %25 : vector<8x256xf32>
    %cst_24 = arith.constant 0.000000e+00 : f32
    %27 = vector.broadcast %cst_24 : f32 to vector<8x256xf32>
    %28 = arith.maximumf %26, %27 : vector<8x256xf32>
    %c0_25 = arith.constant 0 : index
    %c0_26 = arith.constant 0 : index
    %29 = vector.load %arg11[%c0_25, %c0_26] : memref<256x128xbf16, #tpu.memory_space<vmem>>, vector<256x128xbf16>
    %30 = arith.truncf %28 : vector<8x256xf32> to vector<8x256xbf16>
    %cst_27 = arith.constant dense<0.000000e+00> : vector<8x128xf32>
    %31 = tpu.matmul %30, %29, %cst_27 {dimension_numbers = #tpu.dot_dimension_numbers<[1], [0], [0], [1], [0, 0, 1, 1], [], []>} : vector<8x256xbf16>, vector<256x128xbf16>, vector<8x128xf32> -> vector<8x128xf32>
    %c0_28 = arith.constant 0 : index
    %c0_29 = arith.constant 0 : index
    %32 = vector.load %arg12[%c0_28, %c0_29] : memref<1x128xf32, #tpu.memory_space<vmem>>, vector<1x128xf32>
    %33 = vector.broadcast %32 : vector<1x128xf32> to vector<8x128xf32>
    %34 = arith.addf %31, %33 : vector<8x128xf32>
    %c0_30 = arith.constant 0 : index
    %c0_31 = arith.constant 0 : index
    %35 = vector.load %arg23[%c0_30, %c0_31] : memref<8x128xf32, #tpu.memory_space<vmem>>, vector<8x128xf32>
    tpu.vector_store %arg23[%c0_30, %c0_31], %34 {strides = array<i32>} : memref<8x128xf32, #tpu.memory_space<vmem>>, vector<8x128xf32>,
    %36 = vector.extract_strided_slice %34 {offsets = [0, 0], sizes = [8, 15], strides = [1, 1]} : vector<8x128xf32> to vector<8x15xf32>
    %37 = vector.extract_strided_slice %34 {offsets = [0, 15], sizes = [8, 15], strides = [1, 1]} : vector<8x128xf32> to vector<8x15xf32>
    %cst_32 = arith.constant 5.000000e-01 : f32
    %38 = vector.broadcast %cst_32 : f32 to vector<8x15xf32>
    %39 = arith.mulf %38, %37 : vector<8x15xf32>
    %40 = math.exp %39 : vector<8x15xf32>
    %41 = arith.mulf %2, %40 : vector<8x15xf32>
    %42 = arith.addf %36, %41 : vector<8x15xf32>
    %c0_33 = arith.constant 0 : index
    %c0_34 = arith.constant 0 : index
    %43 = vector.load %arg13[%c0_33, %c0_34] : memref<15x256xbf16, #tpu.memory_space<vmem>>, vector<15x256xbf16>
    %44 = arith.truncf %42 : vector<8x15xf32> to vector<8x15xbf16>
    %cst_35 = arith.constant dense<0.000000e+00> : vector<8x256xf32>
    %45 = tpu.matmul %44, %43, %cst_35 {dimension_numbers = #tpu.dot_dimension_numbers<[1], [0], [0], [1], [0, 0, 1, 1], [], []>} : vector<8x15xbf16>, vector<15x256xbf16>, vector<8x256xf32> -> vector<8x256xf32>
    %c0_36 = arith.constant 0 : index
    %c0_37 = arith.constant 0 : index
    %46 = vector.load %arg14[%c0_36, %c0_37] : memref<10x256xbf16, #tpu.memory_space<vmem>>, vector<10x256xbf16>
    %cst_38 = arith.constant dense<0.000000e+00> : vector<8x256xf32>
    %47 = tpu.matmul %1, %46, %cst_38 {dimension_numbers = #tpu.dot_dimension_numbers<[1], [0], [0], [1], [0, 0, 1, 1], [], []>} : vector<8x10xbf16>, vector<10x256xbf16>, vector<8x256xf32> -> vector<8x256xf32>
    %48 = arith.addf %45, %47 : vector<8x256xf32>
    %c0_39 = arith.constant 0 : index
    %c0_40 = arith.constant 0 : index
    %49 = vector.load %arg15[%c0_39, %c0_40] : memref<1x256xf32, #tpu.memory_space<vmem>>, vector<1x256xf32>
    %50 = vector.broadcast %49 : vector<1x256xf32> to vector<8x256xf32>
    %51 = arith.addf %48, %50 : vector<8x256xf32>
    %cst_41 = arith.constant 0.000000e+00 : f32
    %52 = vector.broadcast %cst_41 : f32 to vector<8x256xf32>
    %53 = arith.maximumf %51, %52 : vector<8x256xf32>
    %c0_42 = arith.constant 0 : index
    %c0_43 = arith.constant 0 : index
    %54 = vector.load %arg16[%c0_42, %c0_43] : memref<256x256xbf16, #tpu.memory_space<vmem>>, vector<256x256xbf16>
    %55 = arith.truncf %53 : vector<8x256xf32> to vector<8x256xbf16>
    %cst_44 = arith.constant dense<0.000000e+00> : vector<8x256xf32>
    %56 = tpu.matmul %55, %54, %cst_44 {dimension_numbers = #tpu.dot_dimension_numbers<[1], [0], [0], [1], [0, 0, 1, 1], [], []>} : vector<8x256xbf16>, vector<256x256xbf16>, vector<8x256xf32> -> vector<8x256xf32>
    %c0_45 = arith.constant 0 : index
    %c0_46 = arith.constant 0 : index
    %57 = vector.load %arg17[%c0_45, %c0_46] : memref<1x256xf32, #tpu.memory_space<vmem>>, vector<1x256xf32>
    %58 = vector.broadcast %57 : vector<1x256xf32> to vector<8x256xf32>
    %59 = arith.addf %56, %58 : vector<8x256xf32>
    %cst_47 = arith.constant 0.000000e+00 : f32
    %60 = vector.broadcast %cst_47 : f32 to vector<8x256xf32>
    %61 = arith.maximumf %59, %60 : vector<8x256xf32>
    %c0_48 = arith.constant 0 : index
    %c0_49 = arith.constant 0 : index
    %62 = vector.load %arg18[%c0_48, %c0_49] : memref<256x256xbf16, #tpu.memory_space<vmem>>, vector<256x256xbf16>
    %63 = arith.truncf %61 : vector<8x256xf32> to vector<8x256xbf16>
    %cst_50 = arith.constant dense<0.000000e+00> : vector<8x256xf32>
    %64 = tpu.matmul %63, %62, %cst_50 {dimension_numbers = #tpu.dot_dimension_numbers<[1], [0], [0], [1], [0, 0, 1, 1], [], []>} : vector<8x256xbf16>, vector<256x256xbf16>, vector<8x256xf32> -> vector<8x256xf32>
    %c0_51 = arith.constant 0 : index
    %c0_52 = arith.constant 0 : index
    %65 = vector.load %arg19[%c0_51, %c0_52] : memref<1x256xf32, #tpu.memory_space<vmem>>, vector<1x256xf32>
    %66 = vector.broadcast %65 : vector<1x256xf32> to vector<8x256xf32>
    %67 = arith.addf %64, %66 : vector<8x256xf32>
    %cst_53 = arith.constant 0.000000e+00 : f32
    %68 = vector.broadcast %cst_53 : f32 to vector<8x256xf32>
    %69 = arith.maximumf %67, %68 : vector<8x256xf32>
    %c0_54 = arith.constant 0 : index
    %c0_55 = arith.constant 0 : index
    %70 = vector.load %arg20[%c0_54, %c0_55] : memref<256x896xbf16, #tpu.memory_space<vmem>>, vector<256x896xbf16>
    %71 = arith.truncf %69 : vector<8x256xf32> to vector<8x256xbf16>
    %cst_56 = arith.constant dense<0.000000e+00> : vector<8x896xf32>
    %72 = tpu.matmul %71, %70, %cst_56 {dimension_numbers = #tpu.dot_dimension_numbers<[1], [0], [0], [1], [0, 0, 1, 1], [], []>} : vector<8x256xbf16>, vector<256x896xbf16>, vector<8x896xf32> -> vector<8x896xf32>
    %c0_57 = arith.constant 0 : index
    %c0_58 = arith.constant 0 : index
    %73 = vector.load %arg21[%c0_57, %c0_58] : memref<1x896xf32, #tpu.memory_space<vmem>>, vector<1x896xf32>
    %74 = vector.broadcast %73 : vector<1x896xf32> to vector<8x896xf32>
    %75 = arith.addf %72, %74 : vector<8x896xf32>
    %76 = arith.negf %75 : vector<8x896xf32>
    %77 = math.exp %76 : vector<8x896xf32>
    %cst_59 = arith.constant 1.000000e+00 : f32
    %78 = vector.broadcast %cst_59 : f32 to vector<8x896xf32>
    %79 = arith.addf %78, %77 : vector<8x896xf32>
    %80 = arith.divf %78, %79 : vector<8x896xf32>
    %c0_60 = arith.constant 0 : index
    %c0_61 = arith.constant 0 : index
    %81 = vector.load %arg22[%c0_60, %c0_61] : memref<8x896xf32, #tpu.memory_space<vmem>>, vector<8x896xf32>
    tpu.vector_store %arg22[%c0_60, %c0_61], %80 {strides = array<i32>} : memref<8x896xf32, #tpu.memory_space<vmem>>, vector<8x896xf32>,
    return
  }
  func.func @transform_0(%arg0: i32) -> (i32, i32) {
    %c0_i32 = arith.constant 0 : i32
    %c0_i32_0 = arith.constant 0 : i32
    return %arg0, %c0_i32 : i32, i32
  }
  func.func @transform_1(%arg0: i32) -> (i32, i32) {
    %c0_i32 = arith.constant 0 : i32
    %c0_i32_0 = arith.constant 0 : i32
    return %arg0, %c0_i32 : i32, i32
  }
  func.func @transform_2(%arg0: i32) -> (i32, i32) {
    %c0_i32 = arith.constant 0 : i32
    %c0_i32_0 = arith.constant 0 : i32
    return %arg0, %c0_i32 : i32, i32
  }
  func.func @transform_3(%arg0: i32) -> (i32, i32) {
    %c0_i32 = arith.constant 0 : i32
    %c0_i32_0 = arith.constant 0 : i32
    %c0_i32_1 = arith.constant 0 : i32
    return %c0_i32, %c0_i32_0 : i32, i32
  }
  func.func @transform_4(%arg0: i32) -> (i32, i32) {
    %c0_i32 = arith.constant 0 : i32
    %c0_i32_0 = arith.constant 0 : i32
    %c0_i32_1 = arith.constant 0 : i32
    return %c0_i32, %c0_i32_0 : i32, i32
  }
  func.func @transform_5(%arg0: i32) -> (i32, i32) {
    %c0_i32 = arith.constant 0 : i32
    %c0_i32_0 = arith.constant 0 : i32
    %c0_i32_1 = arith.constant 0 : i32
    return %c0_i32, %c0_i32_0 : i32, i32
  }
  func.func @transform_6(%arg0: i32) -> (i32, i32) {
    %c0_i32 = arith.constant 0 : i32
    %c0_i32_0 = arith.constant 0 : i32
    %c0_i32_1 = arith.constant 0 : i32
    return %c0_i32, %c0_i32_0 : i32, i32
  }
  func.func @transform_7(%arg0: i32) -> (i32, i32) {
    %c0_i32 = arith.constant 0 : i32
    %c0_i32_0 = arith.constant 0 : i32
    %c0_i32_1 = arith.constant 0 : i32
    return %c0_i32, %c0_i32_0 : i32, i32
  }
  func.func @transform_8(%arg0: i32) -> (i32, i32) {
    %c0_i32 = arith.constant 0 : i32
    %c0_i32_0 = arith.constant 0 : i32
    %c0_i32_1 = arith.constant 0 : i32
    return %c0_i32, %c0_i32_0 : i32, i32
  }
  func.func @transform_9(%arg0: i32) -> (i32, i32) {
    %c0_i32 = arith.constant 0 : i32
    %c0_i32_0 = arith.constant 0 : i32
    %c0_i32_1 = arith.constant 0 : i32
    return %c0_i32, %c0_i32_0 : i32, i32
  }
  func.func @transform_10(%arg0: i32) -> (i32, i32) {
    %c0_i32 = arith.constant 0 : i32
    %c0_i32_0 = arith.constant 0 : i32
    %c0_i32_1 = arith.constant 0 : i32
    return %c0_i32, %c0_i32_0 : i32, i32
  }
  func.func @transform_11(%arg0: i32) -> (i32, i32) {
    %c0_i32 = arith.constant 0 : i32
    %c0_i32_0 = arith.constant 0 : i32
    %c0_i32_1 = arith.constant 0 : i32
    return %c0_i32, %c0_i32_0 : i32, i32
  }
  func.func @transform_12(%arg0: i32) -> (i32, i32) {
    %c0_i32 = arith.constant 0 : i32
    %c0_i32_0 = arith.constant 0 : i32
    %c0_i32_1 = arith.constant 0 : i32
    return %c0_i32, %c0_i32_0 : i32, i32
  }
  func.func @transform_13(%arg0: i32) -> (i32, i32) {
    %c0_i32 = arith.constant 0 : i32
    %c0_i32_0 = arith.constant 0 : i32
    %c0_i32_1 = arith.constant 0 : i32
    return %c0_i32, %c0_i32_0 : i32, i32
  }
  func.func @transform_14(%arg0: i32) -> (i32, i32) {
    %c0_i32 = arith.constant 0 : i32
    %c0_i32_0 = arith.constant 0 : i32
    %c0_i32_1 = arith.constant 0 : i32
    return %c0_i32, %c0_i32_0 : i32, i32
  }
  func.func @transform_15(%arg0: i32) -> (i32, i32) {
    %c0_i32 = arith.constant 0 : i32
    %c0_i32_0 = arith.constant 0 : i32
    %c0_i32_1 = arith.constant 0 : i32
    return %c0_i32, %c0_i32_0 : i32, i32
  }
  func.func @transform_16(%arg0: i32) -> (i32, i32) {
    %c0_i32 = arith.constant 0 : i32
    %c0_i32_0 = arith.constant 0 : i32
    %c0_i32_1 = arith.constant 0 : i32
    return %c0_i32, %c0_i32_0 : i32, i32
  }
  func.func @transform_17(%arg0: i32) -> (i32, i32) {
    %c0_i32 = arith.constant 0 : i32
    %c0_i32_0 = arith.constant 0 : i32
    %c0_i32_1 = arith.constant 0 : i32
    return %c0_i32, %c0_i32_0 : i32, i32
  }
  func.func @transform_18(%arg0: i32) -> (i32, i32) {
    %c0_i32 = arith.constant 0 : i32
    %c0_i32_0 = arith.constant 0 : i32
    %c0_i32_1 = arith.constant 0 : i32
    return %c0_i32, %c0_i32_0 : i32, i32
  }
  func.func @transform_19(%arg0: i32) -> (i32, i32) {
    %c0_i32 = arith.constant 0 : i32
    %c0_i32_0 = arith.constant 0 : i32
    %c0_i32_1 = arith.constant 0 : i32
    return %c0_i32, %c0_i32_0 : i32, i32
  }
  func.func @transform_20(%arg0: i32) -> (i32, i32) {
    %c0_i32 = arith.constant 0 : i32
    %c0_i32_0 = arith.constant 0 : i32
    %c0_i32_1 = arith.constant 0 : i32
    return %c0_i32, %c0_i32_0 : i32, i32
  }
  func.func @transform_21(%arg0: i32) -> (i32, i32) {
    %c0_i32 = arith.constant 0 : i32
    %c0_i32_0 = arith.constant 0 : i32
    return %arg0, %c0_i32 : i32, i32
  }
  func.func @transform_22(%arg0: i32) -> (i32, i32) {
    %c0_i32 = arith.constant 0 : i32
    %c0_i32_0 = arith.constant 0 : i32
    return %arg0, %c0_i32 : i32, i32
  }
}

</mosaic_0001>

<llo_original>
// kernel: tpu_custom_call.1
$region0: #{tpu_custom_call.1}
  #allocation0 [shape = 'u32[]', space=smem, size = 0x4, offset = 0x4, fixed_abs, tag = 'smem constant byte address 0x4 - core index']
  #allocation1 [shape = 'u32[72,128]{1,0:T(1,128)}', space=vmem, size = 0x9000, scoped, tag = 'internal scratch']
  %s0 = inlined_call_operand.hbm [shape: bf16[8,784], index: 0, kind: input, shape index: {}]
  %s1 = inlined_call_operand.hbm [shape: bf16[8,10], index: 1, kind: input, shape index: {}]
  %s2 = inlined_call_operand.hbm [shape: f32[8,15], index: 2, kind: input, shape index: {}]
  %s3 = inlined_call_operand.hbm [shape: bf16[784,256], index: 3, kind: input, shape index: {}]
  %s4 = inlined_call_operand.hbm [shape: bf16[10,256], index: 4, kind: input, shape index: {}]
  %s5 = inlined_call_operand.vmem [shape: f32[1,256], index: 5, kind: input, shape index: {}]
  %s6 = inlined_call_operand.hbm [shape: bf16[256,256], index: 6, kind: input, shape index: {}]
  %s7 = inlined_call_operand.vmem [shape: f32[1,256], index: 7, kind: input, shape index: {}]
  %s8 = inlined_call_operand.hbm [shape: bf16[256,256], index: 8, kind: input, shape index: {}]
  %s9 = inlined_call_operand.vmem [shape: f32[1,256], index: 9, kind: input, shape index: {}]
  %s10 = inlined_call_operand.hbm [shape: bf16[256,128], index: 10, kind: input, shape index: {}]
  %s11 = inlined_call_operand.hbm [shape: f32[1,128], index: 11, kind: input, shape index: {}]
  %s12 = inlined_call_operand.hbm [shape: bf16[15,256], index: 12, kind: input, shape index: {}]
  %s13 = inlined_call_operand.hbm [shape: bf16[10,256], index: 13, kind: input, shape index: {}]
  %s14 = inlined_call_operand.hbm [shape: f32[1,256], index: 14, kind: input, shape index: {}]
  %s15 = inlined_call_operand.hbm [shape: bf16[256,256], index: 15, kind: input, shape index: {}]
  %s16 = inlined_call_operand.vmem [shape: f32[1,256], index: 16, kind: input, shape index: {}]
  %s17 = inlined_call_operand.hbm [shape: bf16[256,256], index: 17, kind: input, shape index: {}]
  %s18 = inlined_call_operand.vmem [shape: f32[1,256], index: 18, kind: input, shape index: {}]
  %s19 = inlined_call_operand.hbm [shape: bf16[256,896], index: 19, kind: input, shape index: {}]
  %s20 = inlined_call_operand.vmem [shape: f32[1,896], index: 20, kind: input, shape index: {}]
  %s21 = inlined_call_operand.hbm [shape: f32[8,896], index: 21, kind: output, shape index: {0}]
  %s22 = inlined_call_operand.hbm [shape: f32[8,128], index: 22, kind: output, shape index: {1}]
  %23 = xla_tuple %s21, %s22
  %s24 = sld [smem:[#allocation0]]
  $region162: #{tpu_custom_call.1} parent=0
    _
  %s26 = ssub.s32 1, %s24
  %s27 = scalar_select 0, %s26, %s24
  $region1: #{tpu_custom_call.1} parent=0
    #allocation2 [shape = 'u8[14336]{0}', space=vmem, size = 0x3800, scoped, tag = 'input window, operand 0, single buffered']
    #allocation3 [shape = 's32[1]{0}', space=sflag, size = 0x4, scoped, tag = 'scoped memory for tpu_custom_call.1']
    #allocation4 [shape = 's32[1]{0}', space=sflag, size = 0x4, scoped, tag = 'scoped memory for tpu_custom_call.1']
    #allocation5 [shape = 'u8[2048]{0}', space=vmem, size = 0x800, scoped, tag = 'input window, operand 1, single buffered']
    #allocation6 [shape = 's32[1]{0}', space=sflag, size = 0x4, scoped, tag = 'scoped memory for tpu_custom_call.1']
    #allocation7 [shape = 'u8[4096]{0}', space=vmem, size = 0x1000, scoped, tag = 'input window, operand 2, single buffered']
    #allocation8 [shape = 'u8[401408]{0}', space=vmem, size = 0x62000, scoped, tag = 'input window, operand 3, single buffered']
    #allocation9 [shape = 's32[1]{0}', space=sflag, size = 0x4, scoped, tag = 'scoped memory for tpu_custom_call.1']
    #allocation10 [shape = 'u8[8192]{0}', space=vmem, size = 0x2000, scoped, tag = 'input window, operand 4, single buffered']
    #allocation11 [shape = 'u8[131072]{0}', space=vmem, size = 0x20000, scoped, tag = 'input window, operand 6, single buffered']
    #allocation12 [shape = 's32[1]{0}', space=sflag, size = 0x4, scoped, tag = 'scoped memory for tpu_custom_call.1']
    #allocation13 [shape = 'u8[131072]{0}', space=vmem, size = 0x20000, scoped, tag = 'input window, operand 8, single buffered']
    #allocation14 [shape = 'u8[65536]{0}', space=vmem, size = 0x10000, scoped, tag = 'input window, operand 10, single buffered']
    #allocation15 [shape = 's32[1]{0}', space=sflag, size = 0x4, scoped, tag = 'scoped memory for tpu_custom_call.1']
    #allocation16 [shape = 'u8[512]{0}', space=vmem, size = 0x400, scoped, tag = 'input window, operand 11, single buffered']
    #allocation17 [shape = 'u8[8192]{0}', space=vmem, size = 0x2000, scoped, tag = 'input window, operand 12, single buffered']
    #allocation18 [shape = 's32[1]{0}', space=sflag, size = 0x4, scoped, tag = 'scoped memory for tpu_custom_call.1']
    #allocation19 [shape = 'u8[8192]{0}', space=vmem, size = 0x2000, scoped, tag = 'input window, operand 13, single buffered']
    #allocation20 [shape = 'u8[1024]{0}', space=vmem, size = 0x400, scoped, tag = 'input window, operand 14, single buffered']
    #allocation21 [shape = 's32[1]{0}', space=sflag, size = 0x4, scoped, tag = 'scoped memory for tpu_custom_call.1']
    #allocation22 [shape = 'u8[131072]{0}', space=vmem, size = 0x20000, scoped, tag = 'input window, operand 15, single buffered']
    #allocation23 [shape = 'u8[131072]{0}', space=vmem, size = 0x20000, scoped, tag = 'input window, operand 17, single buffered']
    #allocation24 [shape = 's32[1]{0}', space=sflag, size = 0x4, scoped, tag = 'scoped memory for tpu_custom_call.1']
    #allocation25 [shape = 'u8[458752]{0}', space=vmem, size = 0x70000, scoped, tag = 'input window, operand 19, single buffered']
    #allocation26 [shape = 'u8[28672]{0}', space=vmem, size = 0x7000, scoped, tag = 'output window, operand 0, single buffered']
    #allocation27 [shape = 'u8[4096]{0}', space=vmem, size = 0x1000, scoped, tag = 'output window, operand 1, single buffered']
    #allocation28 [shape = 's32[1]{0}', space=sflag, size = 0x4, scoped, tag = 'scoped memory for tpu_custom_call.1']
    %28 = vsyncpa [#allocation3], 0
    %29 = vsyncpa [#allocation6], 0
    %30 = vsyncpa [#allocation9], 0
    %31 = vsyncpa [#allocation12], 0
    %32 = vsyncpa [#allocation15], 0
    %33 = vsyncpa [#allocation18], 0
    %34 = vsyncpa [#allocation21], 0
    %35 = vsyncpa [#allocation24], 0
    %36 = vsyncpa [#allocation4], 0
    %37 = vsyncpa [#allocation28], 0
    // Predicated region
    $region2: #{tpu_custom_call.1} parent=1 // pred_check
      _
    $region3: #{tpu_custom_call.1} parent=1 // pred_check_branch
      %39 = sbr.rel (0) target = $region5
    $region4: #{tpu_custom_call.1} parent=1 // pred_region
      %41 = vsyncadd [#allocation3], 0
      %s43 = sshll.u32 %s0, 4
      %s44 = int_to_ptr.hbm [resolvable:$true] %s43
      %s45 = sshll.u32 [#allocation2], 4
      %s46 = int_to_ptr.vmem [resolvable:$true] %s45
      %48 = dma.hbm_to_vmem [thread:$0]  %s44, 448, %s46, [#allocation3]
    $region5: #{tpu_custom_call.1} parent=1 // pred_fallthru
      _
    // Predicated region
    $region6: #{tpu_custom_call.1} parent=1 // pred_check
      _
    $region7: #{tpu_custom_call.1} parent=1 // pred_check_branch
      %50 = sbr.rel (0) target = $region9
    $region8: #{tpu_custom_call.1} parent=1 // pred_region
      %52 = vsyncadd [#allocation6], 0
      %s54 = sshll.u32 %s1, 4
      %s55 = int_to_ptr.hbm [resolvable:$true] %s54
      %s56 = sshll.u32 [#allocation5], 4
      %s57 = int_to_ptr.vmem [resolvable:$true] %s56
      %59 = dma.hbm_to_vmem [thread:$0]  %s55, 64, %s57, [#allocation6]
    $region9: #{tpu_custom_call.1} parent=1 // pred_fallthru
      _
    // Predicated region
    $region10: #{tpu_custom_call.1} parent=1 // pred_check
      _
    $region11: #{tpu_custom_call.1} parent=1 // pred_check_branch
      %61 = sbr.rel (0) target = $region13
    $region12: #{tpu_custom_call.1} parent=1 // pred_region
      %63 = vsyncadd [#allocation6], 0
      %s65 = sshll.u32 %s2, 4
      %s66 = int_to_ptr.hbm [resolvable:$true] %s65
      %s67 = sshll.u32 [#allocation7], 4
      %s68 = int_to_ptr.vmem [resolvable:$true] %s67
      %70 = dma.hbm_to_vmem [thread:$0]  %s66, 128, %s68, [#allocation6]
    $region13: #{tpu_custom_call.1} parent=1 // pred_fallthru
      _
    // Predicated region
    $region14: #{tpu_custom_call.1} parent=1 // pred_check
      _
    $region15: #{tpu_custom_call.1} parent=1 // pred_check_branch
      %72 = sbr.rel (0) target = $region17
    $region16: #{tpu_custom_call.1} parent=1 // pred_region
      %74 = vsyncadd [#allocation9], 0
      %s75 = sshll.u32 %s3, 4
      %s76 = int_to_ptr.hbm [resolvable:$true] %s75
      %s77 = sshll.u32 [#allocation8], 4
      %s78 = int_to_ptr.vmem [resolvable:$true] %s77
      %83 = dma.hbm_to_vmem [thread:$0]  %s76, 12544, %s78, [#allocation9], 128, 128, 8
    $region17: #{tpu_custom_call.1} parent=1 // pred_fallthru
      _
    // Predicated region
    $region18: #{tpu_custom_call.1} parent=1 // pred_check
      _
    $region19: #{tpu_custom_call.1} parent=1 // pred_check_branch
      %85 = sbr.rel (0) target = $region21
    $region20: #{tpu_custom_call.1} parent=1 // pred_region
      %87 = vsyncadd [#allocation9], 0
      %s88 = sshll.u32 %s4, 4
      %s89 = int_to_ptr.hbm [resolvable:$true] %s88
      %s90 = sshll.u32 [#allocation10], 4
      %s91 = int_to_ptr.vmem [resolvable:$true] %s90
      %96 = dma.hbm_to_vmem [thread:$0]  %s89, 256, %s91, [#allocation9], 128, 128, 8
    $region21: #{tpu_custom_call.1} parent=1 // pred_fallthru
      _
    // Predicated region
    $region22: #{tpu_custom_call.1} parent=1 // pred_check
      _
    $region23: #{tpu_custom_call.1} parent=1 // pred_check_branch
      %98 = sbr.rel (0) target = $region25
    $region24: #{tpu_custom_call.1} parent=1 // pred_region
      _
    $region25: #{tpu_custom_call.1} parent=1 // pred_fallthru
      _
    // Predicated region
    $region26: #{tpu_custom_call.1} parent=1 // pred_check
      _
    $region27: #{tpu_custom_call.1} parent=1 // pred_check_branch
      %100 = sbr.rel (0) target = $region29
    $region28: #{tpu_custom_call.1} parent=1 // pred_region
      %102 = vsyncadd [#allocation12], 0
      %s103 = sshll.u32 %s6, 4
      %s104 = int_to_ptr.hbm [resolvable:$true] %s103
      %s105 = sshll.u32 [#allocation11], 4
      %s106 = int_to_ptr.vmem [resolvable:$true] %s105
      %111 = dma.hbm_to_vmem [thread:$0]  %s104, 4096, %s106, [#allocation12], 128, 128, 8
    $region29: #{tpu_custom_call.1} parent=1 // pred_fallthru
      _
    // Predicated region
    $region30: #{tpu_custom_call.1} parent=1 // pred_check
      _
    $region31: #{tpu_custom_call.1} parent=1 // pred_check_branch
      %113 = sbr.rel (0) target = $region33
    $region32: #{tpu_custom_call.1} parent=1 // pred_region
      _
    $region33: #{tpu_custom_call.1} parent=1 // pred_fallthru
      _
    // Predicated region
    $region34: #{tpu_custom_call.1} parent=1 // pred_check
      _
    $region35: #{tpu_custom_call.1} parent=1 // pred_check_branch
      %115 = sbr.rel (0) target = $region37
    $region36: #{tpu_custom_call.1} parent=1 // pred_region
      %117 = vsyncadd [#allocation12], 0
      %s118 = sshll.u32 %s8, 4
      %s119 = int_to_ptr.hbm [resolvable:$true] %s118
      %s120 = sshll.u32 [#allocation13], 4
      %s121 = int_to_ptr.vmem [resolvable:$true] %s120
      %126 = dma.hbm_to_vmem [thread:$0]  %s119, 4096, %s121, [#allocation12], 128, 128, 8
    $region37: #{tpu_custom_call.1} parent=1 // pred_fallthru
      _
    // Predicated region
    $region38: #{tpu_custom_call.1} parent=1 // pred_check
      _
    $region39: #{tpu_custom_call.1} parent=1 // pred_check_branch
      %128 = sbr.rel (0) target = $region41
    $region40: #{tpu_custom_call.1} parent=1 // pred_region
      _
    $region41: #{tpu_custom_call.1} parent=1 // pred_fallthru
      _
    // Predicated region
    $region42: #{tpu_custom_call.1} parent=1 // pred_check
      _
    $region43: #{tpu_custom_call.1} parent=1 // pred_check_branch
      %130 = sbr.rel (0) target = $region45
    $region44: #{tpu_custom_call.1} parent=1 // pred_region
      %132 = vsyncadd [#allocation15], 0
      %s133 = sshll.u32 %s10, 4
      %s134 = int_to_ptr.hbm [resolvable:$true] %s133
      %s135 = sshll.u32 [#allocation14], 4
      %s136 = int_to_ptr.vmem [resolvable:$true] %s135
      %141 = dma.hbm_to_vmem [thread:$0]  %s134, 2048, %s136, [#allocation15], 64, 64, 4
    $region45: #{tpu_custom_call.1} parent=1 // pred_fallthru
      _
    // Predicated region
    $region46: #{tpu_custom_call.1} parent=1 // pred_check
      _
    $region47: #{tpu_custom_call.1} parent=1 // pred_check_branch
      %143 = sbr.rel (0) target = $region49
    $region48: #{tpu_custom_call.1} parent=1 // pred_region
      %145 = vsyncadd [#allocation15], 0
      %s147 = sshll.u32 %s11, 4
      %s148 = int_to_ptr.hbm [resolvable:$true] %s147
      %s149 = sshll.u32 [#allocation16], 4
      %s150 = int_to_ptr.vmem [resolvable:$true] %s149
      %152 = dma.hbm_to_vmem [thread:$0]  %s148, 16, %s150, [#allocation15]
    $region49: #{tpu_custom_call.1} parent=1 // pred_fallthru
      _
    // Predicated region
    $region50: #{tpu_custom_call.1} parent=1 // pred_check
      _
    $region51: #{tpu_custom_call.1} parent=1 // pred_check_branch
      %154 = sbr.rel (0) target = $region53
    $region52: #{tpu_custom_call.1} parent=1 // pred_region
      %156 = vsyncadd [#allocation18], 0
      %s157 = sshll.u32 %s12, 4
      %s158 = int_to_ptr.hbm [resolvable:$true] %s157
      %s159 = sshll.u32 [#allocation17], 4
      %s160 = int_to_ptr.vmem [resolvable:$true] %s159
      %165 = dma.hbm_to_vmem [thread:$0]  %s158, 256, %s160, [#allocation18], 128, 128, 8
    $region53: #{tpu_custom_call.1} parent=1 // pred_fallthru
      _
    // Predicated region
    $region54: #{tpu_custom_call.1} parent=1 // pred_check
      _
    $region55: #{tpu_custom_call.1} parent=1 // pred_check_branch
      %167 = sbr.rel (0) target = $region57
    $region56: #{tpu_custom_call.1} parent=1 // pred_region
      %169 = vsyncadd [#allocation18], 0
      %s170 = sshll.u32 %s13, 4
      %s171 = int_to_ptr.hbm [resolvable:$true] %s170
      %s172 = sshll.u32 [#allocation19], 4
      %s173 = int_to_ptr.vmem [resolvable:$true] %s172
      %178 = dma.hbm_to_vmem [thread:$0]  %s171, 256, %s173, [#allocation18], 128, 128, 8
    $region57: #{tpu_custom_call.1} parent=1 // pred_fallthru
      _
    // Predicated region
    $region58: #{tpu_custom_call.1} parent=1 // pred_check
      _
    $region59: #{tpu_custom_call.1} parent=1 // pred_check_branch
      %180 = sbr.rel (0) target = $region61
    $region60: #{tpu_custom_call.1} parent=1 // pred_region
      %182 = vsyncadd [#allocation21], 0
      %s184 = sshll.u32 %s14, 4
      %s185 = int_to_ptr.hbm [resolvable:$true] %s184
      %s186 = sshll.u32 [#allocation20], 4
      %s187 = int_to_ptr.vmem [resolvable:$true] %s186
      %189 = dma.hbm_to_vmem [thread:$0]  %s185, 32, %s187, [#allocation21]
    $region61: #{tpu_custom_call.1} parent=1 // pred_fallthru
      _
    // Predicated region
    $region62: #{tpu_custom_call.1} parent=1 // pred_check
      _
    $region63: #{tpu_custom_call.1} parent=1 // pred_check_branch
      %191 = sbr.rel (0) target = $region65
    $region64: #{tpu_custom_call.1} parent=1 // pred_region
      %193 = vsyncadd [#allocation21], 0
      %s194 = sshll.u32 %s15, 4
      %s195 = int_to_ptr.hbm [resolvable:$true] %s194
      %s196 = sshll.u32 [#allocation22], 4
      %s197 = int_to_ptr.vmem [resolvable:$true] %s196
      %202 = dma.hbm_to_vmem [thread:$0]  %s195, 4096, %s197, [#allocation21], 128, 128, 8
    $region65: #{tpu_custom_call.1} parent=1 // pred_fallthru
      _
    // Predicated region
    $region66: #{tpu_custom_call.1} parent=1 // pred_check
      _
    $region67: #{tpu_custom_call.1} parent=1 // pred_check_branch
      %204 = sbr.rel (0) target = $region69
    $region68: #{tpu_custom_call.1} parent=1 // pred_region
      _
    $region69: #{tpu_custom_call.1} parent=1 // pred_fallthru
      _
    // Predicated region
    $region70: #{tpu_custom_call.1} parent=1 // pred_check
      _
    $region71: #{tpu_custom_call.1} parent=1 // pred_check_branch
      %206 = sbr.rel (0) target = $region73
    $region72: #{tpu_custom_call.1} parent=1 // pred_region
      %208 = vsyncadd [#allocation24], 0
      %s209 = sshll.u32 %s17, 4
      %s210 = int_to_ptr.hbm [resolvable:$true] %s209
      %s211 = sshll.u32 [#allocation23], 4
      %s212 = int_to_ptr.vmem [resolvable:$true] %s211
      %217 = dma.hbm_to_vmem [thread:$0]  %s210, 4096, %s212, [#allocation24], 128, 128, 8
    $region73: #{tpu_custom_call.1} parent=1 // pred_fallthru
      _
    // Predicated region
    $region74: #{tpu_custom_call.1} parent=1 // pred_check
      _
    $region75: #{tpu_custom_call.1} parent=1 // pred_check_branch
      %219 = sbr.rel (0) target = $region77
    $region76: #{tpu_custom_call.1} parent=1 // pred_region
      _
    $region77: #{tpu_custom_call.1} parent=1 // pred_fallthru
      _
    // Predicated region
    $region78: #{tpu_custom_call.1} parent=1 // pred_check
      _
    $region79: #{tpu_custom_call.1} parent=1 // pred_check_branch
      %221 = sbr.rel (0) target = $region81
    $region80: #{tpu_custom_call.1} parent=1 // pred_region
      %223 = vsyncadd [#allocation24], 0
      %s224 = sshll.u32 %s19, 4
      %s225 = int_to_ptr.hbm [resolvable:$true] %s224
      %s226 = sshll.u32 [#allocation25], 4
      %s227 = int_to_ptr.vmem [resolvable:$true] %s226
      %232 = dma.hbm_to_vmem [thread:$0]  %s225, 14336, %s227, [#allocation24], 448, 448, 28
    $region81: #{tpu_custom_call.1} parent=1 // pred_fallthru
      _
    // Predicated region
    $region82: #{tpu_custom_call.1} parent=1 // pred_check
      _
    $region83: #{tpu_custom_call.1} parent=1 // pred_check_branch
      %234 = sbr.rel (0) target = $region85
    $region84: #{tpu_custom_call.1} parent=1 // pred_region
      _
    $region85: #{tpu_custom_call.1} parent=1 // pred_fallthru
      _
    // Predicated region
    $region86: #{tpu_custom_call.1} parent=1 // pred_check
      _
    $region87: #{tpu_custom_call.1} parent=1 // pred_check_branch
      %236 = sbr.rel (0) target = $region89
    $region88: #{tpu_custom_call.1} parent=1 // pred_region
      %238 = dma.done [#allocation3], 448
    $region89: #{tpu_custom_call.1} parent=1 // pred_fallthru
      _
    // Predicated region
    $region90: #{tpu_custom_call.1} parent=1 // pred_check
      _
    $region91: #{tpu_custom_call.1} parent=1 // pred_check_branch
      %240 = sbr.rel (0) target = $region93
    $region92: #{tpu_custom_call.1} parent=1 // pred_region
      %242 = dma.done [#allocation6], 64
    $region93: #{tpu_custom_call.1} parent=1 // pred_fallthru
      _
    // Predicated region
    $region94: #{tpu_custom_call.1} parent=1 // pred_check
      _
    $region95: #{tpu_custom_call.1} parent=1 // pred_check_branch
      %244 = sbr.rel (0) target = $region97
    $region96: #{tpu_custom_call.1} parent=1 // pred_region
      %246 = dma.done [#allocation6], 128
    $region97: #{tpu_custom_call.1} parent=1 // pred_fallthru
      _
    // Predicated region
    $region98: #{tpu_custom_call.1} parent=1 // pred_check
      _
    $region99: #{tpu_custom_call.1} parent=1 // pred_check_branch
      %248 = sbr.rel (0) target = $region101
    $region100: #{tpu_custom_call.1} parent=1 // pred_region
      %250 = dma.done [#allocation9], 12544
    $region101: #{tpu_custom_call.1} parent=1 // pred_fallthru
      _
    // Predicated region
    $region102: #{tpu_custom_call.1} parent=1 // pred_check
      _
    $region103: #{tpu_custom_call.1} parent=1 // pred_check_branch
      %252 = sbr.rel (0) target = $region105
    $region104: #{tpu_custom_call.1} parent=1 // pred_region
      %254 = dma.done [#allocation9], 256
    $region105: #{tpu_custom_call.1} parent=1 // pred_fallthru
      _
    // Predicated region
    $region106: #{tpu_custom_call.1} parent=1 // pred_check
      _
    $region107: #{tpu_custom_call.1} parent=1 // pred_check_branch
      %256 = sbr.rel (0) target = $region109
    $region108: #{tpu_custom_call.1} parent=1 // pred_region
      %258 = dma.done [#allocation12], 4096
    $region109: #{tpu_custom_call.1} parent=1 // pred_fallthru
      _
    // Predicated region
    $region110: #{tpu_custom_call.1} parent=1 // pred_check
      _
    $region111: #{tpu_custom_call.1} parent=1 // pred_check_branch
      %260 = sbr.rel (0) target = $region113
    $region112: #{tpu_custom_call.1} parent=1 // pred_region
      %262 = dma.done [#allocation12], 4096
    $region113: #{tpu_custom_call.1} parent=1 // pred_fallthru
      _
    // Predicated region
    $region114: #{tpu_custom_call.1} parent=1 // pred_check
      _
    $region115: #{tpu_custom_call.1} parent=1 // pred_check_branch
      %264 = sbr.rel (0) target = $region117
    $region116: #{tpu_custom_call.1} parent=1 // pred_region
      %266 = dma.done [#allocation15], 2048
    $region117: #{tpu_custom_call.1} parent=1 // pred_fallthru
      _
    // Predicated region
    $region118: #{tpu_custom_call.1} parent=1 // pred_check
      _
    $region119: #{tpu_custom_call.1} parent=1 // pred_check_branch
      %268 = sbr.rel (0) target = $region121
    $region120: #{tpu_custom_call.1} parent=1 // pred_region
      %270 = dma.done [#allocation15], 16
    $region121: #{tpu_custom_call.1} parent=1 // pred_fallthru
      _
    // Predicated region
    $region122: #{tpu_custom_call.1} parent=1 // pred_check
      _
    $region123: #{tpu_custom_call.1} parent=1 // pred_check_branch
      %272 = sbr.rel (0) target = $region125
    $region124: #{tpu_custom_call.1} parent=1 // pred_region
      %274 = dma.done [#allocation18], 256
    $region125: #{tpu_custom_call.1} parent=1 // pred_fallthru
      _
    // Predicated region
    $region126: #{tpu_custom_call.1} parent=1 // pred_check
      _
    $region127: #{tpu_custom_call.1} parent=1 // pred_check_branch
      %276 = sbr.rel (0) target = $region129
    $region128: #{tpu_custom_call.1} parent=1 // pred_region
      %278 = dma.done [#allocation18], 256
    $region129: #{tpu_custom_call.1} parent=1 // pred_fallthru
      _
    // Predicated region
    $region130: #{tpu_custom_call.1} parent=1 // pred_check
      _
    $region131: #{tpu_custom_call.1} parent=1 // pred_check_branch
      %280 = sbr.rel (0) target = $region133
    $region132: #{tpu_custom_call.1} parent=1 // pred_region
      %282 = dma.done [#allocation21], 32
    $region133: #{tpu_custom_call.1} parent=1 // pred_fallthru
      _
    // Predicated region
    $region134: #{tpu_custom_call.1} parent=1 // pred_check
      _
    $region135: #{tpu_custom_call.1} parent=1 // pred_check_branch
      %284 = sbr.rel (0) target = $region137
    $region136: #{tpu_custom_call.1} parent=1 // pred_region
      %286 = dma.done [#allocation21], 4096
    $region137: #{tpu_custom_call.1} parent=1 // pred_fallthru
      _
    // Predicated region
    $region138: #{tpu_custom_call.1} parent=1 // pred_check
      _
    $region139: #{tpu_custom_call.1} parent=1 // pred_check_branch
      %288 = sbr.rel (0) target = $region141
    $region140: #{tpu_custom_call.1} parent=1 // pred_region
      %290 = dma.done [#allocation24], 4096
    $region141: #{tpu_custom_call.1} parent=1 // pred_fallthru
      _
    // Predicated region
    $region142: #{tpu_custom_call.1} parent=1 // pred_check
      _
    $region143: #{tpu_custom_call.1} parent=1 // pred_check_branch
      %292 = sbr.rel (0) target = $region145
    $region144: #{tpu_custom_call.1} parent=1 // pred_region
      %294 = dma.done [#allocation24], 14336
    $region145: #{tpu_custom_call.1} parent=1 // pred_fallthru
      _
    %v296 = vld [vmem:[#allocation2] sm:$0xff]
    %v297 = vld [vmem:[#allocation2 + $0x8] sm:$0xff]
    %v298 = vld [vmem:[#allocation2 + $0x10] sm:$0xff]
    %v299 = vld [vmem:[#allocation2 + $0x18] sm:$0xf]
    %v300 = vld [vmem:[#allocation5] sm:$0xf]
    %v301 = vld [vmem:[#allocation7] sm:$0xff]
    %v302 = vld [vmem:[#allocation8] sm:$0xff]
    %v303 = vld [vmem:[#allocation8 + $0x8] sm:$0xff]
    %v304 = vld [vmem:[#allocation8 + $0x10] sm:$0xff]
    %v305 = vld [vmem:[#allocation8 + $0x18] sm:$0xff]
    %v306 = vld [vmem:[#allocation8 + $0x20] sm:$0xff]
    %v307 = vld [vmem:[#allocation8 + $0x28] sm:$0xff]
    %v308 = vld [vmem:[#allocation8 + $0x30] sm:$0xff]
    %v309 = vld [vmem:[#allocation8 + $0x38] sm:$0xff]
    %v310 = vld [vmem:[#allocation8 + $0x40] sm:$0xff]
    %v311 = vld [vmem:[#allocation8 + $0x48] sm:$0xff]
    %v312 = vld [vmem:[#allocation8 + $0x50] sm:$0xff]
    %v313 = vld [vmem:[#allocation8 + $0x58] sm:$0xff]
    %v314 = vld [vmem:[#allocation8 + $0x60] sm:$0xff]
    %v315 = vld [vmem:[#allocation8 + $0x68] sm:$0xff]
    %v316 = vld [vmem:[#allocation8 + $0x70] sm:$0xff]
    %v317 = vld [vmem:[#allocation8 + $0x78] sm:$0xff]
    %v318 = vld [vmem:[#allocation8 + $0x80] sm:$0xff]
    %v319 = vld [vmem:[#allocation8 + $0x88] sm:$0xff]
    %v320 = vld [vmem:[#allocation8 + $0x90] sm:$0xff]
    %v321 = vld [vmem:[#allocation8 + $0x98] sm:$0xff]
    %v322 = vld [vmem:[#allocation8 + $0xa0] sm:$0xff]
    %v323 = vld [vmem:[#allocation8 + $0xa8] sm:$0xff]
    %v324 = vld [vmem:[#allocation8 + $0xb0] sm:$0xff]
    %v325 = vld [vmem:[#allocation8 + $0xb8] sm:$0xff]
    %v326 = vld [vmem:[#allocation8 + $0xc0] sm:$0xff]
    %v327 = vld [vmem:[#allocation8 + $0xc8] sm:$0xff]
    %v328 = vld [vmem:[#allocation8 + $0xd0] sm:$0xff]
    %v329 = vld [vmem:[#allocation8 + $0xd8] sm:$0xff]
    %v330 = vld [vmem:[#allocation8 + $0xe0] sm:$0xff]
    %v331 = vld [vmem:[#allocation8 + $0xe8] sm:$0xff]
    %v332 = vld [vmem:[#allocation8 + $0xf0] sm:$0xff]
    %v333 = vld [vmem:[#allocation8 + $0xf8] sm:$0xff]
    %v334 = vld [vmem:[#allocation8 + $0x100] sm:$0xff]
    %v335 = vld [vmem:[#allocation8 + $0x108] sm:$0xff]
    %v336 = vld [vmem:[#allocation8 + $0x110] sm:$0xff]
    %v337 = vld [vmem:[#allocation8 + $0x118] sm:$0xff]
    %v338 = vld [vmem:[#allocation8 + $0x120] sm:$0xff]
    %v339 = vld [vmem:[#allocation8 + $0x128] sm:$0xff]
    %v340 = vld [vmem:[#allocation8 + $0x130] sm:$0xff]
    %v341 = vld [vmem:[#allocation8 + $0x138] sm:$0xff]
    %v342 = vld [vmem:[#allocation8 + $0x140] sm:$0xff]
    %v343 = vld [vmem:[#allocation8 + $0x148] sm:$0xff]
    %v344 = vld [vmem:[#allocation8 + $0x150] sm:$0xff]
    %v345 = vld [vmem:[#allocation8 + $0x158] sm:$0xff]
    %v346 = vld [vmem:[#allocation8 + $0x160] sm:$0xff]
    %v347 = vld [vmem:[#allocation8 + $0x168] sm:$0xff]
    %v348 = vld [vmem:[#allocation8 + $0x170] sm:$0xff]
    %v349 = vld [vmem:[#allocation8 + $0x178] sm:$0xff]
    %v350 = vld [vmem:[#allocation8 + $0x180] sm:$0xff]
    %v351 = vld [vmem:[#allocation8 + $0x188] sm:$0xff]
    %v352 = vld [vmem:[#allocation8 + $0x190] sm:$0xff]
    %v353 = vld [vmem:[#allocation8 + $0x198] sm:$0xff]
    %v354 = vld [vmem:[#allocation8 + $0x1a0] sm:$0xff]
    %v355 = vld [vmem:[#allocation8 + $0x1a8] sm:$0xff]
    %v356 = vld [vmem:[#allocation8 + $0x1b0] sm:$0xff]
    %v357 = vld [vmem:[#allocation8 + $0x1b8] sm:$0xff]
    %v358 = vld [vmem:[#allocation8 + $0x1c0] sm:$0xff]
    %v359 = vld [vmem:[#allocation8 + $0x1c8] sm:$0xff]
    %v360 = vld [vmem:[#allocation8 + $0x1d0] sm:$0xff]
    %v361 = vld [vmem:[#allocation8 + $0x1d8] sm:$0xff]
    %v362 = vld [vmem:[#allocation8 + $0x1e0] sm:$0xff]
    %v363 = vld [vmem:[#allocation8 + $0x1e8] sm:$0xff]
    %v364 = vld [vmem:[#allocation8 + $0x1f0] sm:$0xff]
    %v365 = vld [vmem:[#allocation8 + $0x1f8] sm:$0xff]
    %v366 = vld [vmem:[#allocation8 + $0x200] sm:$0xff]
    %v367 = vld [vmem:[#allocation8 + $0x208] sm:$0xff]
    %v368 = vld [vmem:[#allocation8 + $0x210] sm:$0xff]
    %v369 = vld [vmem:[#allocation8 + $0x218] sm:$0xff]
    %v370 = vld [vmem:[#allocation8 + $0x220] sm:$0xff]
    %v371 = vld [vmem:[#allocation8 + $0x228] sm:$0xff]
    %v372 = vld [vmem:[#allocation8 + $0x230] sm:$0xff]
    %v373 = vld [vmem:[#allocation8 + $0x238] sm:$0xff]
    %v374 = vld [vmem:[#allocation8 + $0x240] sm:$0xff]
    %v375 = vld [vmem:[#allocation8 + $0x248] sm:$0xff]
    %v376 = vld [vmem:[#allocation8 + $0x250] sm:$0xff]
    %v377 = vld [vmem:[#allocation8 + $0x258] sm:$0xff]
    %v378 = vld [vmem:[#allocation8 + $0x260] sm:$0xff]
    %v379 = vld [vmem:[#allocation8 + $0x268] sm:$0xff]
    %v380 = vld [vmem:[#allocation8 + $0x270] sm:$0xff]
    %v381 = vld [vmem:[#allocation8 + $0x278] sm:$0xff]
    %v382 = vld [vmem:[#allocation8 + $0x280] sm:$0xff]
    %v383 = vld [vmem:[#allocation8 + $0x288] sm:$0xff]
    %v384 = vld [vmem:[#allocation8 + $0x290] sm:$0xff]
    %v385 = vld [vmem:[#allocation8 + $0x298] sm:$0xff]
    %v386 = vld [vmem:[#allocation8 + $0x2a0] sm:$0xff]
    %v387 = vld [vmem:[#allocation8 + $0x2a8] sm:$0xff]
    %v388 = vld [vmem:[#allocation8 + $0x2b0] sm:$0xff]
    %v389 = vld [vmem:[#allocation8 + $0x2b8] sm:$0xff]
    %v390 = vld [vmem:[#allocation8 + $0x2c0] sm:$0xff]
    %v391 = vld [vmem:[#allocation8 + $0x2c8] sm:$0xff]
    %v392 = vld [vmem:[#allocation8 + $0x2d0] sm:$0xff]
    %v393 = vld [vmem:[#allocation8 + $0x2d8] sm:$0xff]
    %v394 = vld [vmem:[#allocation8 + $0x2e0] sm:$0xff]
    %v395 = vld [vmem:[#allocation8 + $0x2e8] sm:$0xff]
    %v396 = vld [vmem:[#allocation8 + $0x2f0] sm:$0xff]
    %v397 = vld [vmem:[#allocation8 + $0x2f8] sm:$0xff]
    %v398 = vld [vmem:[#allocation8 + $0x300] sm:$0xff]
    %v399 = vld [vmem:[#allocation8 + $0x308] sm:$0xff]
    %v400 = vld [vmem:[#allocation10] sm:$0xff]
    %v401 = vld [vmem:[#allocation10 + $0x8] sm:$0x11]
    %v404 = vunpack.c.l.b16 %v400
    %v405 = vunpack.c.h.b16 %v400
    %v406 = vunpack.c.l.b16 %v401
    %v407 = vunpack.c.h.b16 %v401
    %v408 = vpack.c.b16 %v406, %v404
    %v409 = vpack.c.b16 %v407, %v405
    %vm410 = vcmask 80896
    %v412 = vsel %vm410, %v300, 0
    %vm414 = vcmask 1044480
    %v416 = vsel %vm414, %v408, 0
    %v419 = vsel %vm414, %v409, 0
    %421 = vmatpush.bf16.msra.mxu0 0
    %422 = vmatpush.bf16.msra.mxu0 0
    %423 = vmatpush.bf16.msra.mxu0 0
    %424 = vmatpush.bf16.msra.mxu0 0
    %425 = vmatpush.bf16.msra.mxu0 0
    %426 = vmatpush.bf16.msra.mxu0 0
    %427 = vmatpush.bf16.msra.mxu0 0
    %428 = vmatpush.bf16.msra.mxu0 %v416
    %429 = vmatmul.bf16.gmra.mxu0 %v412
    %v430 = vpop.f32.mrf.mxu0
    %v431 = vadd.f32 0.0, %v430
    %v432 = vpop.f32.mrf.mxu0
    %433 = vdwg.mxu0
    %434 = vmatpush.bf16.msra.mxu0 0
    %435 = vmatpush.bf16.msra.mxu0 0
    %436 = vmatpush.bf16.msra.mxu0 0
    %437 = vmatpush.bf16.msra.mxu0 0
    %438 = vmatpush.bf16.msra.mxu0 0
    %439 = vmatpush.bf16.msra.mxu0 0
    %440 = vmatpush.bf16.msra.mxu0 0
    %441 = vmatpush.bf16.msra.mxu0 %v419
    %442 = vmatmul.bf16.gmra.mxu0 %v412
    %v443 = vpop.f32.mrf.mxu0
    %v444 = vadd.f32 0.0, %v443
    %v445 = vpop.f32.mrf.mxu0
    %446 = vdwg.mxu0
    %v451 = vunpack.c.l.b16 %v296
    %v452 = vunpack.c.h.b16 %v296
    %v453 = vunpack.c.l.b16 %v297
    %v454 = vunpack.c.h.b16 %v297
    %v455 = vunpack.c.l.b16 %v298
    %v456 = vunpack.c.h.b16 %v298
    %v457 = vunpack.c.l.b16 %v299
    %v458 = vpack.c.b16 %v451, %v451
    %v459 = vpack.c.b16 %v452, %v452
    %v460 = vpack.c.b16 %v453, %v453
    %v461 = vpack.c.b16 %v454, %v454
    %v462 = vpack.c.b16 %v455, %v455
    %v463 = vpack.c.b16 %v456, %v456
    %v464 = vpack.c.b16 %v457, %v457
    %v569 = vunpack.c.l.b16 %v302
    %v570 = vunpack.c.h.b16 %v302
    %v571 = vunpack.c.l.b16 %v303
    %v572 = vunpack.c.h.b16 %v303
    %v573 = vunpack.c.l.b16 %v304
    %v574 = vunpack.c.h.b16 %v304
    %v575 = vunpack.c.l.b16 %v305
    %v576 = vunpack.c.h.b16 %v305
    %v577 = vunpack.c.l.b16 %v306
    %v578 = vunpack.c.h.b16 %v306
    %v579 = vunpack.c.l.b16 %v307
    %v580 = vunpack.c.h.b16 %v307
    %v581 = vunpack.c.l.b16 %v308
    %v582 = vunpack.c.h.b16 %v308
    %v583 = vunpack.c.l.b16 %v309
    %v584 = vunpack.c.h.b16 %v309
    %v585 = vunpack.c.l.b16 %v310
    %v586 = vunpack.c.h.b16 %v310
    %v587 = vunpack.c.l.b16 %v311
    %v588 = vunpack.c.h.b16 %v311
    %v589 = vunpack.c.l.b16 %v312
    %v590 = vunpack.c.h.b16 %v312
    %v591 = vunpack.c.l.b16 %v313
    %v592 = vunpack.c.h.b16 %v313
    %v593 = vunpack.c.l.b16 %v314
    %v594 = vunpack.c.h.b16 %v314
    %v595 = vunpack.c.l.b16 %v315
    %v596 = vunpack.c.h.b16 %v315
    %v597 = vunpack.c.l.b16 %v316
    %v598 = vunpack.c.h.b16 %v316
    %v599 = vunpack.c.l.b16 %v317
    %v600 = vunpack.c.h.b16 %v317
    %v601 = vunpack.c.l.b16 %v318
    %v602 = vunpack.c.h.b16 %v318
    %v603 = vunpack.c.l.b16 %v319
    %v604 = vunpack.c.h.b16 %v319
    %v605 = vunpack.c.l.b16 %v320
    %v606 = vunpack.c.h.b16 %v320
    %v607 = vunpack.c.l.b16 %v321
    %v608 = vunpack.c.h.b16 %v321
    %v609 = vunpack.c.l.b16 %v322
    %v610 = vunpack.c.h.b16 %v322
    %v611 = vunpack.c.l.b16 %v323
    %v612 = vunpack.c.h.b16 %v323
    %v613 = vunpack.c.l.b16 %v324
    %v614 = vunpack.c.h.b16 %v324
    %v615 = vunpack.c.l.b16 %v325
    %v616 = vunpack.c.h.b16 %v325
    %v617 = vunpack.c.l.b16 %v326
    %v618 = vunpack.c.h.b16 %v326
    %v619 = vunpack.c.l.b16 %v327
    %v620 = vunpack.c.h.b16 %v327
    %v621 = vunpack.c.l.b16 %v328
    %v622 = vunpack.c.h.b16 %v328
    %v623 = vunpack.c.l.b16 %v329
    %v624 = vunpack.c.h.b16 %v329
    %v625 = vunpack.c.l.b16 %v330
    %v626 = vunpack.c.h.b16 %v330
    %v627 = vunpack.c.l.b16 %v331
    %v628 = vunpack.c.h.b16 %v331
    %v629 = vunpack.c.l.b16 %v332
    %v630 = vunpack.c.h.b16 %v332
    %v631 = vunpack.c.l.b16 %v333
    %v632 = vunpack.c.h.b16 %v333
    %v633 = vunpack.c.l.b16 %v334
    %v634 = vunpack.c.h.b16 %v334
    %v635 = vunpack.c.l.b16 %v335
    %v636 = vunpack.c.h.b16 %v335
    %v637 = vunpack.c.l.b16 %v336
    %v638 = vunpack.c.h.b16 %v336
    %v639 = vunpack.c.l.b16 %v337
    %v640 = vunpack.c.h.b16 %v337
    %v641 = vunpack.c.l.b16 %v338
    %v642 = vunpack.c.h.b16 %v338
    %v643 = vunpack.c.l.b16 %v339
    %v644 = vunpack.c.h.b16 %v339
    %v645 = vunpack.c.l.b16 %v340
    %v646 = vunpack.c.h.b16 %v340
    %v647 = vunpack.c.l.b16 %v341
    %v648 = vunpack.c.h.b16 %v341
    %v649 = vunpack.c.l.b16 %v342
    %v650 = vunpack.c.h.b16 %v342
    %v651 = vunpack.c.l.b16 %v343
    %v652 = vunpack.c.h.b16 %v343
    %v653 = vunpack.c.l.b16 %v344
    %v654 = vunpack.c.h.b16 %v344
    %v655 = vunpack.c.l.b16 %v345
    %v656 = vunpack.c.h.b16 %v345
    %v657 = vunpack.c.l.b16 %v346
    %v658 = vunpack.c.h.b16 %v346
    %v659 = vunpack.c.l.b16 %v347
    %v660 = vunpack.c.h.b16 %v347
    %v661 = vunpack.c.l.b16 %v348
    %v662 = vunpack.c.h.b16 %v348
    %v663 = vunpack.c.l.b16 %v349
    %v664 = vunpack.c.h.b16 %v349
    %v665 = vunpack.c.l.b16 %v350
    %v666 = vunpack.c.h.b16 %v350
    %v667 = vunpack.c.l.b16 %v351
    %v668 = vunpack.c.h.b16 %v351
    %v669 = vunpack.c.l.b16 %v352
    %v670 = vunpack.c.h.b16 %v352
    %v671 = vunpack.c.l.b16 %v353
    %v672 = vunpack.c.h.b16 %v353
    %v673 = vunpack.c.l.b16 %v354
    %v674 = vunpack.c.h.b16 %v354
    %v675 = vunpack.c.l.b16 %v355
    %v676 = vunpack.c.h.b16 %v355
    %v677 = vunpack.c.l.b16 %v356
    %v678 = vunpack.c.h.b16 %v356
    %v679 = vunpack.c.l.b16 %v357
    %v680 = vunpack.c.h.b16 %v357
    %v681 = vunpack.c.l.b16 %v358
    %v682 = vunpack.c.h.b16 %v358
    %v683 = vunpack.c.l.b16 %v359
    %v684 = vunpack.c.h.b16 %v359
    %v685 = vunpack.c.l.b16 %v360
    %v686 = vunpack.c.h.b16 %v360
    %v687 = vunpack.c.l.b16 %v361
    %v688 = vunpack.c.h.b16 %v361
    %v689 = vunpack.c.l.b16 %v362
    %v690 = vunpack.c.h.b16 %v362
    %v691 = vunpack.c.l.b16 %v363
    %v692 = vunpack.c.h.b16 %v363
    %v693 = vunpack.c.l.b16 %v364
    %v694 = vunpack.c.h.b16 %v364
    %v695 = vunpack.c.l.b16 %v365
    %v696 = vunpack.c.h.b16 %v365
    %v697 = vunpack.c.l.b16 %v366
    %v698 = vunpack.c.h.b16 %v366
    %v699 = vunpack.c.l.b16 %v367
    %v700 = vunpack.c.h.b16 %v367
    %v701 = vunpack.c.l.b16 %v368
    %v702 = vunpack.c.h.b16 %v368
    %v703 = vunpack.c.l.b16 %v369
    %v704 = vunpack.c.h.b16 %v369
    %v705 = vunpack.c.l.b16 %v370
    %v706 = vunpack.c.h.b16 %v370
    %v707 = vunpack.c.l.b16 %v371
    %v708 = vunpack.c.h.b16 %v371
    %v709 = vunpack.c.l.b16 %v372
    %v710 = vunpack.c.h.b16 %v372
    %v711 = vunpack.c.l.b16 %v373
    %v712 = vunpack.c.h.b16 %v373
    %v713 = vunpack.c.l.b16 %v374
    %v714 = vunpack.c.h.b16 %v374
    %v715 = vunpack.c.l.b16 %v375
    %v716 = vunpack.c.h.b16 %v375
    %v717 = vunpack.c.l.b16 %v376
    %v718 = vunpack.c.h.b16 %v376
    %v719 = vunpack.c.l.b16 %v377
    %v720 = vunpack.c.h.b16 %v377
    %v721 = vunpack.c.l.b16 %v378
    %v722 = vunpack.c.h.b16 %v378
    %v723 = vunpack.c.l.b16 %v379
    %v724 = vunpack.c.h.b16 %v379
    %v725 = vunpack.c.l.b16 %v380
    %v726 = vunpack.c.h.b16 %v380
    %v727 = vunpack.c.l.b16 %v381
    %v728 = vunpack.c.h.b16 %v381
    %v729 = vunpack.c.l.b16 %v382
    %v730 = vunpack.c.h.b16 %v382
    %v731 = vunpack.c.l.b16 %v383
    %v732 = vunpack.c.h.b16 %v383
    %v733 = vunpack.c.l.b16 %v384
    %v734 = vunpack.c.h.b16 %v384
    %v735 = vunpack.c.l.b16 %v385
    %v736 = vunpack.c.h.b16 %v385
    %v737 = vunpack.c.l.b16 %v386
    %v738 = vunpack.c.h.b16 %v386
    %v739 = vunpack.c.l.b16 %v387
    %v740 = vunpack.c.h.b16 %v387
    %v741 = vunpack.c.l.b16 %v388
    %v742 = vunpack.c.h.b16 %v388
    %v743 = vunpack.c.l.b16 %v389
    %v744 = vunpack.c.h.b16 %v389
    %v745 = vunpack.c.l.b16 %v390
    %v746 = vunpack.c.h.b16 %v390
    %v747 = vunpack.c.l.b16 %v391
    %v748 = vunpack.c.h.b16 %v391
    %v749 = vunpack.c.l.b16 %v392
    %v750 = vunpack.c.h.b16 %v392
    %v751 = vunpack.c.l.b16 %v393
    %v752 = vunpack.c.h.b16 %v393
    %v753 = vunpack.c.l.b16 %v394
    %v754 = vunpack.c.h.b16 %v394
    %v755 = vunpack.c.l.b16 %v395
    %v756 = vunpack.c.h.b16 %v395
    %v757 = vunpack.c.l.b16 %v396
    %v758 = vunpack.c.h.b16 %v396
    %v759 = vunpack.c.l.b16 %v397
    %v760 = vunpack.c.h.b16 %v397
    %v761 = vunpack.c.l.b16 %v398
    %v762 = vunpack.c.h.b16 %v398
    %v763 = vunpack.c.l.b16 %v399
    %v764 = vunpack.c.h.b16 %v399
    %v765 = vpack.c.b16 %v571, %v569
    %v766 = vpack.c.b16 %v572, %v570
    %v767 = vpack.c.b16 %v575, %v573
    %v768 = vpack.c.b16 %v576, %v574
    %v769 = vpack.c.b16 %v579, %v577
    %v770 = vpack.c.b16 %v580, %v578
    %v771 = vpack.c.b16 %v583, %v581
    %v772 = vpack.c.b16 %v584, %v582
    %v773 = vpack.c.b16 %v587, %v585
    %v774 = vpack.c.b16 %v588, %v586
    %v775 = vpack.c.b16 %v591, %v589
    %v776 = vpack.c.b16 %v592, %v590
    %v777 = vpack.c.b16 %v595, %v593
    %v778 = vpack.c.b16 %v596, %v594
    %v779 = vpack.c.b16 %v599, %v597
    %v780 = vpack.c.b16 %v600, %v598
    %v781 = vpack.c.b16 %v603, %v601
    %v782 = vpack.c.b16 %v604, %v602
    %v783 = vpack.c.b16 %v607, %v605
    %v784 = vpack.c.b16 %v608, %v606
    %v785 = vpack.c.b16 %v611, %v609
    %v786 = vpack.c.b16 %v612, %v610
    %v787 = vpack.c.b16 %v615, %v613
    %v788 = vpack.c.b16 %v616, %v614
    %v789 = vpack.c.b16 %v619, %v617
    %v790 = vpack.c.b16 %v620, %v618
    %v791 = vpack.c.b16 %v623, %v621
    %v792 = vpack.c.b16 %v624, %v622
    %v793 = vpack.c.b16 %v627, %v625
    %v794 = vpack.c.b16 %v628, %v626
    %v795 = vpack.c.b16 %v631, %v629
    %v796 = vpack.c.b16 %v632, %v630
    %v797 = vpack.c.b16 %v635, %v633
    %v798 = vpack.c.b16 %v636, %v634
    %v799 = vpack.c.b16 %v639, %v637
    %v800 = vpack.c.b16 %v640, %v638
    %v801 = vpack.c.b16 %v643, %v641
    %v802 = vpack.c.b16 %v644, %v642
    %v803 = vpack.c.b16 %v647, %v645
    %v804 = vpack.c.b16 %v648, %v646
    %v805 = vpack.c.b16 %v651, %v649
    %v806 = vpack.c.b16 %v652, %v650
    %v807 = vpack.c.b16 %v655, %v653
    %v808 = vpack.c.b16 %v656, %v654
    %v809 = vpack.c.b16 %v659, %v657
    %v810 = vpack.c.b16 %v660, %v658
    %v811 = vpack.c.b16 %v663, %v661
    %v812 = vpack.c.b16 %v664, %v662
    %v813 = vpack.c.b16 %v667, %v665
    %v814 = vpack.c.b16 %v668, %v666
    %v815 = vpack.c.b16 %v671, %v669
    %v816 = vpack.c.b16 %v672, %v670
    %v817 = vpack.c.b16 %v675, %v673
    %v818 = vpack.c.b16 %v676, %v674
    %v819 = vpack.c.b16 %v679, %v677
    %v820 = vpack.c.b16 %v680, %v678
    %v821 = vpack.c.b16 %v683, %v681
    %v822 = vpack.c.b16 %v684, %v682
    %v823 = vpack.c.b16 %v687, %v685
    %v824 = vpack.c.b16 %v688, %v686
    %v825 = vpack.c.b16 %v691, %v689
    %v826 = vpack.c.b16 %v692, %v690
    %v827 = vpack.c.b16 %v695, %v693
    %v828 = vpack.c.b16 %v696, %v694
    %v829 = vpack.c.b16 %v699, %v697
    %v830 = vpack.c.b16 %v700, %v698
    %v831 = vpack.c.b16 %v703, %v701
    %v832 = vpack.c.b16 %v704, %v702
    %v833 = vpack.c.b16 %v707, %v705
    %v834 = vpack.c.b16 %v708, %v706
    %v835 = vpack.c.b16 %v711, %v709
    %v836 = vpack.c.b16 %v712, %v710
    %v837 = vpack.c.b16 %v715, %v713
    %v838 = vpack.c.b16 %v716, %v714
    %v839 = vpack.c.b16 %v719, %v717
    %v840 = vpack.c.b16 %v720, %v718
    %v841 = vpack.c.b16 %v723, %v721
    %v842 = vpack.c.b16 %v724, %v722
    %v843 = vpack.c.b16 %v727, %v725
    %v844 = vpack.c.b16 %v728, %v726
    %v845 = vpack.c.b16 %v731, %v729
    %v846 = vpack.c.b16 %v732, %v730
    %v847 = vpack.c.b16 %v735, %v733
    %v848 = vpack.c.b16 %v736, %v734
    %v849 = vpack.c.b16 %v739, %v737
    %v850 = vpack.c.b16 %v740, %v738
    %v851 = vpack.c.b16 %v743, %v741
    %v852 = vpack.c.b16 %v744, %v742
    %v853 = vpack.c.b16 %v747, %v745
    %v854 = vpack.c.b16 %v748, %v746
    %v855 = vpack.c.b16 %v751, %v749
    %v856 = vpack.c.b16 %v752, %v750
    %v857 = vpack.c.b16 %v755, %v753
    %v858 = vpack.c.b16 %v756, %v754
    %v859 = vpack.c.b16 %v759, %v757
    %v860 = vpack.c.b16 %v760, %v758
    %v861 = vpack.c.b16 %v763, %v761
    %v862 = vpack.c.b16 %v764, %v762
    %vm961 = vcmask 130048
    %v963 = vsel %vm961, %v464, 0
    %965 = vmatpush.bf16.msra.mxu0 %v779
    %966 = vmatpush.bf16.msra.mxu0 %v777
    %967 = vmatpush.bf16.msra.mxu0 %v775
    %968 = vmatpush.bf16.msra.mxu0 %v773
    %969 = vmatpush.bf16.msra.mxu0 %v771
    %970 = vmatpush.bf16.msra.mxu0 %v769
    %971 = vmatpush.bf16.msra.mxu0 %v767
    %972 = vmatpush.bf16.msra.mxu0 %v765
    %973 = vmatmul.bf16.gmra.mxu0 %v458
    %v974 = vpop.f32.mrf.mxu0
    %v975 = vadd.f32 %v431, %v974
    %v976 = vpop.f32.mrf.mxu0
    %977 = vdwg.mxu0
    %978 = vmatpush.bf16.msra.mxu0 %v795
    %979 = vmatpush.bf16.msra.mxu0 %v793
    %980 = vmatpush.bf16.msra.mxu0 %v791
    %981 = vmatpush.bf16.msra.mxu0 %v789
    %982 = vmatpush.bf16.msra.mxu0 %v787
    %983 = vmatpush.bf16.msra.mxu0 %v785
    %984 = vmatpush.bf16.msra.mxu0 %v783
    %985 = vmatpush.bf16.msra.mxu0 %v781
    %986 = vmatmul.bf16.gmra.mxu0 %v459
    %v987 = vpop.f32.mrf.mxu0
    %v988 = vadd.f32 %v975, %v987
    %v989 = vpop.f32.mrf.mxu0
    %990 = vdwg.mxu0
    %991 = vmatpush.bf16.msra.mxu0 %v811
    %992 = vmatpush.bf16.msra.mxu0 %v809
    %993 = vmatpush.bf16.msra.mxu0 %v807
    %994 = vmatpush.bf16.msra.mxu0 %v805
    %995 = vmatpush.bf16.msra.mxu0 %v803
    %996 = vmatpush.bf16.msra.mxu0 %v801
    %997 = vmatpush.bf16.msra.mxu0 %v799
    %998 = vmatpush.bf16.msra.mxu0 %v797
    %999 = vmatmul.bf16.gmra.mxu0 %v460
    %v1000 = vpop.f32.mrf.mxu0
    %v1001 = vadd.f32 %v988, %v1000
    %v1002 = vpop.f32.mrf.mxu0
    %1003 = vdwg.mxu0
    %1004 = vmatpush.bf16.msra.mxu0 %v827
    %1005 = vmatpush.bf16.msra.mxu0 %v825
    %1006 = vmatpush.bf16.msra.mxu0 %v823
    %1007 = vmatpush.bf16.msra.mxu0 %v821
    %1008 = vmatpush.bf16.msra.mxu0 %v819
    %1009 = vmatpush.bf16.msra.mxu0 %v817
    %1010 = vmatpush.bf16.msra.mxu0 %v815
    %1011 = vmatpush.bf16.msra.mxu0 %v813
    %1012 = vmatmul.bf16.gmra.mxu0 %v461
    %v1013 = vpop.f32.mrf.mxu0
    %v1014 = vadd.f32 %v1001, %v1013
    %v1015 = vpop.f32.mrf.mxu0
    %1016 = vdwg.mxu0
    %1017 = vmatpush.bf16.msra.mxu0 %v843
    %1018 = vmatpush.bf16.msra.mxu0 %v841
    %1019 = vmatpush.bf16.msra.mxu0 %v839
    %1020 = vmatpush.bf16.msra.mxu0 %v837
    %1021 = vmatpush.bf16.msra.mxu0 %v835
    %1022 = vmatpush.bf16.msra.mxu0 %v833
    %1023 = vmatpush.bf16.msra.mxu0 %v831
    %1024 = vmatpush.bf16.msra.mxu0 %v829
    %1025 = vmatmul.bf16.gmra.mxu0 %v462
    %v1026 = vpop.f32.mrf.mxu0
    %v1027 = vadd.f32 %v1014, %v1026
    %v1028 = vpop.f32.mrf.mxu0
    %1029 = vdwg.mxu0
    %1030 = vmatpush.bf16.msra.mxu0 %v859
    %1031 = vmatpush.bf16.msra.mxu0 %v857
    %1032 = vmatpush.bf16.msra.mxu0 %v855
    %1033 = vmatpush.bf16.msra.mxu0 %v853
    %1034 = vmatpush.bf16.msra.mxu0 %v851
    %1035 = vmatpush.bf16.msra.mxu0 %v849
    %1036 = vmatpush.bf16.msra.mxu0 %v847
    %1037 = vmatpush.bf16.msra.mxu0 %v845
    %1038 = vmatmul.bf16.gmra.mxu0 %v463
    %v1039 = vpop.f32.mrf.mxu0
    %v1040 = vadd.f32 %v1027, %v1039
    %v1041 = vpop.f32.mrf.mxu0
    %1042 = vdwg.mxu0
    %1043 = vmatpush.bf16.msra.mxu0 0
    %1044 = vmatpush.bf16.msra.mxu0 0
    %1045 = vmatpush.bf16.msra.mxu0 0
    %1046 = vmatpush.bf16.msra.mxu0 0
    %1047 = vmatpush.bf16.msra.mxu0 0
    %1048 = vmatpush.bf16.msra.mxu0 0
    %1049 = vmatpush.bf16.msra.mxu0 0
    %1050 = vmatpush.bf16.msra.mxu0 %v861
    %1051 = vmatmul.bf16.gmra.mxu0 %v963
    %v1052 = vpop.f32.mrf.mxu0
    %v1053 = vadd.f32 %v1040, %v1052
    %v1054 = vpop.f32.mrf.mxu0
    %1055 = vdwg.mxu0
    %1056 = vmatpush.bf16.msra.mxu0 %v780
    %1057 = vmatpush.bf16.msra.mxu0 %v778
    %1058 = vmatpush.bf16.msra.mxu0 %v776
    %1059 = vmatpush.bf16.msra.mxu0 %v774
    %1060 = vmatpush.bf16.msra.mxu0 %v772
    %1061 = vmatpush.bf16.msra.mxu0 %v770
    %1062 = vmatpush.bf16.msra.mxu0 %v768
    %1063 = vmatpush.bf16.msra.mxu0 %v766
    %1064 = vmatmul.bf16.gmra.mxu0 %v458
    %v1065 = vpop.f32.mrf.mxu0
    %v1066 = vadd.f32 %v444, %v1065
    %v1067 = vpop.f32.mrf.mxu0
    %1068 = vdwg.mxu0
    %1069 = vmatpush.bf16.msra.mxu0 %v796
    %1070 = vmatpush.bf16.msra.mxu0 %v794
    %1071 = vmatpush.bf16.msra.mxu0 %v792
    %1072 = vmatpush.bf16.msra.mxu0 %v790
    %1073 = vmatpush.bf16.msra.mxu0 %v788
    %1074 = vmatpush.bf16.msra.mxu0 %v786
    %1075 = vmatpush.bf16.msra.mxu0 %v784
    %1076 = vmatpush.bf16.msra.mxu0 %v782
    %1077 = vmatmul.bf16.gmra.mxu0 %v459
    %v1078 = vpop.f32.mrf.mxu0
    %v1079 = vadd.f32 %v1066, %v1078
    %v1080 = vpop.f32.mrf.mxu0
    %1081 = vdwg.mxu0
    %1082 = vmatpush.bf16.msra.mxu0 %v812
    %1083 = vmatpush.bf16.msra.mxu0 %v810
    %1084 = vmatpush.bf16.msra.mxu0 %v808
    %1085 = vmatpush.bf16.msra.mxu0 %v806
    %1086 = vmatpush.bf16.msra.mxu0 %v804
    %1087 = vmatpush.bf16.msra.mxu0 %v802
    %1088 = vmatpush.bf16.msra.mxu0 %v800
    %1089 = vmatpush.bf16.msra.mxu0 %v798
    %1090 = vmatmul.bf16.gmra.mxu0 %v460
    %v1091 = vpop.f32.mrf.mxu0
    %v1092 = vadd.f32 %v1079, %v1091
    %v1093 = vpop.f32.mrf.mxu0
    %1094 = vdwg.mxu0
    %1095 = vmatpush.bf16.msra.mxu0 %v828
    %1096 = vmatpush.bf16.msra.mxu0 %v826
    %1097 = vmatpush.bf16.msra.mxu0 %v824
    %1098 = vmatpush.bf16.msra.mxu0 %v822
    %1099 = vmatpush.bf16.msra.mxu0 %v820
    %1100 = vmatpush.bf16.msra.mxu0 %v818
    %1101 = vmatpush.bf16.msra.mxu0 %v816
    %1102 = vmatpush.bf16.msra.mxu0 %v814
    %1103 = vmatmul.bf16.gmra.mxu0 %v461
    %v1104 = vpop.f32.mrf.mxu0
    %v1105 = vadd.f32 %v1092, %v1104
    %v1106 = vpop.f32.mrf.mxu0
    %1107 = vdwg.mxu0
    %1108 = vmatpush.bf16.msra.mxu0 %v844
    %1109 = vmatpush.bf16.msra.mxu0 %v842
    %1110 = vmatpush.bf16.msra.mxu0 %v840
    %1111 = vmatpush.bf16.msra.mxu0 %v838
    %1112 = vmatpush.bf16.msra.mxu0 %v836
    %1113 = vmatpush.bf16.msra.mxu0 %v834
    %1114 = vmatpush.bf16.msra.mxu0 %v832
    %1115 = vmatpush.bf16.msra.mxu0 %v830
    %1116 = vmatmul.bf16.gmra.mxu0 %v462
    %v1117 = vpop.f32.mrf.mxu0
    %v1118 = vadd.f32 %v1105, %v1117
    %v1119 = vpop.f32.mrf.mxu0
    %1120 = vdwg.mxu0
    %1121 = vmatpush.bf16.msra.mxu0 %v860
    %1122 = vmatpush.bf16.msra.mxu0 %v858
    %1123 = vmatpush.bf16.msra.mxu0 %v856
    %1124 = vmatpush.bf16.msra.mxu0 %v854
    %1125 = vmatpush.bf16.msra.mxu0 %v852
    %1126 = vmatpush.bf16.msra.mxu0 %v850
    %1127 = vmatpush.bf16.msra.mxu0 %v848
    %1128 = vmatpush.bf16.msra.mxu0 %v846
    %1129 = vmatmul.bf16.gmra.mxu0 %v463
    %v1130 = vpop.f32.mrf.mxu0
    %v1131 = vadd.f32 %v1118, %v1130
    %v1132 = vpop.f32.mrf.mxu0
    %1133 = vdwg.mxu0
    %1134 = vmatpush.bf16.msra.mxu0 0
    %1135 = vmatpush.bf16.msra.mxu0 0
    %1136 = vmatpush.bf16.msra.mxu0 0
    %1137 = vmatpush.bf16.msra.mxu0 0
    %1138 = vmatpush.bf16.msra.mxu0 0
    %1139 = vmatpush.bf16.msra.mxu0 0
    %1140 = vmatpush.bf16.msra.mxu0 0
    %1141 = vmatpush.bf16.msra.mxu0 %v862
    %1142 = vmatmul.bf16.gmra.mxu0 %v963
    %v1143 = vpop.f32.mrf.mxu0
    %v1144 = vadd.f32 %v1131, %v1143
    %v1145 = vpop.f32.mrf.mxu0
    %1146 = vdwg.mxu0
    %v1147 = vld [vmem:[%s5] sm:$0x3]
    %v1149 = vperm.slane %v1147, 0
    %v1150 = vperm.slane %v1147, 1
    %v1153 = vadd.f32 %v1053, %v1149
    %v1154 = vadd.f32 %v1144, %v1150
    %v1155 = vmax.f32 %v1153, 0.0
    %v1156 = vmax.f32 %v1154, 0.0
    %v1157 = vld [vmem:[#allocation11] sm:$0xff]
    %v1158 = vld [vmem:[#allocation11 + $0x8] sm:$0xff]
    %v1159 = vld [vmem:[#allocation11 + $0x10] sm:$0xff]
    %v1160 = vld [vmem:[#allocation11 + $0x18] sm:$0xff]
    %v1161 = vld [vmem:[#allocation11 + $0x20] sm:$0xff]
    %v1162 = vld [vmem:[#allocation11 + $0x28] sm:$0xff]
    %v1163 = vld [vmem:[#allocation11 + $0x30] sm:$0xff]
    %v1164 = vld [vmem:[#allocation11 + $0x38] sm:$0xff]
    %v1165 = vld [vmem:[#allocation11 + $0x40] sm:$0xff]
    %v1166 = vld [vmem:[#allocation11 + $0x48] sm:$0xff]
    %v1167 = vld [vmem:[#allocation11 + $0x50] sm:$0xff]
    %v1168 = vld [vmem:[#allocation11 + $0x58] sm:$0xff]
    %v1169 = vld [vmem:[#allocation11 + $0x60] sm:$0xff]
    %v1170 = vld [vmem:[#allocation11 + $0x68] sm:$0xff]
    %v1171 = vld [vmem:[#allocation11 + $0x70] sm:$0xff]
    %v1172 = vld [vmem:[#allocation11 + $0x78] sm:$0xff]
    %v1173 = vld [vmem:[#allocation11 + $0x80] sm:$0xff]
    %v1174 = vld [vmem:[#allocation11 + $0x88] sm:$0xff]
    %v1175 = vld [vmem:[#allocation11 + $0x90] sm:$0xff]
    %v1176 = vld [vmem:[#allocation11 + $0x98] sm:$0xff]
    %v1177 = vld [vmem:[#allocation11 + $0xa0] sm:$0xff]
    %v1178 = vld [vmem:[#allocation11 + $0xa8] sm:$0xff]
    %v1179 = vld [vmem:[#allocation11 + $0xb0] sm:$0xff]
    %v1180 = vld [vmem:[#allocation11 + $0xb8] sm:$0xff]
    %v1181 = vld [vmem:[#allocation11 + $0xc0] sm:$0xff]
    %v1182 = vld [vmem:[#allocation11 + $0xc8] sm:$0xff]
    %v1183 = vld [vmem:[#allocation11 + $0xd0] sm:$0xff]
    %v1184 = vld [vmem:[#allocation11 + $0xd8] sm:$0xff]
    %v1185 = vld [vmem:[#allocation11 + $0xe0] sm:$0xff]
    %v1186 = vld [vmem:[#allocation11 + $0xe8] sm:$0xff]
    %v1187 = vld [vmem:[#allocation11 + $0xf0] sm:$0xff]
    %v1188 = vld [vmem:[#allocation11 + $0xf8] sm:$0xff]
    %v1189 = vpack.c.bf16 %v1155, %v1155
    %v1190 = vpack.c.bf16 %v1156, %v1156
    %v1191 = vld [vmem:[%s7] sm:$0x3]
    %v1193 = vperm.slane %v1191, 0
    %v1194 = vperm.slane %v1191, 1
    %v1229 = vunpack.c.l.b16 %v1157
    %v1230 = vunpack.c.h.b16 %v1157
    %v1231 = vunpack.c.l.b16 %v1158
    %v1232 = vunpack.c.h.b16 %v1158
    %v1233 = vunpack.c.l.b16 %v1159
    %v1234 = vunpack.c.h.b16 %v1159
    %v1235 = vunpack.c.l.b16 %v1160
    %v1236 = vunpack.c.h.b16 %v1160
    %v1237 = vunpack.c.l.b16 %v1161
    %v1238 = vunpack.c.h.b16 %v1161
    %v1239 = vunpack.c.l.b16 %v1162
    %v1240 = vunpack.c.h.b16 %v1162
    %v1241 = vunpack.c.l.b16 %v1163
    %v1242 = vunpack.c.h.b16 %v1163
    %v1243 = vunpack.c.l.b16 %v1164
    %v1244 = vunpack.c.h.b16 %v1164
    %v1245 = vunpack.c.l.b16 %v1165
    %v1246 = vunpack.c.h.b16 %v1165
    %v1247 = vunpack.c.l.b16 %v1166
    %v1248 = vunpack.c.h.b16 %v1166
    %v1249 = vunpack.c.l.b16 %v1167
    %v1250 = vunpack.c.h.b16 %v1167
    %v1251 = vunpack.c.l.b16 %v1168
    %v1252 = vunpack.c.h.b16 %v1168
    %v1253 = vunpack.c.l.b16 %v1169
    %v1254 = vunpack.c.h.b16 %v1169
    %v1255 = vunpack.c.l.b16 %v1170
    %v1256 = vunpack.c.h.b16 %v1170
    %v1257 = vunpack.c.l.b16 %v1171
    %v1258 = vunpack.c.h.b16 %v1171
    %v1259 = vunpack.c.l.b16 %v1172
    %v1260 = vunpack.c.h.b16 %v1172
    %v1261 = vunpack.c.l.b16 %v1173
    %v1262 = vunpack.c.h.b16 %v1173
    %v1263 = vunpack.c.l.b16 %v1174
    %v1264 = vunpack.c.h.b16 %v1174
    %v1265 = vunpack.c.l.b16 %v1175
    %v1266 = vunpack.c.h.b16 %v1175
    %v1267 = vunpack.c.l.b16 %v1176
    %v1268 = vunpack.c.h.b16 %v1176
    %v1269 = vunpack.c.l.b16 %v1177
    %v1270 = vunpack.c.h.b16 %v1177
    %v1271 = vunpack.c.l.b16 %v1178
    %v1272 = vunpack.c.h.b16 %v1178
    %v1273 = vunpack.c.l.b16 %v1179
    %v1274 = vunpack.c.h.b16 %v1179
    %v1275 = vunpack.c.l.b16 %v1180
    %v1276 = vunpack.c.h.b16 %v1180
    %v1277 = vunpack.c.l.b16 %v1181
    %v1278 = vunpack.c.h.b16 %v1181
    %v1279 = vunpack.c.l.b16 %v1182
    %v1280 = vunpack.c.h.b16 %v1182
    %v1281 = vunpack.c.l.b16 %v1183
    %v1282 = vunpack.c.h.b16 %v1183
    %v1283 = vunpack.c.l.b16 %v1184
    %v1284 = vunpack.c.h.b16 %v1184
    %v1285 = vunpack.c.l.b16 %v1185
    %v1286 = vunpack.c.h.b16 %v1185
    %v1287 = vunpack.c.l.b16 %v1186
    %v1288 = vunpack.c.h.b16 %v1186
    %v1289 = vunpack.c.l.b16 %v1187
    %v1290 = vunpack.c.h.b16 %v1187
    %v1291 = vunpack.c.l.b16 %v1188
    %v1292 = vunpack.c.h.b16 %v1188
    %v1293 = vpack.c.b16 %v1231, %v1229
    %v1294 = vpack.c.b16 %v1232, %v1230
    %v1295 = vpack.c.b16 %v1235, %v1233
    %v1296 = vpack.c.b16 %v1236, %v1234
    %v1297 = vpack.c.b16 %v1239, %v1237
    %v1298 = vpack.c.b16 %v1240, %v1238
    %v1299 = vpack.c.b16 %v1243, %v1241
    %v1300 = vpack.c.b16 %v1244, %v1242
    %v1301 = vpack.c.b16 %v1247, %v1245
    %v1302 = vpack.c.b16 %v1248, %v1246
    %v1303 = vpack.c.b16 %v1251, %v1249
    %v1304 = vpack.c.b16 %v1252, %v1250
    %v1305 = vpack.c.b16 %v1255, %v1253
    %v1306 = vpack.c.b16 %v1256, %v1254
    %v1307 = vpack.c.b16 %v1259, %v1257
    %v1308 = vpack.c.b16 %v1260, %v1258
    %v1309 = vpack.c.b16 %v1263, %v1261
    %v1310 = vpack.c.b16 %v1264, %v1262
    %v1311 = vpack.c.b16 %v1267, %v1265
    %v1312 = vpack.c.b16 %v1268, %v1266
    %v1313 = vpack.c.b16 %v1271, %v1269
    %v1314 = vpack.c.b16 %v1272, %v1270
    %v1315 = vpack.c.b16 %v1275, %v1273
    %v1316 = vpack.c.b16 %v1276, %v1274
    %v1317 = vpack.c.b16 %v1279, %v1277
    %v1318 = vpack.c.b16 %v1280, %v1278
    %v1319 = vpack.c.b16 %v1283, %v1281
    %v1320 = vpack.c.b16 %v1284, %v1282
    %v1321 = vpack.c.b16 %v1287, %v1285
    %v1322 = vpack.c.b16 %v1288, %v1286
    %v1323 = vpack.c.b16 %v1291, %v1289
    %v1324 = vpack.c.b16 %v1292, %v1290
    %1357 = vmatpush.bf16.msra.mxu0 %v1307
    %1358 = vmatpush.bf16.msra.mxu0 %v1305
    %1359 = vmatpush.bf16.msra.mxu0 %v1303
    %1360 = vmatpush.bf16.msra.mxu0 %v1301
    %1361 = vmatpush.bf16.msra.mxu0 %v1299
    %1362 = vmatpush.bf16.msra.mxu0 %v1297
    %1363 = vmatpush.bf16.msra.mxu0 %v1295
    %1364 = vmatpush.bf16.msra.mxu0 %v1293
    %1365 = vmatmul.bf16.gmra.mxu0 %v1189
    %v1366 = vpop.f32.mrf.mxu0
    %v1367 = vadd.f32 %v1193, %v1366
    %v1368 = vpop.f32.mrf.mxu0
    %1369 = vdwg.mxu0
    %1370 = vmatpush.bf16.msra.mxu0 %v1323
    %1371 = vmatpush.bf16.msra.mxu0 %v1321
    %1372 = vmatpush.bf16.msra.mxu0 %v1319
    %1373 = vmatpush.bf16.msra.mxu0 %v1317
    %1374 = vmatpush.bf16.msra.mxu0 %v1315
    %1375 = vmatpush.bf16.msra.mxu0 %v1313
    %1376 = vmatpush.bf16.msra.mxu0 %v1311
    %1377 = vmatpush.bf16.msra.mxu0 %v1309
    %1378 = vmatmul.bf16.gmra.mxu0 %v1190
    %v1379 = vpop.f32.mrf.mxu0
    %v1380 = vadd.f32 %v1367, %v1379
    %v1381 = vpop.f32.mrf.mxu0
    %1382 = vdwg.mxu0
    %1383 = vmatpush.bf16.msra.mxu0 %v1308
    %1384 = vmatpush.bf16.msra.mxu0 %v1306
    %1385 = vmatpush.bf16.msra.mxu0 %v1304
    %1386 = vmatpush.bf16.msra.mxu0 %v1302
    %1387 = vmatpush.bf16.msra.mxu0 %v1300
    %1388 = vmatpush.bf16.msra.mxu0 %v1298
    %1389 = vmatpush.bf16.msra.mxu0 %v1296
    %1390 = vmatpush.bf16.msra.mxu0 %v1294
    %1391 = vmatmul.bf16.gmra.mxu0 %v1189
    %v1392 = vpop.f32.mrf.mxu0
    %v1393 = vadd.f32 %v1194, %v1392
    %v1394 = vpop.f32.mrf.mxu0
    %1395 = vdwg.mxu0
    %1396 = vmatpush.bf16.msra.mxu0 %v1324
    %1397 = vmatpush.bf16.msra.mxu0 %v1322
    %1398 = vmatpush.bf16.msra.mxu0 %v1320
    %1399 = vmatpush.bf16.msra.mxu0 %v1318
    %1400 = vmatpush.bf16.msra.mxu0 %v1316
    %1401 = vmatpush.bf16.msra.mxu0 %v1314
    %1402 = vmatpush.bf16.msra.mxu0 %v1312
    %1403 = vmatpush.bf16.msra.mxu0 %v1310
    %1404 = vmatmul.bf16.gmra.mxu0 %v1190
    %v1405 = vpop.f32.mrf.mxu0
    %v1406 = vadd.f32 %v1393, %v1405
    %v1407 = vpop.f32.mrf.mxu0
    %1408 = vdwg.mxu0
    %v1409 = vmax.f32 %v1380, 0.0
    %v1410 = vmax.f32 %v1406, 0.0
    %v1411 = vld [vmem:[#allocation13] sm:$0xff]
    %v1412 = vld [vmem:[#allocation13 + $0x8] sm:$0xff]
    %v1413 = vld [vmem:[#allocation13 + $0x10] sm:$0xff]
    %v1414 = vld [vmem:[#allocation13 + $0x18] sm:$0xff]
    %v1415 = vld [vmem:[#allocation13 + $0x20] sm:$0xff]
    %v1416 = vld [vmem:[#allocation13 + $0x28] sm:$0xff]
    %v1417 = vld [vmem:[#allocation13 + $0x30] sm:$0xff]
    %v1418 = vld [vmem:[#allocation13 + $0x38] sm:$0xff]
    %v1419 = vld [vmem:[#allocation13 + $0x40] sm:$0xff]
    %v1420 = vld [vmem:[#allocation13 + $0x48] sm:$0xff]
    %v1421 = vld [vmem:[#allocation13 + $0x50] sm:$0xff]
    %v1422 = vld [vmem:[#allocation13 + $0x58] sm:$0xff]
    %v1423 = vld [vmem:[#allocation13 + $0x60] sm:$0xff]
    %v1424 = vld [vmem:[#allocation13 + $0x68] sm:$0xff]
    %v1425 = vld [vmem:[#allocation13 + $0x70] sm:$0xff]
    %v1426 = vld [vmem:[#allocation13 + $0x78] sm:$0xff]
    %v1427 = vld [vmem:[#allocation13 + $0x80] sm:$0xff]
    %v1428 = vld [vmem:[#allocation13 + $0x88] sm:$0xff]
    %v1429 = vld [vmem:[#allocation13 + $0x90] sm:$0xff]
    %v1430 = vld [vmem:[#allocation13 + $0x98] sm:$0xff]
    %v1431 = vld [vmem:[#allocation13 + $0xa0] sm:$0xff]
    %v1432 = vld [vmem:[#allocation13 + $0xa8] sm:$0xff]
    %v1433 = vld [vmem:[#allocation13 + $0xb0] sm:$0xff]
    %v1434 = vld [vmem:[#allocation13 + $0xb8] sm:$0xff]
    %v1435 = vld [vmem:[#allocation13 + $0xc0] sm:$0xff]
    %v1436 = vld [vmem:[#allocation13 + $0xc8] sm:$0xff]
    %v1437 = vld [vmem:[#allocation13 + $0xd0] sm:$0xff]
    %v1438 = vld [vmem:[#allocation13 + $0xd8] sm:$0xff]
    %v1439 = vld [vmem:[#allocation13 + $0xe0] sm:$0xff]
    %v1440 = vld [vmem:[#allocation13 + $0xe8] sm:$0xff]
    %v1441 = vld [vmem:[#allocation13 + $0xf0] sm:$0xff]
    %v1442 = vld [vmem:[#allocation13 + $0xf8] sm:$0xff]
    %v1443 = vpack.c.bf16 %v1409, %v1409
    %v1444 = vpack.c.bf16 %v1410, %v1410
    %v1445 = vld [vmem:[%s9] sm:$0x3]
    %v1447 = vperm.slane %v1445, 0
    %v1448 = vperm.slane %v1445, 1
    %v1483 = vunpack.c.l.b16 %v1411
    %v1484 = vunpack.c.h.b16 %v1411
    %v1485 = vunpack.c.l.b16 %v1412
    %v1486 = vunpack.c.h.b16 %v1412
    %v1487 = vunpack.c.l.b16 %v1413
    %v1488 = vunpack.c.h.b16 %v1413
    %v1489 = vunpack.c.l.b16 %v1414
    %v1490 = vunpack.c.h.b16 %v1414
    %v1491 = vunpack.c.l.b16 %v1415
    %v1492 = vunpack.c.h.b16 %v1415
    %v1493 = vunpack.c.l.b16 %v1416
    %v1494 = vunpack.c.h.b16 %v1416
    %v1495 = vunpack.c.l.b16 %v1417
    %v1496 = vunpack.c.h.b16 %v1417
    %v1497 = vunpack.c.l.b16 %v1418
    %v1498 = vunpack.c.h.b16 %v1418
    %v1499 = vunpack.c.l.b16 %v1419
    %v1500 = vunpack.c.h.b16 %v1419
    %v1501 = vunpack.c.l.b16 %v1420
    %v1502 = vunpack.c.h.b16 %v1420
    %v1503 = vunpack.c.l.b16 %v1421
    %v1504 = vunpack.c.h.b16 %v1421
    %v1505 = vunpack.c.l.b16 %v1422
    %v1506 = vunpack.c.h.b16 %v1422
    %v1507 = vunpack.c.l.b16 %v1423
    %v1508 = vunpack.c.h.b16 %v1423
    %v1509 = vunpack.c.l.b16 %v1424
    %v1510 = vunpack.c.h.b16 %v1424
    %v1511 = vunpack.c.l.b16 %v1425
    %v1512 = vunpack.c.h.b16 %v1425
    %v1513 = vunpack.c.l.b16 %v1426
    %v1514 = vunpack.c.h.b16 %v1426
    %v1515 = vunpack.c.l.b16 %v1427
    %v1516 = vunpack.c.h.b16 %v1427
    %v1517 = vunpack.c.l.b16 %v1428
    %v1518 = vunpack.c.h.b16 %v1428
    %v1519 = vunpack.c.l.b16 %v1429
    %v1520 = vunpack.c.h.b16 %v1429
    %v1521 = vunpack.c.l.b16 %v1430
    %v1522 = vunpack.c.h.b16 %v1430
    %v1523 = vunpack.c.l.b16 %v1431
    %v1524 = vunpack.c.h.b16 %v1431
    %v1525 = vunpack.c.l.b16 %v1432
    %v1526 = vunpack.c.h.b16 %v1432
    %v1527 = vunpack.c.l.b16 %v1433
    %v1528 = vunpack.c.h.b16 %v1433
    %v1529 = vunpack.c.l.b16 %v1434
    %v1530 = vunpack.c.h.b16 %v1434
    %v1531 = vunpack.c.l.b16 %v1435
    %v1532 = vunpack.c.h.b16 %v1435
    %v1533 = vunpack.c.l.b16 %v1436
    %v1534 = vunpack.c.h.b16 %v1436
    %v1535 = vunpack.c.l.b16 %v1437
    %v1536 = vunpack.c.h.b16 %v1437
    %v1537 = vunpack.c.l.b16 %v1438
    %v1538 = vunpack.c.h.b16 %v1438
    %v1539 = vunpack.c.l.b16 %v1439
    %v1540 = vunpack.c.h.b16 %v1439
    %v1541 = vunpack.c.l.b16 %v1440
    %v1542 = vunpack.c.h.b16 %v1440
    %v1543 = vunpack.c.l.b16 %v1441
    %v1544 = vunpack.c.h.b16 %v1441
    %v1545 = vunpack.c.l.b16 %v1442
    %v1546 = vunpack.c.h.b16 %v1442
    %v1547 = vpack.c.b16 %v1485, %v1483
    %v1548 = vpack.c.b16 %v1486, %v1484
    %v1549 = vpack.c.b16 %v1489, %v1487
    %v1550 = vpack.c.b16 %v1490, %v1488
    %v1551 = vpack.c.b16 %v1493, %v1491
    %v1552 = vpack.c.b16 %v1494, %v1492
    %v1553 = vpack.c.b16 %v1497, %v1495
    %v1554 = vpack.c.b16 %v1498, %v1496
    %v1555 = vpack.c.b16 %v1501, %v1499
    %v1556 = vpack.c.b16 %v1502, %v1500
    %v1557 = vpack.c.b16 %v1505, %v1503
    %v1558 = vpack.c.b16 %v1506, %v1504
    %v1559 = vpack.c.b16 %v1509, %v1507
    %v1560 = vpack.c.b16 %v1510, %v1508
    %v1561 = vpack.c.b16 %v1513, %v1511
    %v1562 = vpack.c.b16 %v1514, %v1512
    %v1563 = vpack.c.b16 %v1517, %v1515
    %v1564 = vpack.c.b16 %v1518, %v1516
    %v1565 = vpack.c.b16 %v1521, %v1519
    %v1566 = vpack.c.b16 %v1522, %v1520
    %v1567 = vpack.c.b16 %v1525, %v1523
    %v1568 = vpack.c.b16 %v1526, %v1524
    %v1569 = vpack.c.b16 %v1529, %v1527
    %v1570 = vpack.c.b16 %v1530, %v1528
    %v1571 = vpack.c.b16 %v1533, %v1531
    %v1572 = vpack.c.b16 %v1534, %v1532
    %v1573 = vpack.c.b16 %v1537, %v1535
    %v1574 = vpack.c.b16 %v1538, %v1536
    %v1575 = vpack.c.b16 %v1541, %v1539
    %v1576 = vpack.c.b16 %v1542, %v1540
    %v1577 = vpack.c.b16 %v1545, %v1543
    %v1578 = vpack.c.b16 %v1546, %v1544
    %1611 = vmatpush.bf16.msra.mxu0 %v1561
    %1612 = vmatpush.bf16.msra.mxu0 %v1559
    %1613 = vmatpush.bf16.msra.mxu0 %v1557
    %1614 = vmatpush.bf16.msra.mxu0 %v1555
    %1615 = vmatpush.bf16.msra.mxu0 %v1553
    %1616 = vmatpush.bf16.msra.mxu0 %v1551
    %1617 = vmatpush.bf16.msra.mxu0 %v1549
    %1618 = vmatpush.bf16.msra.mxu0 %v1547
    %1619 = vmatmul.bf16.gmra.mxu0 %v1443
    %v1620 = vpop.f32.mrf.mxu0
    %v1621 = vadd.f32 %v1447, %v1620
    %v1622 = vpop.f32.mrf.mxu0
    %1623 = vdwg.mxu0
    %1624 = vmatpush.bf16.msra.mxu0 %v1577
    %1625 = vmatpush.bf16.msra.mxu0 %v1575
    %1626 = vmatpush.bf16.msra.mxu0 %v1573
    %1627 = vmatpush.bf16.msra.mxu0 %v1571
    %1628 = vmatpush.bf16.msra.mxu0 %v1569
    %1629 = vmatpush.bf16.msra.mxu0 %v1567
    %1630 = vmatpush.bf16.msra.mxu0 %v1565
    %1631 = vmatpush.bf16.msra.mxu0 %v1563
    %1632 = vmatmul.bf16.gmra.mxu0 %v1444
    %v1633 = vpop.f32.mrf.mxu0
    %v1634 = vadd.f32 %v1621, %v1633
    %v1635 = vpop.f32.mrf.mxu0
    %1636 = vdwg.mxu0
    %1637 = vmatpush.bf16.msra.mxu0 %v1562
    %1638 = vmatpush.bf16.msra.mxu0 %v1560
    %1639 = vmatpush.bf16.msra.mxu0 %v1558
    %1640 = vmatpush.bf16.msra.mxu0 %v1556
    %1641 = vmatpush.bf16.msra.mxu0 %v1554
    %1642 = vmatpush.bf16.msra.mxu0 %v1552
    %1643 = vmatpush.bf16.msra.mxu0 %v1550
    %1644 = vmatpush.bf16.msra.mxu0 %v1548
    %1645 = vmatmul.bf16.gmra.mxu0 %v1443
    %v1646 = vpop.f32.mrf.mxu0
    %v1647 = vadd.f32 %v1448, %v1646
    %v1648 = vpop.f32.mrf.mxu0
    %1649 = vdwg.mxu0
    %1650 = vmatpush.bf16.msra.mxu0 %v1578
    %1651 = vmatpush.bf16.msra.mxu0 %v1576
    %1652 = vmatpush.bf16.msra.mxu0 %v1574
    %1653 = vmatpush.bf16.msra.mxu0 %v1572
    %1654 = vmatpush.bf16.msra.mxu0 %v1570
    %1655 = vmatpush.bf16.msra.mxu0 %v1568
    %1656 = vmatpush.bf16.msra.mxu0 %v1566
    %1657 = vmatpush.bf16.msra.mxu0 %v1564
    %1658 = vmatmul.bf16.gmra.mxu0 %v1444
    %v1659 = vpop.f32.mrf.mxu0
    %v1660 = vadd.f32 %v1647, %v1659
    %v1661 = vpop.f32.mrf.mxu0
    %1662 = vdwg.mxu0
    %v1663 = vmax.f32 %v1634, 0.0
    %v1664 = vmax.f32 %v1660, 0.0
    %v1665 = vld [vmem:[#allocation14] sm:$0xf]
    %v1666 = vld [vmem:[#allocation14 + $0x4] sm:$0xf]
    %v1667 = vld [vmem:[#allocation14 + $0x8] sm:$0xf]
    %v1668 = vld [vmem:[#allocation14 + $0xc] sm:$0xf]
    %v1669 = vld [vmem:[#allocation14 + $0x10] sm:$0xf]
    %v1670 = vld [vmem:[#allocation14 + $0x14] sm:$0xf]
    %v1671 = vld [vmem:[#allocation14 + $0x18] sm:$0xf]
    %v1672 = vld [vmem:[#allocation14 + $0x1c] sm:$0xf]
    %v1673 = vld [vmem:[#allocation14 + $0x20] sm:$0xf]
    %v1674 = vld [vmem:[#allocation14 + $0x24] sm:$0xf]
    %v1675 = vld [vmem:[#allocation14 + $0x28] sm:$0xf]
    %v1676 = vld [vmem:[#allocation14 + $0x2c] sm:$0xf]
    %v1677 = vld [vmem:[#allocation14 + $0x30] sm:$0xf]
    %v1678 = vld [vmem:[#allocation14 + $0x34] sm:$0xf]
    %v1679 = vld [vmem:[#allocation14 + $0x38] sm:$0xf]
    %v1680 = vld [vmem:[#allocation14 + $0x3c] sm:$0xf]
    %v1681 = vld [vmem:[#allocation14 + $0x40] sm:$0xf]
    %v1682 = vld [vmem:[#allocation14 + $0x44] sm:$0xf]
    %v1683 = vld [vmem:[#allocation14 + $0x48] sm:$0xf]
    %v1684 = vld [vmem:[#allocation14 + $0x4c] sm:$0xf]
    %v1685 = vld [vmem:[#allocation14 + $0x50] sm:$0xf]
    %v1686 = vld [vmem:[#allocation14 + $0x54] sm:$0xf]
    %v1687 = vld [vmem:[#allocation14 + $0x58] sm:$0xf]
    %v1688 = vld [vmem:[#allocation14 + $0x5c] sm:$0xf]
    %v1689 = vld [vmem:[#allocation14 + $0x60] sm:$0xf]
    %v1690 = vld [vmem:[#allocation14 + $0x64] sm:$0xf]
    %v1691 = vld [vmem:[#allocation14 + $0x68] sm:$0xf]
    %v1692 = vld [vmem:[#allocation14 + $0x6c] sm:$0xf]
    %v1693 = vld [vmem:[#allocation14 + $0x70] sm:$0xf]
    %v1694 = vld [vmem:[#allocation14 + $0x74] sm:$0xf]
    %v1695 = vld [vmem:[#allocation14 + $0x78] sm:$0xf]
    %v1696 = vld [vmem:[#allocation14 + $0x7c] sm:$0xf]
    %v1697 = vpack.c.bf16 %v1663, %v1663
    %v1698 = vpack.c.bf16 %v1664, %v1664
    %v1699 = vld [vmem:[#allocation16] sm:$0x1]
    %v1701 = vperm.slane %v1699, 0
    %v1735 = vunpack.c.l.b16 %v1665
    %v1736 = vunpack.c.l.b16 %v1666
    %v1737 = vunpack.c.l.b16 %v1667
    %v1738 = vunpack.c.l.b16 %v1668
    %v1739 = vunpack.c.l.b16 %v1669
    %v1740 = vunpack.c.l.b16 %v1670
    %v1741 = vunpack.c.l.b16 %v1671
    %v1742 = vunpack.c.l.b16 %v1672
    %v1743 = vunpack.c.l.b16 %v1673
    %v1744 = vunpack.c.l.b16 %v1674
    %v1745 = vunpack.c.l.b16 %v1675
    %v1746 = vunpack.c.l.b16 %v1676
    %v1747 = vunpack.c.l.b16 %v1677
    %v1748 = vunpack.c.l.b16 %v1678
    %v1749 = vunpack.c.l.b16 %v1679
    %v1750 = vunpack.c.l.b16 %v1680
    %v1751 = vunpack.c.l.b16 %v1681
    %v1752 = vunpack.c.l.b16 %v1682
    %v1753 = vunpack.c.l.b16 %v1683
    %v1754 = vunpack.c.l.b16 %v1684
    %v1755 = vunpack.c.l.b16 %v1685
    %v1756 = vunpack.c.l.b16 %v1686
    %v1757 = vunpack.c.l.b16 %v1687
    %v1758 = vunpack.c.l.b16 %v1688
    %v1759 = vunpack.c.l.b16 %v1689
    %v1760 = vunpack.c.l.b16 %v1690
    %v1761 = vunpack.c.l.b16 %v1691
    %v1762 = vunpack.c.l.b16 %v1692
    %v1763 = vunpack.c.l.b16 %v1693
    %v1764 = vunpack.c.l.b16 %v1694
    %v1765 = vunpack.c.l.b16 %v1695
    %v1766 = vunpack.c.l.b16 %v1696
    %v1767 = vpack.c.b16 %v1736, %v1735
    %v1768 = vpack.c.b16 %v1738, %v1737
    %v1769 = vpack.c.b16 %v1740, %v1739
    %v1770 = vpack.c.b16 %v1742, %v1741
    %v1771 = vpack.c.b16 %v1744, %v1743
    %v1772 = vpack.c.b16 %v1746, %v1745
    %v1773 = vpack.c.b16 %v1748, %v1747
    %v1774 = vpack.c.b16 %v1750, %v1749
    %v1775 = vpack.c.b16 %v1752, %v1751
    %v1776 = vpack.c.b16 %v1754, %v1753
    %v1777 = vpack.c.b16 %v1756, %v1755
    %v1778 = vpack.c.b16 %v1758, %v1757
    %v1779 = vpack.c.b16 %v1760, %v1759
    %v1780 = vpack.c.b16 %v1762, %v1761
    %v1781 = vpack.c.b16 %v1764, %v1763
    %v1782 = vpack.c.b16 %v1766, %v1765
    %1799 = vmatpush.bf16.msra.mxu0 %v1774
    %1800 = vmatpush.bf16.msra.mxu0 %v1773
    %1801 = vmatpush.bf16.msra.mxu0 %v1772
    %1802 = vmatpush.bf16.msra.mxu0 %v1771
    %1803 = vmatpush.bf16.msra.mxu0 %v1770
    %1804 = vmatpush.bf16.msra.mxu0 %v1769
    %1805 = vmatpush.bf16.msra.mxu0 %v1768
    %1806 = vmatpush.bf16.msra.mxu0 %v1767
    %1807 = vmatmul.bf16.gmra.mxu0 %v1697
    %v1808 = vpop.f32.mrf.mxu0
    %v1809 = vadd.f32 %v1701, %v1808
    %v1810 = vpop.f32.mrf.mxu0
    %1811 = vdwg.mxu0
    %1812 = vmatpush.bf16.msra.mxu0 %v1782
    %1813 = vmatpush.bf16.msra.mxu0 %v1781
    %1814 = vmatpush.bf16.msra.mxu0 %v1780
    %1815 = vmatpush.bf16.msra.mxu0 %v1779
    %1816 = vmatpush.bf16.msra.mxu0 %v1778
    %1817 = vmatpush.bf16.msra.mxu0 %v1777
    %1818 = vmatpush.bf16.msra.mxu0 %v1776
    %1819 = vmatpush.bf16.msra.mxu0 %v1775
    %1820 = vmatmul.bf16.gmra.mxu0 %v1698
    %v1821 = vpop.f32.mrf.mxu0
    %v1822 = vadd.f32 %v1809, %v1821
    %v1823 = vpop.f32.mrf.mxu0
    %1824 = vdwg.mxu0
    %1825 = vst [vmem:[#allocation27] sm:$0xff] %v1822
    %v1826 = vmul.f32 %v1822, 0.5
    %v1827 = vmul.f32 %v1826, 1.442695
    %v1828 = vpow.pop %v1827
    %1830 = vrot.lane.b32.xlu0 %v1828, 113
    %v1831 = vpop.permute.xlu0 %1830
    %v1833 = vmul.f32 %v301, %v1831
    %v1834 = vadd.f32 %v1822, %v1833
    %v1835 = vld [vmem:[#allocation17] sm:$0xff]
    %v1836 = vld [vmem:[#allocation17 + $0x8] sm:$0xff]
    %v1837 = vpack.c.bf16 %v1834, %v1834
    %v1838 = vld [vmem:[#allocation19] sm:$0xff]
    %v1839 = vld [vmem:[#allocation19 + $0x8] sm:$0x11]
    %v1842 = vunpack.c.l.b16 %v1838
    %v1843 = vunpack.c.h.b16 %v1838
    %v1844 = vunpack.c.l.b16 %v1839
    %v1845 = vunpack.c.h.b16 %v1839
    %v1846 = vpack.c.b16 %v1844, %v1842
    %v1847 = vpack.c.b16 %v1845, %v1843
    %v1849 = vsel %vm414, %v1846, 0
    %v1852 = vsel %vm414, %v1847, 0
    %1854 = vmatpush.bf16.msra.mxu0 0
    %1855 = vmatpush.bf16.msra.mxu0 0
    %1856 = vmatpush.bf16.msra.mxu0 0
    %1857 = vmatpush.bf16.msra.mxu0 0
    %1858 = vmatpush.bf16.msra.mxu0 0
    %1859 = vmatpush.bf16.msra.mxu0 0
    %1860 = vmatpush.bf16.msra.mxu0 0
    %1861 = vmatpush.bf16.msra.mxu0 %v1849
    %1862 = vmatmul.bf16.gmra.mxu0 %v412
    %v1863 = vpop.f32.mrf.mxu0
    %v1864 = vadd.f32 0.0, %v1863
    %v1865 = vpop.f32.mrf.mxu0
    %1866 = vdwg.mxu0
    %1867 = vmatpush.bf16.msra.mxu0 0
    %1868 = vmatpush.bf16.msra.mxu0 0
    %1869 = vmatpush.bf16.msra.mxu0 0
    %1870 = vmatpush.bf16.msra.mxu0 0
    %1871 = vmatpush.bf16.msra.mxu0 0
    %1872 = vmatpush.bf16.msra.mxu0 0
    %1873 = vmatpush.bf16.msra.mxu0 0
    %1874 = vmatpush.bf16.msra.mxu0 %v1852
    %1875 = vmatmul.bf16.gmra.mxu0 %v412
    %v1876 = vpop.f32.mrf.mxu0
    %v1877 = vadd.f32 0.0, %v1876
    %v1878 = vpop.f32.mrf.mxu0
    %1879 = vdwg.mxu0
    %v1882 = vunpack.c.l.b16 %v1835
    %v1883 = vunpack.c.h.b16 %v1835
    %v1884 = vunpack.c.l.b16 %v1836
    %v1885 = vunpack.c.h.b16 %v1836
    %v1886 = vpack.c.b16 %v1884, %v1882
    %v1887 = vpack.c.b16 %v1885, %v1883
    %vm1888 = vcmask 121856
    %v1890 = vsel %vm1888, %v1837, 0
    %vm1892 = vcmask 1046528
    %vm1893 = vcmask 1047552
    %v1894 = vsel %vm1892, 4294967295, 65535
    %v1895 = vsel %vm1893, %v1894, 0
    %v1897 = vand.u32 %v1886, %v1895
    %v1900 = vand.u32 %v1887, %v1895
    %1902 = vmatpush.bf16.msra.mxu0 0
    %1903 = vmatpush.bf16.msra.mxu0 0
    %1904 = vmatpush.bf16.msra.mxu0 0
    %1905 = vmatpush.bf16.msra.mxu0 0
    %1906 = vmatpush.bf16.msra.mxu0 0
    %1907 = vmatpush.bf16.msra.mxu0 0
    %1908 = vmatpush.bf16.msra.mxu0 0
    %1909 = vmatpush.bf16.msra.mxu0 %v1897
    %1910 = vmatmul.bf16.gmra.mxu0 %v1890
    %v1911 = vpop.f32.mrf.mxu0
    %v1912 = vadd.f32 %v1864, %v1911
    %v1913 = vpop.f32.mrf.mxu0
    %1914 = vdwg.mxu0
    %1915 = vmatpush.bf16.msra.mxu0 0
    %1916 = vmatpush.bf16.msra.mxu0 0
    %1917 = vmatpush.bf16.msra.mxu0 0
    %1918 = vmatpush.bf16.msra.mxu0 0
    %1919 = vmatpush.bf16.msra.mxu0 0
    %1920 = vmatpush.bf16.msra.mxu0 0
    %1921 = vmatpush.bf16.msra.mxu0 0
    %1922 = vmatpush.bf16.msra.mxu0 %v1900
    %1923 = vmatmul.bf16.gmra.mxu0 %v1890
    %v1924 = vpop.f32.mrf.mxu0
    %v1925 = vadd.f32 %v1877, %v1924
    %v1926 = vpop.f32.mrf.mxu0
    %1927 = vdwg.mxu0
    %v1928 = vld [vmem:[#allocation20] sm:$0x3]
    %v1930 = vperm.slane %v1928, 0
    %v1931 = vperm.slane %v1928, 1
    %v1934 = vadd.f32 %v1912, %v1930
    %v1935 = vadd.f32 %v1925, %v1931
    %v1936 = vmax.f32 %v1934, 0.0
    %v1937 = vmax.f32 %v1935, 0.0
    %v1938 = vld [vmem:[#allocation22] sm:$0xff]
    %v1939 = vld [vmem:[#allocation22 + $0x8] sm:$0xff]
    %v1940 = vld [vmem:[#allocation22 + $0x10] sm:$0xff]
    %v1941 = vld [vmem:[#allocation22 + $0x18] sm:$0xff]
    %v1942 = vld [vmem:[#allocation22 + $0x20] sm:$0xff]
    %v1943 = vld [vmem:[#allocation22 + $0x28] sm:$0xff]
    %v1944 = vld [vmem:[#allocation22 + $0x30] sm:$0xff]
    %v1945 = vld [vmem:[#allocation22 + $0x38] sm:$0xff]
    %v1946 = vld [vmem:[#allocation22 + $0x40] sm:$0xff]
    %v1947 = vld [vmem:[#allocation22 + $0x48] sm:$0xff]
    %v1948 = vld [vmem:[#allocation22 + $0x50] sm:$0xff]
    %v1949 = vld [vmem:[#allocation22 + $0x58] sm:$0xff]
    %v1950 = vld [vmem:[#allocation22 + $0x60] sm:$0xff]
    %v1951 = vld [vmem:[#allocation22 + $0x68] sm:$0xff]
    %v1952 = vld [vmem:[#allocation22 + $0x70] sm:$0xff]
    %v1953 = vld [vmem:[#allocation22 + $0x78] sm:$0xff]
    %v1954 = vld [vmem:[#allocation22 + $0x80] sm:$0xff]
    %v1955 = vld [vmem:[#allocation22 + $0x88] sm:$0xff]
    %v1956 = vld [vmem:[#allocation22 + $0x90] sm:$0xff]
    %v1957 = vld [vmem:[#allocation22 + $0x98] sm:$0xff]
    %v1958 = vld [vmem:[#allocation22 + $0xa0] sm:$0xff]
    %v1959 = vld [vmem:[#allocation22 + $0xa8] sm:$0xff]
    %v1960 = vld [vmem:[#allocation22 + $0xb0] sm:$0xff]
    %v1961 = vld [vmem:[#allocation22 + $0xb8] sm:$0xff]
    %v1962 = vld [vmem:[#allocation22 + $0xc0] sm:$0xff]
    %v1963 = vld [vmem:[#allocation22 + $0xc8] sm:$0xff]
    %v1964 = vld [vmem:[#allocation22 + $0xd0] sm:$0xff]
    %v1965 = vld [vmem:[#allocation22 + $0xd8] sm:$0xff]
    %v1966 = vld [vmem:[#allocation22 + $0xe0] sm:$0xff]
    %v1967 = vld [vmem:[#allocation22 + $0xe8] sm:$0xff]
    %v1968 = vld [vmem:[#allocation22 + $0xf0] sm:$0xff]
    %v1969 = vld [vmem:[#allocation22 + $0xf8] sm:$0xff]
    %v1970 = vpack.c.bf16 %v1936, %v1936
    %v1971 = vpack.c.bf16 %v1937, %v1937
    %v1972 = vld [vmem:[%s16] sm:$0x3]
    %v1974 = vperm.slane %v1972, 0
    %v1975 = vperm.slane %v1972, 1
    %v2010 = vunpack.c.l.b16 %v1938
    %v2011 = vunpack.c.h.b16 %v1938
    %v2012 = vunpack.c.l.b16 %v1939
    %v2013 = vunpack.c.h.b16 %v1939
    %v2014 = vunpack.c.l.b16 %v1940
    %v2015 = vunpack.c.h.b16 %v1940
    %v2016 = vunpack.c.l.b16 %v1941
    %v2017 = vunpack.c.h.b16 %v1941
    %v2018 = vunpack.c.l.b16 %v1942
    %v2019 = vunpack.c.h.b16 %v1942
    %v2020 = vunpack.c.l.b16 %v1943
    %v2021 = vunpack.c.h.b16 %v1943
    %v2022 = vunpack.c.l.b16 %v1944
    %v2023 = vunpack.c.h.b16 %v1944
    %v2024 = vunpack.c.l.b16 %v1945
    %v2025 = vunpack.c.h.b16 %v1945
    %v2026 = vunpack.c.l.b16 %v1946
    %v2027 = vunpack.c.h.b16 %v1946
    %v2028 = vunpack.c.l.b16 %v1947
    %v2029 = vunpack.c.h.b16 %v1947
    %v2030 = vunpack.c.l.b16 %v1948
    %v2031 = vunpack.c.h.b16 %v1948
    %v2032 = vunpack.c.l.b16 %v1949
    %v2033 = vunpack.c.h.b16 %v1949
    %v2034 = vunpack.c.l.b16 %v1950
    %v2035 = vunpack.c.h.b16 %v1950
    %v2036 = vunpack.c.l.b16 %v1951
    %v2037 = vunpack.c.h.b16 %v1951
    %v2038 = vunpack.c.l.b16 %v1952
    %v2039 = vunpack.c.h.b16 %v1952
    %v2040 = vunpack.c.l.b16 %v1953
    %v2041 = vunpack.c.h.b16 %v1953
    %v2042 = vunpack.c.l.b16 %v1954
    %v2043 = vunpack.c.h.b16 %v1954
    %v2044 = vunpack.c.l.b16 %v1955
    %v2045 = vunpack.c.h.b16 %v1955
    %v2046 = vunpack.c.l.b16 %v1956
    %v2047 = vunpack.c.h.b16 %v1956
    %v2048 = vunpack.c.l.b16 %v1957
    %v2049 = vunpack.c.h.b16 %v1957
    %v2050 = vunpack.c.l.b16 %v1958
    %v2051 = vunpack.c.h.b16 %v1958
    %v2052 = vunpack.c.l.b16 %v1959
    %v2053 = vunpack.c.h.b16 %v1959
    %v2054 = vunpack.c.l.b16 %v1960
    %v2055 = vunpack.c.h.b16 %v1960
    %v2056 = vunpack.c.l.b16 %v1961
    %v2057 = vunpack.c.h.b16 %v1961
    %v2058 = vunpack.c.l.b16 %v1962
    %v2059 = vunpack.c.h.b16 %v1962
    %v2060 = vunpack.c.l.b16 %v1963
    %v2061 = vunpack.c.h.b16 %v1963
    %v2062 = vunpack.c.l.b16 %v1964
    %v2063 = vunpack.c.h.b16 %v1964
    %v2064 = vunpack.c.l.b16 %v1965
    %v2065 = vunpack.c.h.b16 %v1965
    %v2066 = vunpack.c.l.b16 %v1966
    %v2067 = vunpack.c.h.b16 %v1966
    %v2068 = vunpack.c.l.b16 %v1967
    %v2069 = vunpack.c.h.b16 %v1967
    %v2070 = vunpack.c.l.b16 %v1968
    %v2071 = vunpack.c.h.b16 %v1968
    %v2072 = vunpack.c.l.b16 %v1969
    %v2073 = vunpack.c.h.b16 %v1969
    %v2074 = vpack.c.b16 %v2012, %v2010
    %v2075 = vpack.c.b16 %v2013, %v2011
    %v2076 = vpack.c.b16 %v2016, %v2014
    %v2077 = vpack.c.b16 %v2017, %v2015
    %v2078 = vpack.c.b16 %v2020, %v2018
    %v2079 = vpack.c.b16 %v2021, %v2019
    %v2080 = vpack.c.b16 %v2024, %v2022
    %v2081 = vpack.c.b16 %v2025, %v2023
    %v2082 = vpack.c.b16 %v2028, %v2026
    %v2083 = vpack.c.b16 %v2029, %v2027
    %v2084 = vpack.c.b16 %v2032, %v2030
    %v2085 = vpack.c.b16 %v2033, %v2031
    %v2086 = vpack.c.b16 %v2036, %v2034
    %v2087 = vpack.c.b16 %v2037, %v2035
    %v2088 = vpack.c.b16 %v2040, %v2038
    %v2089 = vpack.c.b16 %v2041, %v2039
    %v2090 = vpack.c.b16 %v2044, %v2042
    %v2091 = vpack.c.b16 %v2045, %v2043
    %v2092 = vpack.c.b16 %v2048, %v2046
    %v2093 = vpack.c.b16 %v2049, %v2047
    %v2094 = vpack.c.b16 %v2052, %v2050
    %v2095 = vpack.c.b16 %v2053, %v2051
    %v2096 = vpack.c.b16 %v2056, %v2054
    %v2097 = vpack.c.b16 %v2057, %v2055
    %v2098 = vpack.c.b16 %v2060, %v2058
    %v2099 = vpack.c.b16 %v2061, %v2059
    %v2100 = vpack.c.b16 %v2064, %v2062
    %v2101 = vpack.c.b16 %v2065, %v2063
    %v2102 = vpack.c.b16 %v2068, %v2066
    %v2103 = vpack.c.b16 %v2069, %v2067
    %v2104 = vpack.c.b16 %v2072, %v2070
    %v2105 = vpack.c.b16 %v2073, %v2071
    %2138 = vmatpush.bf16.msra.mxu0 %v2088
    %2139 = vmatpush.bf16.msra.mxu0 %v2086
    %2140 = vmatpush.bf16.msra.mxu0 %v2084
    %2141 = vmatpush.bf16.msra.mxu0 %v2082
    %2142 = vmatpush.bf16.msra.mxu0 %v2080
    %2143 = vmatpush.bf16.msra.mxu0 %v2078
    %2144 = vmatpush.bf16.msra.mxu0 %v2076
    %2145 = vmatpush.bf16.msra.mxu0 %v2074
    %2146 = vmatmul.bf16.gmra.mxu0 %v1970
    %v2147 = vpop.f32.mrf.mxu0
    %v2148 = vadd.f32 %v1974, %v2147
    %v2149 = vpop.f32.mrf.mxu0
    %2150 = vdwg.mxu0
    %2151 = vmatpush.bf16.msra.mxu0 %v2104
    %2152 = vmatpush.bf16.msra.mxu0 %v2102
    %2153 = vmatpush.bf16.msra.mxu0 %v2100
    %2154 = vmatpush.bf16.msra.mxu0 %v2098
    %2155 = vmatpush.bf16.msra.mxu0 %v2096
    %2156 = vmatpush.bf16.msra.mxu0 %v2094
    %2157 = vmatpush.bf16.msra.mxu0 %v2092
    %2158 = vmatpush.bf16.msra.mxu0 %v2090
    %2159 = vmatmul.bf16.gmra.mxu0 %v1971
    %v2160 = vpop.f32.mrf.mxu0
    %v2161 = vadd.f32 %v2148, %v2160
    %v2162 = vpop.f32.mrf.mxu0
    %2163 = vdwg.mxu0
    %2164 = vmatpush.bf16.msra.mxu0 %v2089
    %2165 = vmatpush.bf16.msra.mxu0 %v2087
    %2166 = vmatpush.bf16.msra.mxu0 %v2085
    %2167 = vmatpush.bf16.msra.mxu0 %v2083
    %2168 = vmatpush.bf16.msra.mxu0 %v2081
    %2169 = vmatpush.bf16.msra.mxu0 %v2079
    %2170 = vmatpush.bf16.msra.mxu0 %v2077
    %2171 = vmatpush.bf16.msra.mxu0 %v2075
    %2172 = vmatmul.bf16.gmra.mxu0 %v1970
    %v2173 = vpop.f32.mrf.mxu0
    %v2174 = vadd.f32 %v1975, %v2173
    %v2175 = vpop.f32.mrf.mxu0
    %2176 = vdwg.mxu0
    %2177 = vmatpush.bf16.msra.mxu0 %v2105
    %2178 = vmatpush.bf16.msra.mxu0 %v2103
    %2179 = vmatpush.bf16.msra.mxu0 %v2101
    %2180 = vmatpush.bf16.msra.mxu0 %v2099
    %2181 = vmatpush.bf16.msra.mxu0 %v2097
    %2182 = vmatpush.bf16.msra.mxu0 %v2095
    %2183 = vmatpush.bf16.msra.mxu0 %v2093
    %2184 = vmatpush.bf16.msra.mxu0 %v2091
    %2185 = vmatmul.bf16.gmra.mxu0 %v1971
    %v2186 = vpop.f32.mrf.mxu0
    %v2187 = vadd.f32 %v2174, %v2186
    %v2188 = vpop.f32.mrf.mxu0
    %2189 = vdwg.mxu0
    %v2190 = vmax.f32 %v2161, 0.0
    %v2191 = vmax.f32 %v2187, 0.0
    %v2192 = vld [vmem:[#allocation23] sm:$0xff]
    %v2193 = vld [vmem:[#allocation23 + $0x8] sm:$0xff]
    %v2194 = vld [vmem:[#allocation23 + $0x10] sm:$0xff]
    %v2195 = vld [vmem:[#allocation23 + $0x18] sm:$0xff]
    %v2196 = vld [vmem:[#allocation23 + $0x20] sm:$0xff]
    %v2197 = vld [vmem:[#allocation23 + $0x28] sm:$0xff]
    %v2198 = vld [vmem:[#allocation23 + $0x30] sm:$0xff]
    %v2199 = vld [vmem:[#allocation23 + $0x38] sm:$0xff]
    %v2200 = vld [vmem:[#allocation23 + $0x40] sm:$0xff]
    %v2201 = vld [vmem:[#allocation23 + $0x48] sm:$0xff]
    %v2202 = vld [vmem:[#allocation23 + $0x50] sm:$0xff]
    %v2203 = vld [vmem:[#allocation23 + $0x58] sm:$0xff]
    %v2204 = vld [vmem:[#allocation23 + $0x60] sm:$0xff]
    %v2205 = vld [vmem:[#allocation23 + $0x68] sm:$0xff]
    %v2206 = vld [vmem:[#allocation23 + $0x70] sm:$0xff]
    %v2207 = vld [vmem:[#allocation23 + $0x78] sm:$0xff]
    %v2208 = vld [vmem:[#allocation23 + $0x80] sm:$0xff]
    %v2209 = vld [vmem:[#allocation23 + $0x88] sm:$0xff]
    %v2210 = vld [vmem:[#allocation23 + $0x90] sm:$0xff]
    %v2211 = vld [vmem:[#allocation23 + $0x98] sm:$0xff]
    %v2212 = vld [vmem:[#allocation23 + $0xa0] sm:$0xff]
    %v2213 = vld [vmem:[#allocation23 + $0xa8] sm:$0xff]
    %v2214 = vld [vmem:[#allocation23 + $0xb0] sm:$0xff]
    %v2215 = vld [vmem:[#allocation23 + $0xb8] sm:$0xff]
    %v2216 = vld [vmem:[#allocation23 + $0xc0] sm:$0xff]
    %v2217 = vld [vmem:[#allocation23 + $0xc8] sm:$0xff]
    %v2218 = vld [vmem:[#allocation23 + $0xd0] sm:$0xff]
    %v2219 = vld [vmem:[#allocation23 + $0xd8] sm:$0xff]
    %v2220 = vld [vmem:[#allocation23 + $0xe0] sm:$0xff]
    %v2221 = vld [vmem:[#allocation23 + $0xe8] sm:$0xff]
    %v2222 = vld [vmem:[#allocation23 + $0xf0] sm:$0xff]
    %v2223 = vld [vmem:[#allocation23 + $0xf8] sm:$0xff]
    %v2224 = vpack.c.bf16 %v2190, %v2190
    %v2225 = vpack.c.bf16 %v2191, %v2191
    %v2226 = vld [vmem:[%s18] sm:$0x3]
    %v2228 = vperm.slane %v2226, 0
    %v2229 = vperm.slane %v2226, 1
    %v2264 = vunpack.c.l.b16 %v2192
    %v2265 = vunpack.c.h.b16 %v2192
    %v2266 = vunpack.c.l.b16 %v2193
    %v2267 = vunpack.c.h.b16 %v2193
    %v2268 = vunpack.c.l.b16 %v2194
    %v2269 = vunpack.c.h.b16 %v2194
    %v2270 = vunpack.c.l.b16 %v2195
    %v2271 = vunpack.c.h.b16 %v2195
    %v2272 = vunpack.c.l.b16 %v2196
    %v2273 = vunpack.c.h.b16 %v2196
    %v2274 = vunpack.c.l.b16 %v2197
    %v2275 = vunpack.c.h.b16 %v2197
    %v2276 = vunpack.c.l.b16 %v2198
    %v2277 = vunpack.c.h.b16 %v2198
    %v2278 = vunpack.c.l.b16 %v2199
    %v2279 = vunpack.c.h.b16 %v2199
    %v2280 = vunpack.c.l.b16 %v2200
    %v2281 = vunpack.c.h.b16 %v2200
    %v2282 = vunpack.c.l.b16 %v2201
    %v2283 = vunpack.c.h.b16 %v2201
    %v2284 = vunpack.c.l.b16 %v2202
    %v2285 = vunpack.c.h.b16 %v2202
    %v2286 = vunpack.c.l.b16 %v2203
    %v2287 = vunpack.c.h.b16 %v2203
    %v2288 = vunpack.c.l.b16 %v2204
    %v2289 = vunpack.c.h.b16 %v2204
    %v2290 = vunpack.c.l.b16 %v2205
    %v2291 = vunpack.c.h.b16 %v2205
    %v2292 = vunpack.c.l.b16 %v2206
    %v2293 = vunpack.c.h.b16 %v2206
    %v2294 = vunpack.c.l.b16 %v2207
    %v2295 = vunpack.c.h.b16 %v2207
    %v2296 = vunpack.c.l.b16 %v2208
    %v2297 = vunpack.c.h.b16 %v2208
    %v2298 = vunpack.c.l.b16 %v2209
    %v2299 = vunpack.c.h.b16 %v2209
    %v2300 = vunpack.c.l.b16 %v2210
    %v2301 = vunpack.c.h.b16 %v2210
    %v2302 = vunpack.c.l.b16 %v2211
    %v2303 = vunpack.c.h.b16 %v2211
    %v2304 = vunpack.c.l.b16 %v2212
    %v2305 = vunpack.c.h.b16 %v2212
    %v2306 = vunpack.c.l.b16 %v2213
    %v2307 = vunpack.c.h.b16 %v2213
    %v2308 = vunpack.c.l.b16 %v2214
    %v2309 = vunpack.c.h.b16 %v2214
    %v2310 = vunpack.c.l.b16 %v2215
    %v2311 = vunpack.c.h.b16 %v2215
    %v2312 = vunpack.c.l.b16 %v2216
    %v2313 = vunpack.c.h.b16 %v2216
    %v2314 = vunpack.c.l.b16 %v2217
    %v2315 = vunpack.c.h.b16 %v2217
    %v2316 = vunpack.c.l.b16 %v2218
    %v2317 = vunpack.c.h.b16 %v2218
    %v2318 = vunpack.c.l.b16 %v2219
    %v2319 = vunpack.c.h.b16 %v2219
    %v2320 = vunpack.c.l.b16 %v2220
    %v2321 = vunpack.c.h.b16 %v2220
    %v2322 = vunpack.c.l.b16 %v2221
    %v2323 = vunpack.c.h.b16 %v2221
    %v2324 = vunpack.c.l.b16 %v2222
    %v2325 = vunpack.c.h.b16 %v2222
    %v2326 = vunpack.c.l.b16 %v2223
    %v2327 = vunpack.c.h.b16 %v2223
    %v2328 = vpack.c.b16 %v2266, %v2264
    %v2329 = vpack.c.b16 %v2267, %v2265
    %v2330 = vpack.c.b16 %v2270, %v2268
    %v2331 = vpack.c.b16 %v2271, %v2269
    %v2332 = vpack.c.b16 %v2274, %v2272
    %v2333 = vpack.c.b16 %v2275, %v2273
    %v2334 = vpack.c.b16 %v2278, %v2276
    %v2335 = vpack.c.b16 %v2279, %v2277
    %v2336 = vpack.c.b16 %v2282, %v2280
    %v2337 = vpack.c.b16 %v2283, %v2281
    %v2338 = vpack.c.b16 %v2286, %v2284
    %v2339 = vpack.c.b16 %v2287, %v2285
    %v2340 = vpack.c.b16 %v2290, %v2288
    %v2341 = vpack.c.b16 %v2291, %v2289
    %v2342 = vpack.c.b16 %v2294, %v2292
    %v2343 = vpack.c.b16 %v2295, %v2293
    %v2344 = vpack.c.b16 %v2298, %v2296
    %v2345 = vpack.c.b16 %v2299, %v2297
    %v2346 = vpack.c.b16 %v2302, %v2300
    %v2347 = vpack.c.b16 %v2303, %v2301
    %v2348 = vpack.c.b16 %v2306, %v2304
    %v2349 = vpack.c.b16 %v2307, %v2305
    %v2350 = vpack.c.b16 %v2310, %v2308
    %v2351 = vpack.c.b16 %v2311, %v2309
    %v2352 = vpack.c.b16 %v2314, %v2312
    %v2353 = vpack.c.b16 %v2315, %v2313
    %v2354 = vpack.c.b16 %v2318, %v2316
    %v2355 = vpack.c.b16 %v2319, %v2317
    %v2356 = vpack.c.b16 %v2322, %v2320
    %v2357 = vpack.c.b16 %v2323, %v2321
    %v2358 = vpack.c.b16 %v2326, %v2324
    %v2359 = vpack.c.b16 %v2327, %v2325
    %2392 = vmatpush.bf16.msra.mxu0 %v2342
    %2393 = vmatpush.bf16.msra.mxu0 %v2340
    %2394 = vmatpush.bf16.msra.mxu0 %v2338
    %2395 = vmatpush.bf16.msra.mxu0 %v2336
    %2396 = vmatpush.bf16.msra.mxu0 %v2334
    %2397 = vmatpush.bf16.msra.mxu0 %v2332
    %2398 = vmatpush.bf16.msra.mxu0 %v2330
    %2399 = vmatpush.bf16.msra.mxu0 %v2328
    %2400 = vmatmul.bf16.gmra.mxu0 %v2224
    %v2401 = vpop.f32.mrf.mxu0
    %v2402 = vadd.f32 %v2228, %v2401
    %v2403 = vpop.f32.mrf.mxu0
    %2404 = vdwg.mxu0
    %2405 = vmatpush.bf16.msra.mxu0 %v2358
    %2406 = vmatpush.bf16.msra.mxu0 %v2356
    %2407 = vmatpush.bf16.msra.mxu0 %v2354
    %2408 = vmatpush.bf16.msra.mxu0 %v2352
    %2409 = vmatpush.bf16.msra.mxu0 %v2350
    %2410 = vmatpush.bf16.msra.mxu0 %v2348
    %2411 = vmatpush.bf16.msra.mxu0 %v2346
    %2412 = vmatpush.bf16.msra.mxu0 %v2344
    %2413 = vmatmul.bf16.gmra.mxu0 %v2225
    %v2414 = vpop.f32.mrf.mxu0
    %v2415 = vadd.f32 %v2402, %v2414
    %v2416 = vpop.f32.mrf.mxu0
    %2417 = vdwg.mxu0
    %2418 = vmatpush.bf16.msra.mxu0 %v2343
    %2419 = vmatpush.bf16.msra.mxu0 %v2341
    %2420 = vmatpush.bf16.msra.mxu0 %v2339
    %2421 = vmatpush.bf16.msra.mxu0 %v2337
    %2422 = vmatpush.bf16.msra.mxu0 %v2335
    %2423 = vmatpush.bf16.msra.mxu0 %v2333
    %2424 = vmatpush.bf16.msra.mxu0 %v2331
    %2425 = vmatpush.bf16.msra.mxu0 %v2329
    %2426 = vmatmul.bf16.gmra.mxu0 %v2224
    %v2427 = vpop.f32.mrf.mxu0
    %v2428 = vadd.f32 %v2229, %v2427
    %v2429 = vpop.f32.mrf.mxu0
    %2430 = vdwg.mxu0
    %2431 = vmatpush.bf16.msra.mxu0 %v2359
    %2432 = vmatpush.bf16.msra.mxu0 %v2357
    %2433 = vmatpush.bf16.msra.mxu0 %v2355
    %2434 = vmatpush.bf16.msra.mxu0 %v2353
    %2435 = vmatpush.bf16.msra.mxu0 %v2351
    %2436 = vmatpush.bf16.msra.mxu0 %v2349
    %2437 = vmatpush.bf16.msra.mxu0 %v2347
    %2438 = vmatpush.bf16.msra.mxu0 %v2345
    %2439 = vmatmul.bf16.gmra.mxu0 %v2225
    %v2440 = vpop.f32.mrf.mxu0
    %v2441 = vadd.f32 %v2428, %v2440
    %v2442 = vpop.f32.mrf.mxu0
    %2443 = vdwg.mxu0
    %v2444 = vmax.f32 %v2415, 0.0
    %v2445 = vmax.f32 %v2441, 0.0
    %v2446 = vld [vmem:[#allocation25] sm:$0xff]
    %v2447 = vld [vmem:[#allocation25 + $0x8] sm:$0xff]
    %v2448 = vld [vmem:[#allocation25 + $0x10] sm:$0xff]
    %v2449 = vld [vmem:[#allocation25 + $0x18] sm:$0xf]
    %v2450 = vld [vmem:[#allocation25 + $0x1c] sm:$0xff]
    %v2451 = vld [vmem:[#allocation25 + $0x24] sm:$0xff]
    %v2452 = vld [vmem:[#allocation25 + $0x2c] sm:$0xff]
    %v2453 = vld [vmem:[#allocation25 + $0x34] sm:$0xf]
    %v2454 = vld [vmem:[#allocation25 + $0x38] sm:$0xff]
    %v2455 = vld [vmem:[#allocation25 + $0x40] sm:$0xff]
    %v2456 = vld [vmem:[#allocation25 + $0x48] sm:$0xff]
    %v2457 = vld [vmem:[#allocation25 + $0x50] sm:$0xf]
    %v2458 = vld [vmem:[#allocation25 + $0x54] sm:$0xff]
    %v2459 = vld [vmem:[#allocation25 + $0x5c] sm:$0xff]
    %v2460 = vld [vmem:[#allocation25 + $0x64] sm:$0xff]
    %v2461 = vld [vmem:[#allocation25 + $0x6c] sm:$0xf]
    %v2462 = vld [vmem:[#allocation25 + $0x70] sm:$0xff]
    %v2463 = vld [vmem:[#allocation25 + $0x78] sm:$0xff]
    %v2464 = vld [vmem:[#allocation25 + $0x80] sm:$0xff]
    %v2465 = vld [vmem:[#allocation25 + $0x88] sm:$0xf]
    %v2466 = vld [vmem:[#allocation25 + $0x8c] sm:$0xff]
    %v2467 = vld [vmem:[#allocation25 + $0x94] sm:$0xff]
    %v2468 = vld [vmem:[#allocation25 + $0x9c] sm:$0xff]
    %v2469 = vld [vmem:[#allocation25 + $0xa4] sm:$0xf]
    %v2470 = vld [vmem:[#allocation25 + $0xa8] sm:$0xff]
    %v2471 = vld [vmem:[#allocation25 + $0xb0] sm:$0xff]
    %v2472 = vld [vmem:[#allocation25 + $0xb8] sm:$0xff]
    %v2473 = vld [vmem:[#allocation25 + $0xc0] sm:$0xf]
    %v2474 = vld [vmem:[#allocation25 + $0xc4] sm:$0xff]
    %v2475 = vld [vmem:[#allocation25 + $0xcc] sm:$0xff]
    %v2476 = vld [vmem:[#allocation25 + $0xd4] sm:$0xff]
    %v2477 = vld [vmem:[#allocation25 + $0xdc] sm:$0xf]
    %v2478 = vld [vmem:[#allocation25 + $0xe0] sm:$0xff]
    %v2479 = vld [vmem:[#allocation25 + $0xe8] sm:$0xff]
    %v2480 = vld [vmem:[#allocation25 + $0xf0] sm:$0xff]
    %v2481 = vld [vmem:[#allocation25 + $0xf8] sm:$0xf]
    %v2482 = vld [vmem:[#allocation25 + $0xfc] sm:$0xff]
    %v2483 = vld [vmem:[#allocation25 + $0x104] sm:$0xff]
    %v2484 = vld [vmem:[#allocation25 + $0x10c] sm:$0xff]
    %v2485 = vld [vmem:[#allocation25 + $0x114] sm:$0xf]
    %v2486 = vld [vmem:[#allocation25 + $0x118] sm:$0xff]
    %v2487 = vld [vmem:[#allocation25 + $0x120] sm:$0xff]
    %v2488 = vld [vmem:[#allocation25 + $0x128] sm:$0xff]
    %v2489 = vld [vmem:[#allocation25 + $0x130] sm:$0xf]
    %v2490 = vld [vmem:[#allocation25 + $0x134] sm:$0xff]
    %v2491 = vld [vmem:[#allocation25 + $0x13c] sm:$0xff]
    %v2492 = vld [vmem:[#allocation25 + $0x144] sm:$0xff]
    %v2493 = vld [vmem:[#allocation25 + $0x14c] sm:$0xf]
    %v2494 = vld [vmem:[#allocation25 + $0x150] sm:$0xff]
    %v2495 = vld [vmem:[#allocation25 + $0x158] sm:$0xff]
    %v2496 = vld [vmem:[#allocation25 + $0x160] sm:$0xff]
    %v2497 = vld [vmem:[#allocation25 + $0x168] sm:$0xf]
    %v2498 = vld [vmem:[#allocation25 + $0x16c] sm:$0xff]
    %v2499 = vld [vmem:[#allocation25 + $0x174] sm:$0xff]
    %v2500 = vld [vmem:[#allocation25 + $0x17c] sm:$0xff]
    %v2501 = vld [vmem:[#allocation25 + $0x184] sm:$0xf]
    %v2502 = vld [vmem:[#allocation25 + $0x188] sm:$0xff]
    %v2503 = vld [vmem:[#allocation25 + $0x190] sm:$0xff]
    %v2504 = vld [vmem:[#allocation25 + $0x198] sm:$0xff]
    %v2505 = vld [vmem:[#allocation25 + $0x1a0] sm:$0xf]
    %v2506 = vld [vmem:[#allocation25 + $0x1a4] sm:$0xff]
    %v2507 = vld [vmem:[#allocation25 + $0x1ac] sm:$0xff]
    %v2508 = vld [vmem:[#allocation25 + $0x1b4] sm:$0xff]
    %v2509 = vld [vmem:[#allocation25 + $0x1bc] sm:$0xf]
    %v2510 = vld [vmem:[#allocation25 + $0x1c0] sm:$0xff]
    %v2511 = vld [vmem:[#allocation25 + $0x1c8] sm:$0xff]
    %v2512 = vld [vmem:[#allocation25 + $0x1d0] sm:$0xff]
    %v2513 = vld [vmem:[#allocation25 + $0x1d8] sm:$0xf]
    %v2514 = vld [vmem:[#allocation25 + $0x1dc] sm:$0xff]
    %v2515 = vld [vmem:[#allocation25 + $0x1e4] sm:$0xff]
    %v2516 = vld [vmem:[#allocation25 + $0x1ec] sm:$0xff]
    %v2517 = vld [vmem:[#allocation25 + $0x1f4] sm:$0xf]
    %v2518 = vld [vmem:[#allocation25 + $0x1f8] sm:$0xff]
    %v2519 = vld [vmem:[#allocation25 + $0x200] sm:$0xff]
    %v2520 = vld [vmem:[#allocation25 + $0x208] sm:$0xff]
    %v2521 = vld [vmem:[#allocation25 + $0x210] sm:$0xf]
    %v2522 = vld [vmem:[#allocation25 + $0x214] sm:$0xff]
    %v2523 = vld [vmem:[#allocation25 + $0x21c] sm:$0xff]
    %v2524 = vld [vmem:[#allocation25 + $0x224] sm:$0xff]
    %v2525 = vld [vmem:[#allocation25 + $0x22c] sm:$0xf]
    %v2526 = vld [vmem:[#allocation25 + $0x230] sm:$0xff]
    %v2527 = vld [vmem:[#allocation25 + $0x238] sm:$0xff]
    %v2528 = vld [vmem:[#allocation25 + $0x240] sm:$0xff]
    %v2529 = vld [vmem:[#allocation25 + $0x248] sm:$0xf]
    %v2530 = vld [vmem:[#allocation25 + $0x24c] sm:$0xff]
    %v2531 = vld [vmem:[#allocation25 + $0x254] sm:$0xff]
    %v2532 = vld [vmem:[#allocation25 + $0x25c] sm:$0xff]
    %v2533 = vld [vmem:[#allocation25 + $0x264] sm:$0xf]
    %v2534 = vld [vmem:[#allocation25 + $0x268] sm:$0xff]
    %v2535 = vld [vmem:[#allocation25 + $0x270] sm:$0xff]
    %v2536 = vld [vmem:[#allocation25 + $0x278] sm:$0xff]
    %v2537 = vld [vmem:[#allocation25 + $0x280] sm:$0xf]
    %v2538 = vld [vmem:[#allocation25 + $0x284] sm:$0xff]
    %v2539 = vld [vmem:[#allocation25 + $0x28c] sm:$0xff]
    %v2540 = vld [vmem:[#allocation25 + $0x294] sm:$0xff]
    %v2541 = vld [vmem:[#allocation25 + $0x29c] sm:$0xf]
    %v2542 = vld [vmem:[#allocation25 + $0x2a0] sm:$0xff]
    %v2543 = vld [vmem:[#allocation25 + $0x2a8] sm:$0xff]
    %v2544 = vld [vmem:[#allocation25 + $0x2b0] sm:$0xff]
    %v2545 = vld [vmem:[#allocation25 + $0x2b8] sm:$0xf]
    %v2546 = vld [vmem:[#allocation25 + $0x2bc] sm:$0xff]
    %v2547 = vld [vmem:[#allocation25 + $0x2c4] sm:$0xff]
    %v2548 = vld [vmem:[#allocation25 + $0x2cc] sm:$0xff]
    %v2549 = vld [vmem:[#allocation25 + $0x2d4] sm:$0xf]
    %v2550 = vld [vmem:[#allocation25 + $0x2d8] sm:$0xff]
    %v2551 = vld [vmem:[#allocation25 + $0x2e0] sm:$0xff]
    %v2552 = vld [vmem:[#allocation25 + $0x2e8] sm:$0xff]
    %v2553 = vld [vmem:[#allocation25 + $0x2f0] sm:$0xf]
    %v2554 = vld [vmem:[#allocation25 + $0x2f4] sm:$0xff]
    %v2555 = vld [vmem:[#allocation25 + $0x2fc] sm:$0xff]
    %v2556 = vld [vmem:[#allocation25 + $0x304] sm:$0xff]
    %v2557 = vld [vmem:[#allocation25 + $0x30c] sm:$0xf]
    %v2558 = vld [vmem:[#allocation25 + $0x310] sm:$0xff]
    %v2559 = vld [vmem:[#allocation25 + $0x318] sm:$0xff]
    %v2560 = vld [vmem:[#allocation25 + $0x320] sm:$0xff]
    %v2561 = vld [vmem:[#allocation25 + $0x328] sm:$0xf]
    %v2562 = vld [vmem:[#allocation25 + $0x32c] sm:$0xff]
    %v2563 = vld [vmem:[#allocation25 + $0x334] sm:$0xff]
    %v2564 = vld [vmem:[#allocation25 + $0x33c] sm:$0xff]
    %v2565 = vld [vmem:[#allocation25 + $0x344] sm:$0xf]
    %v2566 = vld [vmem:[#allocation25 + $0x348] sm:$0xff]
    %v2567 = vld [vmem:[#allocation25 + $0x350] sm:$0xff]
    %v2568 = vld [vmem:[#allocation25 + $0x358] sm:$0xff]
    %v2569 = vld [vmem:[#allocation25 + $0x360] sm:$0xf]
    %v2570 = vld [vmem:[#allocation25 + $0x364] sm:$0xff]
    %v2571 = vld [vmem:[#allocation25 + $0x36c] sm:$0xff]
    %v2572 = vld [vmem:[#allocation25 + $0x374] sm:$0xff]
    %v2573 = vld [vmem:[#allocation25 + $0x37c] sm:$0xf]
    %v2574 = vpack.c.bf16 %v2444, %v2444
    %v2575 = vpack.c.bf16 %v2445, %v2445
    %v2576 = vld [vmem:[%s20] sm:$0xff]
    %v2578 = vperm.slane %v2576, 0
    %v2579 = vperm.slane %v2576, 1
    %v2580 = vperm.slane %v2576, 2
    %v2581 = vperm.slane %v2576, 3
    %v2582 = vperm.slane %v2576, 4
    %v2583 = vperm.slane %v2576, 5
    %v2584 = vperm.slane %v2576, 6
    %v2720 = vunpack.c.l.b16 %v2446
    %v2721 = vunpack.c.h.b16 %v2446
    %v2722 = vunpack.c.l.b16 %v2447
    %v2723 = vunpack.c.h.b16 %v2447
    %v2724 = vunpack.c.l.b16 %v2448
    %v2725 = vunpack.c.h.b16 %v2448
    %v2726 = vunpack.c.l.b16 %v2449
    %v2727 = vunpack.c.l.b16 %v2450
    %v2728 = vunpack.c.h.b16 %v2450
    %v2729 = vunpack.c.l.b16 %v2451
    %v2730 = vunpack.c.h.b16 %v2451
    %v2731 = vunpack.c.l.b16 %v2452
    %v2732 = vunpack.c.h.b16 %v2452
    %v2733 = vunpack.c.l.b16 %v2453
    %v2734 = vunpack.c.l.b16 %v2454
    %v2735 = vunpack.c.h.b16 %v2454
    %v2736 = vunpack.c.l.b16 %v2455
    %v2737 = vunpack.c.h.b16 %v2455
    %v2738 = vunpack.c.l.b16 %v2456
    %v2739 = vunpack.c.h.b16 %v2456
    %v2740 = vunpack.c.l.b16 %v2457
    %v2741 = vunpack.c.l.b16 %v2458
    %v2742 = vunpack.c.h.b16 %v2458
    %v2743 = vunpack.c.l.b16 %v2459
    %v2744 = vunpack.c.h.b16 %v2459
    %v2745 = vunpack.c.l.b16 %v2460
    %v2746 = vunpack.c.h.b16 %v2460
    %v2747 = vunpack.c.l.b16 %v2461
    %v2748 = vunpack.c.l.b16 %v2462
    %v2749 = vunpack.c.h.b16 %v2462
    %v2750 = vunpack.c.l.b16 %v2463
    %v2751 = vunpack.c.h.b16 %v2463
    %v2752 = vunpack.c.l.b16 %v2464
    %v2753 = vunpack.c.h.b16 %v2464
    %v2754 = vunpack.c.l.b16 %v2465
    %v2755 = vunpack.c.l.b16 %v2466
    %v2756 = vunpack.c.h.b16 %v2466
    %v2757 = vunpack.c.l.b16 %v2467
    %v2758 = vunpack.c.h.b16 %v2467
    %v2759 = vunpack.c.l.b16 %v2468
    %v2760 = vunpack.c.h.b16 %v2468
    %v2761 = vunpack.c.l.b16 %v2469
    %v2762 = vunpack.c.l.b16 %v2470
    %v2763 = vunpack.c.h.b16 %v2470
    %v2764 = vunpack.c.l.b16 %v2471
    %v2765 = vunpack.c.h.b16 %v2471
    %v2766 = vunpack.c.l.b16 %v2472
    %v2767 = vunpack.c.h.b16 %v2472
    %v2768 = vunpack.c.l.b16 %v2473
    %v2769 = vunpack.c.l.b16 %v2474
    %v2770 = vunpack.c.h.b16 %v2474
    %v2771 = vunpack.c.l.b16 %v2475
    %v2772 = vunpack.c.h.b16 %v2475
    %v2773 = vunpack.c.l.b16 %v2476
    %v2774 = vunpack.c.h.b16 %v2476
    %v2775 = vunpack.c.l.b16 %v2477
    %v2776 = vunpack.c.l.b16 %v2478
    %v2777 = vunpack.c.h.b16 %v2478
    %v2778 = vunpack.c.l.b16 %v2479
    %v2779 = vunpack.c.h.b16 %v2479
    %v2780 = vunpack.c.l.b16 %v2480
    %v2781 = vunpack.c.h.b16 %v2480
    %v2782 = vunpack.c.l.b16 %v2481
    %v2783 = vunpack.c.l.b16 %v2482
    %v2784 = vunpack.c.h.b16 %v2482
    %v2785 = vunpack.c.l.b16 %v2483
    %v2786 = vunpack.c.h.b16 %v2483
    %v2787 = vunpack.c.l.b16 %v2484
    %v2788 = vunpack.c.h.b16 %v2484
    %v2789 = vunpack.c.l.b16 %v2485
    %v2790 = vunpack.c.l.b16 %v2486
    %v2791 = vunpack.c.h.b16 %v2486
    %v2792 = vunpack.c.l.b16 %v2487
    %v2793 = vunpack.c.h.b16 %v2487
    %v2794 = vunpack.c.l.b16 %v2488
    %v2795 = vunpack.c.h.b16 %v2488
    %v2796 = vunpack.c.l.b16 %v2489
    %v2797 = vunpack.c.l.b16 %v2490
    %v2798 = vunpack.c.h.b16 %v2490
    %v2799 = vunpack.c.l.b16 %v2491
    %v2800 = vunpack.c.h.b16 %v2491
    %v2801 = vunpack.c.l.b16 %v2492
    %v2802 = vunpack.c.h.b16 %v2492
    %v2803 = vunpack.c.l.b16 %v2493
    %v2804 = vunpack.c.l.b16 %v2494
    %v2805 = vunpack.c.h.b16 %v2494
    %v2806 = vunpack.c.l.b16 %v2495
    %v2807 = vunpack.c.h.b16 %v2495
    %v2808 = vunpack.c.l.b16 %v2496
    %v2809 = vunpack.c.h.b16 %v2496
    %v2810 = vunpack.c.l.b16 %v2497
    %v2811 = vunpack.c.l.b16 %v2498
    %v2812 = vunpack.c.h.b16 %v2498
    %v2813 = vunpack.c.l.b16 %v2499
    %v2814 = vunpack.c.h.b16 %v2499
    %v2815 = vunpack.c.l.b16 %v2500
    %v2816 = vunpack.c.h.b16 %v2500
    %v2817 = vunpack.c.l.b16 %v2501
    %v2818 = vunpack.c.l.b16 %v2502
    %v2819 = vunpack.c.h.b16 %v2502
    %v2820 = vunpack.c.l.b16 %v2503
    %v2821 = vunpack.c.h.b16 %v2503
    %v2822 = vunpack.c.l.b16 %v2504
    %v2823 = vunpack.c.h.b16 %v2504
    %v2824 = vunpack.c.l.b16 %v2505
    %v2825 = vunpack.c.l.b16 %v2506
    %v2826 = vunpack.c.h.b16 %v2506
    %v2827 = vunpack.c.l.b16 %v2507
    %v2828 = vunpack.c.h.b16 %v2507
    %v2829 = vunpack.c.l.b16 %v2508
    %v2830 = vunpack.c.h.b16 %v2508
    %v2831 = vunpack.c.l.b16 %v2509
    %v2832 = vunpack.c.l.b16 %v2510
    %v2833 = vunpack.c.h.b16 %v2510
    %v2834 = vunpack.c.l.b16 %v2511
    %v2835 = vunpack.c.h.b16 %v2511
    %v2836 = vunpack.c.l.b16 %v2512
    %v2837 = vunpack.c.h.b16 %v2512
    %v2838 = vunpack.c.l.b16 %v2513
    %v2839 = vunpack.c.l.b16 %v2514
    %v2840 = vunpack.c.h.b16 %v2514
    %v2841 = vunpack.c.l.b16 %v2515
    %v2842 = vunpack.c.h.b16 %v2515
    %v2843 = vunpack.c.l.b16 %v2516
    %v2844 = vunpack.c.h.b16 %v2516
    %v2845 = vunpack.c.l.b16 %v2517
    %v2846 = vunpack.c.l.b16 %v2518
    %v2847 = vunpack.c.h.b16 %v2518
    %v2848 = vunpack.c.l.b16 %v2519
    %v2849 = vunpack.c.h.b16 %v2519
    %v2850 = vunpack.c.l.b16 %v2520
    %v2851 = vunpack.c.h.b16 %v2520
    %v2852 = vunpack.c.l.b16 %v2521
    %v2853 = vunpack.c.l.b16 %v2522
    %v2854 = vunpack.c.h.b16 %v2522
    %v2855 = vunpack.c.l.b16 %v2523
    %v2856 = vunpack.c.h.b16 %v2523
    %v2857 = vunpack.c.l.b16 %v2524
    %v2858 = vunpack.c.h.b16 %v2524
    %v2859 = vunpack.c.l.b16 %v2525
    %v2860 = vunpack.c.l.b16 %v2526
    %v2861 = vunpack.c.h.b16 %v2526
    %v2862 = vunpack.c.l.b16 %v2527
    %v2863 = vunpack.c.h.b16 %v2527
    %v2864 = vunpack.c.l.b16 %v2528
    %v2865 = vunpack.c.h.b16 %v2528
    %v2866 = vunpack.c.l.b16 %v2529
    %v2867 = vunpack.c.l.b16 %v2530
    %v2868 = vunpack.c.h.b16 %v2530
    %v2869 = vunpack.c.l.b16 %v2531
    %v2870 = vunpack.c.h.b16 %v2531
    %v2871 = vunpack.c.l.b16 %v2532
    %v2872 = vunpack.c.h.b16 %v2532
    %v2873 = vunpack.c.l.b16 %v2533
    %v2874 = vunpack.c.l.b16 %v2534
    %v2875 = vunpack.c.h.b16 %v2534
    %v2876 = vunpack.c.l.b16 %v2535
    %v2877 = vunpack.c.h.b16 %v2535
    %v2878 = vunpack.c.l.b16 %v2536
    %v2879 = vunpack.c.h.b16 %v2536
    %v2880 = vunpack.c.l.b16 %v2537
    %v2881 = vunpack.c.l.b16 %v2538
    %v2882 = vunpack.c.h.b16 %v2538
    %v2883 = vunpack.c.l.b16 %v2539
    %v2884 = vunpack.c.h.b16 %v2539
    %v2885 = vunpack.c.l.b16 %v2540
    %v2886 = vunpack.c.h.b16 %v2540
    %v2887 = vunpack.c.l.b16 %v2541
    %v2888 = vunpack.c.l.b16 %v2542
    %v2889 = vunpack.c.h.b16 %v2542
    %v2890 = vunpack.c.l.b16 %v2543
    %v2891 = vunpack.c.h.b16 %v2543
    %v2892 = vunpack.c.l.b16 %v2544
    %v2893 = vunpack.c.h.b16 %v2544
    %v2894 = vunpack.c.l.b16 %v2545
    %v2895 = vunpack.c.l.b16 %v2546
    %v2896 = vunpack.c.h.b16 %v2546
    %v2897 = vunpack.c.l.b16 %v2547
    %v2898 = vunpack.c.h.b16 %v2547
    %v2899 = vunpack.c.l.b16 %v2548
    %v2900 = vunpack.c.h.b16 %v2548
    %v2901 = vunpack.c.l.b16 %v2549
    %v2902 = vunpack.c.l.b16 %v2550
    %v2903 = vunpack.c.h.b16 %v2550
    %v2904 = vunpack.c.l.b16 %v2551
    %v2905 = vunpack.c.h.b16 %v2551
    %v2906 = vunpack.c.l.b16 %v2552
    %v2907 = vunpack.c.h.b16 %v2552
    %v2908 = vunpack.c.l.b16 %v2553
    %v2909 = vunpack.c.l.b16 %v2554
    %v2910 = vunpack.c.h.b16 %v2554
    %v2911 = vunpack.c.l.b16 %v2555
    %v2912 = vunpack.c.h.b16 %v2555
    %v2913 = vunpack.c.l.b16 %v2556
    %v2914 = vunpack.c.h.b16 %v2556
    %v2915 = vunpack.c.l.b16 %v2557
    %v2916 = vunpack.c.l.b16 %v2558
    %v2917 = vunpack.c.h.b16 %v2558
    %v2918 = vunpack.c.l.b16 %v2559
    %v2919 = vunpack.c.h.b16 %v2559
    %v2920 = vunpack.c.l.b16 %v2560
    %v2921 = vunpack.c.h.b16 %v2560
    %v2922 = vunpack.c.l.b16 %v2561
    %v2923 = vunpack.c.l.b16 %v2562
    %v2924 = vunpack.c.h.b16 %v2562
    %v2925 = vunpack.c.l.b16 %v2563
    %v2926 = vunpack.c.h.b16 %v2563
    %v2927 = vunpack.c.l.b16 %v2564
    %v2928 = vunpack.c.h.b16 %v2564
    %v2929 = vunpack.c.l.b16 %v2565
    %v2930 = vunpack.c.l.b16 %v2566
    %v2931 = vunpack.c.h.b16 %v2566
    %v2932 = vunpack.c.l.b16 %v2567
    %v2933 = vunpack.c.h.b16 %v2567
    %v2934 = vunpack.c.l.b16 %v2568
    %v2935 = vunpack.c.h.b16 %v2568
    %v2936 = vunpack.c.l.b16 %v2569
    %v2937 = vunpack.c.l.b16 %v2570
    %v2938 = vunpack.c.h.b16 %v2570
    %v2939 = vunpack.c.l.b16 %v2571
    %v2940 = vunpack.c.h.b16 %v2571
    %v2941 = vunpack.c.l.b16 %v2572
    %v2942 = vunpack.c.h.b16 %v2572
    %v2943 = vunpack.c.l.b16 %v2573
    %v2944 = vpack.c.b16 %v2727, %v2720
    %v2945 = vpack.c.b16 %v2728, %v2721
    %v2946 = vpack.c.b16 %v2729, %v2722
    %v2947 = vpack.c.b16 %v2730, %v2723
    %v2948 = vpack.c.b16 %v2731, %v2724
    %v2949 = vpack.c.b16 %v2732, %v2725
    %v2950 = vpack.c.b16 %v2733, %v2726
    %v2951 = vpack.c.b16 %v2741, %v2734
    %v2952 = vpack.c.b16 %v2742, %v2735
    %v2953 = vpack.c.b16 %v2743, %v2736
    %v2954 = vpack.c.b16 %v2744, %v2737
    %v2955 = vpack.c.b16 %v2745, %v2738
    %v2956 = vpack.c.b16 %v2746, %v2739
    %v2957 = vpack.c.b16 %v2747, %v2740
    %v2958 = vpack.c.b16 %v2755, %v2748
    %v2959 = vpack.c.b16 %v2756, %v2749
    %v2960 = vpack.c.b16 %v2757, %v2750
    %v2961 = vpack.c.b16 %v2758, %v2751
    %v2962 = vpack.c.b16 %v2759, %v2752
    %v2963 = vpack.c.b16 %v2760, %v2753
    %v2964 = vpack.c.b16 %v2761, %v2754
    %v2965 = vpack.c.b16 %v2769, %v2762
    %v2966 = vpack.c.b16 %v2770, %v2763
    %v2967 = vpack.c.b16 %v2771, %v2764
    %v2968 = vpack.c.b16 %v2772, %v2765
    %v2969 = vpack.c.b16 %v2773, %v2766
    %v2970 = vpack.c.b16 %v2774, %v2767
    %v2971 = vpack.c.b16 %v2775, %v2768
    %v2972 = vpack.c.b16 %v2783, %v2776
    %v2973 = vpack.c.b16 %v2784, %v2777
    %v2974 = vpack.c.b16 %v2785, %v2778
    %v2975 = vpack.c.b16 %v2786, %v2779
    %v2976 = vpack.c.b16 %v2787, %v2780
    %v2977 = vpack.c.b16 %v2788, %v2781
    %v2978 = vpack.c.b16 %v2789, %v2782
    %v2979 = vpack.c.b16 %v2797, %v2790
    %v2980 = vpack.c.b16 %v2798, %v2791
    %v2981 = vpack.c.b16 %v2799, %v2792
    %v2982 = vpack.c.b16 %v2800, %v2793
    %v2983 = vpack.c.b16 %v2801, %v2794
    %v2984 = vpack.c.b16 %v2802, %v2795
    %v2985 = vpack.c.b16 %v2803, %v2796
    %v2986 = vpack.c.b16 %v2811, %v2804
    %v2987 = vpack.c.b16 %v2812, %v2805
    %v2988 = vpack.c.b16 %v2813, %v2806
    %v2989 = vpack.c.b16 %v2814, %v2807
    %v2990 = vpack.c.b16 %v2815, %v2808
    %v2991 = vpack.c.b16 %v2816, %v2809
    %v2992 = vpack.c.b16 %v2817, %v2810
    %v2993 = vpack.c.b16 %v2825, %v2818
    %v2994 = vpack.c.b16 %v2826, %v2819
    %v2995 = vpack.c.b16 %v2827, %v2820
    %v2996 = vpack.c.b16 %v2828, %v2821
    %v2997 = vpack.c.b16 %v2829, %v2822
    %v2998 = vpack.c.b16 %v2830, %v2823
    %v2999 = vpack.c.b16 %v2831, %v2824
    %v3000 = vpack.c.b16 %v2839, %v2832
    %v3001 = vpack.c.b16 %v2840, %v2833
    %v3002 = vpack.c.b16 %v2841, %v2834
    %v3003 = vpack.c.b16 %v2842, %v2835
    %v3004 = vpack.c.b16 %v2843, %v2836
    %v3005 = vpack.c.b16 %v2844, %v2837
    %v3006 = vpack.c.b16 %v2845, %v2838
    %v3007 = vpack.c.b16 %v2853, %v2846
    %v3008 = vpack.c.b16 %v2854, %v2847
    %v3009 = vpack.c.b16 %v2855, %v2848
    %v3010 = vpack.c.b16 %v2856, %v2849
    %v3011 = vpack.c.b16 %v2857, %v2850
    %v3012 = vpack.c.b16 %v2858, %v2851
    %v3013 = vpack.c.b16 %v2859, %v2852
    %v3014 = vpack.c.b16 %v2867, %v2860
    %v3015 = vpack.c.b16 %v2868, %v2861
    %v3016 = vpack.c.b16 %v2869, %v2862
    %v3017 = vpack.c.b16 %v2870, %v2863
    %v3018 = vpack.c.b16 %v2871, %v2864
    %v3019 = vpack.c.b16 %v2872, %v2865
    %v3020 = vpack.c.b16 %v2873, %v2866
    %v3021 = vpack.c.b16 %v2881, %v2874
    %v3022 = vpack.c.b16 %v2882, %v2875
    %v3023 = vpack.c.b16 %v2883, %v2876
    %v3024 = vpack.c.b16 %v2884, %v2877
    %v3025 = vpack.c.b16 %v2885, %v2878
    %v3026 = vpack.c.b16 %v2886, %v2879
    %v3027 = vpack.c.b16 %v2887, %v2880
    %v3028 = vpack.c.b16 %v2895, %v2888
    %v3029 = vpack.c.b16 %v2896, %v2889
    %v3030 = vpack.c.b16 %v2897, %v2890
    %v3031 = vpack.c.b16 %v2898, %v2891
    %v3032 = vpack.c.b16 %v2899, %v2892
    %v3033 = vpack.c.b16 %v2900, %v2893
    %v3034 = vpack.c.b16 %v2901, %v2894
    %v3035 = vpack.c.b16 %v2909, %v2902
    %v3036 = vpack.c.b16 %v2910, %v2903
    %v3037 = vpack.c.b16 %v2911, %v2904
    %v3038 = vpack.c.b16 %v2912, %v2905
    %v3039 = vpack.c.b16 %v2913, %v2906
    %v3040 = vpack.c.b16 %v2914, %v2907
    %v3041 = vpack.c.b16 %v2915, %v2908
    %v3042 = vpack.c.b16 %v2923, %v2916
    %v3043 = vpack.c.b16 %v2924, %v2917
    %v3044 = vpack.c.b16 %v2925, %v2918
    %v3045 = vpack.c.b16 %v2926, %v2919
    %v3046 = vpack.c.b16 %v2927, %v2920
    %v3047 = vpack.c.b16 %v2928, %v2921
    %v3048 = vpack.c.b16 %v2929, %v2922
    %v3049 = vpack.c.b16 %v2937, %v2930
    %v3050 = vpack.c.b16 %v2938, %v2931
    %v3051 = vpack.c.b16 %v2939, %v2932
    %v3052 = vpack.c.b16 %v2940, %v2933
    %v3053 = vpack.c.b16 %v2941, %v2934
    %v3054 = vpack.c.b16 %v2942, %v2935
    %v3055 = vpack.c.b16 %v2943, %v2936
    %3168 = vmatpush.bf16.msra.mxu0 %v2993
    %3169 = vmatpush.bf16.msra.mxu0 %v2986
    %3170 = vmatpush.bf16.msra.mxu0 %v2979
    %3171 = vmatpush.bf16.msra.mxu0 %v2972
    %3172 = vmatpush.bf16.msra.mxu0 %v2965
    %3173 = vmatpush.bf16.msra.mxu0 %v2958
    %3174 = vmatpush.bf16.msra.mxu0 %v2951
    %3175 = vmatpush.bf16.msra.mxu0 %v2944
    %3176 = vmatmul.bf16.gmra.mxu0 %v2574
    %v3177 = vpop.f32.mrf.mxu0
    %v3178 = vadd.f32 %v2578, %v3177
    %v3179 = vpop.f32.mrf.mxu0
    %3180 = vdwg.mxu0
    %3181 = vmatpush.bf16.msra.mxu0 %v3049
    %3182 = vmatpush.bf16.msra.mxu0 %v3042
    %3183 = vmatpush.bf16.msra.mxu0 %v3035
    %3184 = vmatpush.bf16.msra.mxu0 %v3028
    %3185 = vmatpush.bf16.msra.mxu0 %v3021
    %3186 = vmatpush.bf16.msra.mxu0 %v3014
    %3187 = vmatpush.bf16.msra.mxu0 %v3007
    %3188 = vmatpush.bf16.msra.mxu0 %v3000
    %3189 = vmatmul.bf16.gmra.mxu0 %v2575
    %v3190 = vpop.f32.mrf.mxu0
    %v3191 = vadd.f32 %v3178, %v3190
    %v3192 = vpop.f32.mrf.mxu0
    %3193 = vdwg.mxu0
    %3194 = vmatpush.bf16.msra.mxu0 %v2994
    %3195 = vmatpush.bf16.msra.mxu0 %v2987
    %3196 = vmatpush.bf16.msra.mxu0 %v2980
    %3197 = vmatpush.bf16.msra.mxu0 %v2973
    %3198 = vmatpush.bf16.msra.mxu0 %v2966
    %3199 = vmatpush.bf16.msra.mxu0 %v2959
    %3200 = vmatpush.bf16.msra.mxu0 %v2952
    %3201 = vmatpush.bf16.msra.mxu0 %v2945
    %3202 = vmatmul.bf16.gmra.mxu0 %v2574
    %v3203 = vpop.f32.mrf.mxu0
    %v3204 = vadd.f32 %v2579, %v3203
    %v3205 = vpop.f32.mrf.mxu0
    %3206 = vdwg.mxu0
    %3207 = vmatpush.bf16.msra.mxu0 %v3050
    %3208 = vmatpush.bf16.msra.mxu0 %v3043
    %3209 = vmatpush.bf16.msra.mxu0 %v3036
    %3210 = vmatpush.bf16.msra.mxu0 %v3029
    %3211 = vmatpush.bf16.msra.mxu0 %v3022
    %3212 = vmatpush.bf16.msra.mxu0 %v3015
    %3213 = vmatpush.bf16.msra.mxu0 %v3008
    %3214 = vmatpush.bf16.msra.mxu0 %v3001
    %3215 = vmatmul.bf16.gmra.mxu0 %v2575
    %v3216 = vpop.f32.mrf.mxu0
    %v3217 = vadd.f32 %v3204, %v3216
    %v3218 = vpop.f32.mrf.mxu0
    %3219 = vdwg.mxu0
    %3220 = vmatpush.bf16.msra.mxu0 %v2995
    %3221 = vmatpush.bf16.msra.mxu0 %v2988
    %3222 = vmatpush.bf16.msra.mxu0 %v2981
    %3223 = vmatpush.bf16.msra.mxu0 %v2974
    %3224 = vmatpush.bf16.msra.mxu0 %v2967
    %3225 = vmatpush.bf16.msra.mxu0 %v2960
    %3226 = vmatpush.bf16.msra.mxu0 %v2953
    %3227 = vmatpush.bf16.msra.mxu0 %v2946
    %3228 = vmatmul.bf16.gmra.mxu0 %v2574
    %v3229 = vpop.f32.mrf.mxu0
    %v3230 = vadd.f32 %v2580, %v3229
    %v3231 = vpop.f32.mrf.mxu0
    %3232 = vdwg.mxu0
    %3233 = vmatpush.bf16.msra.mxu0 %v3051
    %3234 = vmatpush.bf16.msra.mxu0 %v3044
    %3235 = vmatpush.bf16.msra.mxu0 %v3037
    %3236 = vmatpush.bf16.msra.mxu0 %v3030
    %3237 = vmatpush.bf16.msra.mxu0 %v3023
    %3238 = vmatpush.bf16.msra.mxu0 %v3016
    %3239 = vmatpush.bf16.msra.mxu0 %v3009
    %3240 = vmatpush.bf16.msra.mxu0 %v3002
    %3241 = vmatmul.bf16.gmra.mxu0 %v2575
    %v3242 = vpop.f32.mrf.mxu0
    %v3243 = vadd.f32 %v3230, %v3242
    %v3244 = vpop.f32.mrf.mxu0
    %3245 = vdwg.mxu0
    %3246 = vmatpush.bf16.msra.mxu0 %v2996
    %3247 = vmatpush.bf16.msra.mxu0 %v2989
    %3248 = vmatpush.bf16.msra.mxu0 %v2982
    %3249 = vmatpush.bf16.msra.mxu0 %v2975
    %3250 = vmatpush.bf16.msra.mxu0 %v2968
    %3251 = vmatpush.bf16.msra.mxu0 %v2961
    %3252 = vmatpush.bf16.msra.mxu0 %v2954
    %3253 = vmatpush.bf16.msra.mxu0 %v2947
    %3254 = vmatmul.bf16.gmra.mxu0 %v2574
    %v3255 = vpop.f32.mrf.mxu0
    %v3256 = vadd.f32 %v2581, %v3255
    %v3257 = vpop.f32.mrf.mxu0
    %3258 = vdwg.mxu0
    %3259 = vmatpush.bf16.msra.mxu0 %v3052
    %3260 = vmatpush.bf16.msra.mxu0 %v3045
    %3261 = vmatpush.bf16.msra.mxu0 %v3038
    %3262 = vmatpush.bf16.msra.mxu0 %v3031
    %3263 = vmatpush.bf16.msra.mxu0 %v3024
    %3264 = vmatpush.bf16.msra.mxu0 %v3017
    %3265 = vmatpush.bf16.msra.mxu0 %v3010
    %3266 = vmatpush.bf16.msra.mxu0 %v3003
    %3267 = vmatmul.bf16.gmra.mxu0 %v2575
    %v3268 = vpop.f32.mrf.mxu0
    %v3269 = vadd.f32 %v3256, %v3268
    %v3270 = vpop.f32.mrf.mxu0
    %3271 = vdwg.mxu0
    %3272 = vmatpush.bf16.msra.mxu0 %v2997
    %3273 = vmatpush.bf16.msra.mxu0 %v2990
    %3274 = vmatpush.bf16.msra.mxu0 %v2983
    %3275 = vmatpush.bf16.msra.mxu0 %v2976
    %3276 = vmatpush.bf16.msra.mxu0 %v2969
    %3277 = vmatpush.bf16.msra.mxu0 %v2962
    %3278 = vmatpush.bf16.msra.mxu0 %v2955
    %3279 = vmatpush.bf16.msra.mxu0 %v2948
    %3280 = vmatmul.bf16.gmra.mxu0 %v2574
    %v3281 = vpop.f32.mrf.mxu0
    %v3282 = vadd.f32 %v2582, %v3281
    %v3283 = vpop.f32.mrf.mxu0
    %3284 = vdwg.mxu0
    %3285 = vmatpush.bf16.msra.mxu0 %v3053
    %3286 = vmatpush.bf16.msra.mxu0 %v3046
    %3287 = vmatpush.bf16.msra.mxu0 %v3039
    %3288 = vmatpush.bf16.msra.mxu0 %v3032
    %3289 = vmatpush.bf16.msra.mxu0 %v3025
    %3290 = vmatpush.bf16.msra.mxu0 %v3018
    %3291 = vmatpush.bf16.msra.mxu0 %v3011
    %3292 = vmatpush.bf16.msra.mxu0 %v3004
    %3293 = vmatmul.bf16.gmra.mxu0 %v2575
    %v3294 = vpop.f32.mrf.mxu0
    %v3295 = vadd.f32 %v3282, %v3294
    %v3296 = vpop.f32.mrf.mxu0
    %3297 = vdwg.mxu0
    %3298 = vmatpush.bf16.msra.mxu0 %v2998
    %3299 = vmatpush.bf16.msra.mxu0 %v2991
    %3300 = vmatpush.bf16.msra.mxu0 %v2984
    %3301 = vmatpush.bf16.msra.mxu0 %v2977
    %3302 = vmatpush.bf16.msra.mxu0 %v2970
    %3303 = vmatpush.bf16.msra.mxu0 %v2963
    %3304 = vmatpush.bf16.msra.mxu0 %v2956
    %3305 = vmatpush.bf16.msra.mxu0 %v2949
    %3306 = vmatmul.bf16.gmra.mxu0 %v2574
    %v3307 = vpop.f32.mrf.mxu0
    %v3308 = vadd.f32 %v2583, %v3307
    %v3309 = vpop.f32.mrf.mxu0
    %3310 = vdwg.mxu0
    %3311 = vmatpush.bf16.msra.mxu0 %v3054
    %3312 = vmatpush.bf16.msra.mxu0 %v3047
    %3313 = vmatpush.bf16.msra.mxu0 %v3040
    %3314 = vmatpush.bf16.msra.mxu0 %v3033
    %3315 = vmatpush.bf16.msra.mxu0 %v3026
    %3316 = vmatpush.bf16.msra.mxu0 %v3019
    %3317 = vmatpush.bf16.msra.mxu0 %v3012
    %3318 = vmatpush.bf16.msra.mxu0 %v3005
    %3319 = vmatmul.bf16.gmra.mxu0 %v2575
    %v3320 = vpop.f32.mrf.mxu0
    %v3321 = vadd.f32 %v3308, %v3320
    %v3322 = vpop.f32.mrf.mxu0
    %3323 = vdwg.mxu0
    %3324 = vmatpush.bf16.msra.mxu0 %v2999
    %3325 = vmatpush.bf16.msra.mxu0 %v2992
    %3326 = vmatpush.bf16.msra.mxu0 %v2985
    %3327 = vmatpush.bf16.msra.mxu0 %v2978
    %3328 = vmatpush.bf16.msra.mxu0 %v2971
    %3329 = vmatpush.bf16.msra.mxu0 %v2964
    %3330 = vmatpush.bf16.msra.mxu0 %v2957
    %3331 = vmatpush.bf16.msra.mxu0 %v2950
    %3332 = vmatmul.bf16.gmra.mxu0 %v2574
    %v3333 = vpop.f32.mrf.mxu0
    %v3334 = vadd.f32 %v2584, %v3333
    %v3335 = vpop.f32.mrf.mxu0
    %3336 = vdwg.mxu0
    %3337 = vmatpush.bf16.msra.mxu0 %v3055
    %3338 = vmatpush.bf16.msra.mxu0 %v3048
    %3339 = vmatpush.bf16.msra.mxu0 %v3041
    %3340 = vmatpush.bf16.msra.mxu0 %v3034
    %3341 = vmatpush.bf16.msra.mxu0 %v3027
    %3342 = vmatpush.bf16.msra.mxu0 %v3020
    %3343 = vmatpush.bf16.msra.mxu0 %v3013
    %3344 = vmatpush.bf16.msra.mxu0 %v3006
    %3345 = vmatmul.bf16.gmra.mxu0 %v2575
    %v3346 = vpop.f32.mrf.mxu0
    %v3347 = vadd.f32 %v3334, %v3346
    %v3348 = vpop.f32.mrf.mxu0
    %3349 = vdwg.mxu0
    %v3350 = vxor.u32 %v3191, 2147483648
    %v3351 = vxor.u32 %v3217, 2147483648
    %v3352 = vxor.u32 %v3243, 2147483648
    %v3353 = vxor.u32 %v3269, 2147483648
    %v3354 = vxor.u32 %v3295, 2147483648
    %v3355 = vxor.u32 %v3321, 2147483648
    %v3356 = vxor.u32 %v3347, 2147483648
    %v3357 = vmul.f32 %v3350, 1.442695
    %v3358 = vpow.pop %v3357
    %v3359 = vmul.f32 %v3351, 1.442695
    %v3360 = vpow.pop %v3359
    %v3361 = vmul.f32 %v3352, 1.442695
    %v3362 = vpow.pop %v3361
    %v3363 = vmul.f32 %v3353, 1.442695
    %v3364 = vpow.pop %v3363
    %v3365 = vmul.f32 %v3354, 1.442695
    %v3366 = vpow.pop %v3365
    %v3367 = vmul.f32 %v3355, 1.442695
    %v3368 = vpow.pop %v3367
    %v3369 = vmul.f32 %v3356, 1.442695
    %v3370 = vpow.pop %v3369
    %v3371 = vadd.f32 %v3358, 1.0
    %v3372 = vadd.f32 %v3360, 1.0
    %v3373 = vadd.f32 %v3362, 1.0
    %v3374 = vadd.f32 %v3364, 1.0
    %v3375 = vadd.f32 %v3366, 1.0
    %v3376 = vadd.f32 %v3368, 1.0
    %v3377 = vadd.f32 %v3370, 1.0
    %v3378 = vrcp.pop %v3371
    %v3379 = vmul.f32 %v3371, %v3378
    %v3380 = vsub.f32 1.0, %v3379
    %v3381 = vmul.f32 %v3378, %v3380
    %v3382 = vadd.f32 %v3378, %v3381
    %vm3383 = vweird.f32 %v3371
    %vm3384 = vweird.f32 %v3378
    %vm3385 = vmor %vm3383, %vm3384
    %v3386 = vsel %vm3385, %v3378, %v3382
    %v3387 = vand.u32 2147483647, %v3371
    %vm3388 = vcmp.eq.f32.partialorder %v3387, 8.507059e+37
    %v3389 = vand.u32 %v3371, 2147483648
    %v3390 = vor.u32 1.1754944e-38, %v3389
    %v3391 = vsel %vm3388, %v3390, %v3386
    %v3392 = vmul.f32 1.0, %v3391
    %v3393 = vrcp.pop %v3372
    %v3394 = vmul.f32 %v3372, %v3393
    %v3395 = vsub.f32 1.0, %v3394
    %v3396 = vmul.f32 %v3393, %v3395
    %v3397 = vadd.f32 %v3393, %v3396
    %vm3398 = vweird.f32 %v3372
    %vm3399 = vweird.f32 %v3393
    %vm3400 = vmor %vm3398, %vm3399
    %v3401 = vsel %vm3400, %v3393, %v3397
    %v3402 = vand.u32 2147483647, %v3372
    %vm3403 = vcmp.eq.f32.partialorder %v3402, 8.507059e+37
    %v3404 = vand.u32 %v3372, 2147483648
    %v3405 = vor.u32 1.1754944e-38, %v3404
    %v3406 = vsel %vm3403, %v3405, %v3401
    %v3407 = vmul.f32 1.0, %v3406
    %v3408 = vrcp.pop %v3373
    %v3409 = vmul.f32 %v3373, %v3408
    %v3410 = vsub.f32 1.0, %v3409
    %v3411 = vmul.f32 %v3408, %v3410
    %v3412 = vadd.f32 %v3408, %v3411
    %vm3413 = vweird.f32 %v3373
    %vm3414 = vweird.f32 %v3408
    %vm3415 = vmor %vm3413, %vm3414
    %v3416 = vsel %vm3415, %v3408, %v3412
    %v3417 = vand.u32 2147483647, %v3373
    %vm3418 = vcmp.eq.f32.partialorder %v3417, 8.507059e+37
    %v3419 = vand.u32 %v3373, 2147483648
    %v3420 = vor.u32 1.1754944e-38, %v3419
    %v3421 = vsel %vm3418, %v3420, %v3416
    %v3422 = vmul.f32 1.0, %v3421
    %v3423 = vrcp.pop %v3374
    %v3424 = vmul.f32 %v3374, %v3423
    %v3425 = vsub.f32 1.0, %v3424
    %v3426 = vmul.f32 %v3423, %v3425
    %v3427 = vadd.f32 %v3423, %v3426
    %vm3428 = vweird.f32 %v3374
    %vm3429 = vweird.f32 %v3423
    %vm3430 = vmor %vm3428, %vm3429
    %v3431 = vsel %vm3430, %v3423, %v3427
    %v3432 = vand.u32 2147483647, %v3374
    %vm3433 = vcmp.eq.f32.partialorder %v3432, 8.507059e+37
    %v3434 = vand.u32 %v3374, 2147483648
    %v3435 = vor.u32 1.1754944e-38, %v3434
    %v3436 = vsel %vm3433, %v3435, %v3431
    %v3437 = vmul.f32 1.0, %v3436
    %v3438 = vrcp.pop %v3375
    %v3439 = vmul.f32 %v3375, %v3438
    %v3440 = vsub.f32 1.0, %v3439
    %v3441 = vmul.f32 %v3438, %v3440
    %v3442 = vadd.f32 %v3438, %v3441
    %vm3443 = vweird.f32 %v3375
    %vm3444 = vweird.f32 %v3438
    %vm3445 = vmor %vm3443, %vm3444
    %v3446 = vsel %vm3445, %v3438, %v3442
    %v3447 = vand.u32 2147483647, %v3375
    %vm3448 = vcmp.eq.f32.partialorder %v3447, 8.507059e+37
    %v3449 = vand.u32 %v3375, 2147483648
    %v3450 = vor.u32 1.1754944e-38, %v3449
    %v3451 = vsel %vm3448, %v3450, %v3446
    %v3452 = vmul.f32 1.0, %v3451
    %v3453 = vrcp.pop %v3376
    %v3454 = vmul.f32 %v3376, %v3453
    %v3455 = vsub.f32 1.0, %v3454
    %v3456 = vmul.f32 %v3453, %v3455
    %v3457 = vadd.f32 %v3453, %v3456
    %vm3458 = vweird.f32 %v3376
    %vm3459 = vweird.f32 %v3453
    %vm3460 = vmor %vm3458, %vm3459
    %v3461 = vsel %vm3460, %v3453, %v3457
    %v3462 = vand.u32 2147483647, %v3376
    %vm3463 = vcmp.eq.f32.partialorder %v3462, 8.507059e+37
    %v3464 = vand.u32 %v3376, 2147483648
    %v3465 = vor.u32 1.1754944e-38, %v3464
    %v3466 = vsel %vm3463, %v3465, %v3461
    %v3467 = vmul.f32 1.0, %v3466
    %v3468 = vrcp.pop %v3377
    %v3469 = vmul.f32 %v3377, %v3468
    %v3470 = vsub.f32 1.0, %v3469
    %v3471 = vmul.f32 %v3468, %v3470
    %v3472 = vadd.f32 %v3468, %v3471
    %vm3473 = vweird.f32 %v3377
    %vm3474 = vweird.f32 %v3468
    %vm3475 = vmor %vm3473, %vm3474
    %v3476 = vsel %vm3475, %v3468, %v3472
    %v3477 = vand.u32 2147483647, %v3377
    %vm3478 = vcmp.eq.f32.partialorder %v3477, 8.507059e+37
    %v3479 = vand.u32 %v3377, 2147483648
    %v3480 = vor.u32 1.1754944e-38, %v3479
    %v3481 = vsel %vm3478, %v3480, %v3476
    %v3482 = vmul.f32 1.0, %v3481
    %3483 = vst [vmem:[#allocation26] sm:$0xff] %v3392
    %3484 = vst [vmem:[#allocation26 + $0x8] sm:$0xff] %v3407
    %3485 = vst [vmem:[#allocation26 + $0x10] sm:$0xff] %v3422
    %3486 = vst [vmem:[#allocation26 + $0x18] sm:$0xff] %v3437
    %3487 = vst [vmem:[#allocation26 + $0x20] sm:$0xff] %v3452
    %3488 = vst [vmem:[#allocation26 + $0x28] sm:$0xff] %v3467
    %3489 = vst [vmem:[#allocation26 + $0x30] sm:$0xff] %v3482
    // Predicated region
    $region146: #{tpu_custom_call.1} parent=1 // pred_check
      _
    $region147: #{tpu_custom_call.1} parent=1 // pred_check_branch
      %3491 = sbr.rel (0) target = $region149
    $region148: #{tpu_custom_call.1} parent=1 // pred_region
      %3493 = vsyncadd [#allocation4], 0
      %s3495 = sshll.u32 [#allocation26], 4
      %s3496 = int_to_ptr.vmem [resolvable:$true] %s3495
      %s3497 = sshll.u32 %s21, 4
      %s3498 = int_to_ptr.hbm [resolvable:$true] %s3497
      %3500 = dma.vmem_to_hbm [thread:$0]  %s3496, 896, %s3498, [#allocation4]
    $region149: #{tpu_custom_call.1} parent=1 // pred_fallthru
      _
    // Predicated region
    $region150: #{tpu_custom_call.1} parent=1 // pred_check
      _
    $region151: #{tpu_custom_call.1} parent=1 // pred_check_branch
      %3502 = sbr.rel (0) target = $region153
    $region152: #{tpu_custom_call.1} parent=1 // pred_region
      %3504 = vsyncadd [#allocation28], 0
      %s3506 = sshll.u32 [#allocation27], 4
      %s3507 = int_to_ptr.vmem [resolvable:$true] %s3506
      %s3508 = sshll.u32 %s22, 4
      %s3509 = int_to_ptr.hbm [resolvable:$true] %s3508
      %3511 = dma.vmem_to_hbm [thread:$0]  %s3507, 128, %s3509, [#allocation28]
    $region153: #{tpu_custom_call.1} parent=1 // pred_fallthru
      _
    // Predicated region
    $region154: #{tpu_custom_call.1} parent=1 // pred_check
      _
    $region155: #{tpu_custom_call.1} parent=1 // pred_check_branch
      %3513 = sbr.rel (0) target = $region157
    $region156: #{tpu_custom_call.1} parent=1 // pred_region
      %3515 = dma.done [#allocation4], 896
    $region157: #{tpu_custom_call.1} parent=1 // pred_fallthru
      _
    // Predicated region
    $region158: #{tpu_custom_call.1} parent=1 // pred_check
      _
    $region159: #{tpu_custom_call.1} parent=1 // pred_check_branch
      %3517 = sbr.rel (0) target = $region161
    $region160: #{tpu_custom_call.1} parent=1 // pred_region
      %3519 = dma.done [#allocation28], 128
    $region161: #{tpu_custom_call.1} parent=1 // pred_fallthru
      _
    %3520 = vsyncpa [#allocation3], 1
    %3521 = vsyncpa [#allocation6], 1
    %3522 = vsyncpa [#allocation9], 1
    %3523 = vsyncpa [#allocation12], 1
    %3524 = vsyncpa [#allocation15], 1
    %3525 = vsyncpa [#allocation18], 1
    %3526 = vsyncpa [#allocation21], 1
    %3527 = vsyncpa [#allocation24], 1
    %3528 = vsyncpa [#allocation4], 1
    %3529 = vsyncpa [#allocation28], 1

</llo_original>
